<compile_context>
chip_gen: v7x
topology: tpu7x:2x2x1
jax: 0.10.0
libtpu: 0.0.40
codegen_flags: <defaults>
</compile_context>

<pallas_src>
import jax
import jax.numpy as jnp
from jax import lax
from jax.experimental import pallas as pl
from jax.experimental.pallas import tpu as pltpu


# ---------------------------------------------------------------------------
# Fused Pallas kernel: all LSTM layers (both directions) + Linear(2H -> H)
# ---------------------------------------------------------------------------
def _make_fused_kernel(S, H, num_layers):
    H2 = 2 * H
    G8 = 8 * H

    def kernel(*refs):
        # inputs: x, then per layer (wx (Din,8H), b (1,8H), whh (2H,8H)), then wlin, blin
        x_ref = refs[0]
        pos = 1
        layer_refs = []
        for _ in range(num_layers):
            layer_refs.append(refs[pos:pos + 3])
            pos += 3
        wlin_ref, blin_ref = refs[pos], refs[pos + 1]
        o_ref = refs[pos + 2]
        gx_scr = refs[pos + 3]                       # (S, 8H) combined gate-input buffer

        # ---- loop-invariant constants, hoisted (JAX does not CSE broadcast_in_dim) ----
        lane1 = lax.broadcasted_iota(jnp.int32, (1, G8), 1)
        g_lanes = (lane1 >= 4 * H) & (lane1 < 6 * H)             # g-gate lanes
        act_scale = jnp.where(g_lanes, jnp.float32(2.0), jnp.float32(1.0))
        act_shift = jnp.where(g_lanes, jnp.float32(-1.0), jnp.float32(0.0))

        lane_s = lax.broadcasted_iota(jnp.int32, (S, G8), 1)
        bwd_lanes = (((lane_s >= 1 * H) & (lane_s < 2 * H)) |
                     ((lane_s >= 3 * H) & (lane_s < 4 * H)) |
                     ((lane_s >= 5 * H) & (lane_s < 6 * H)) |
                     ((lane_s >= 7 * H) & (lane_s < 8 * H)))      # bwd-direction lanes

        row_i = lax.broadcasted_iota(jnp.int32, (S, S), 0)
        col_i = lax.broadcasted_iota(jnp.int32, (S, S), 1)
        flip_mat = jnp.where(row_i + col_i == S - 1,
                             jnp.float32(1.0), jnp.float32(0.0))  # time-reversal perm

        x_in = x_ref[...]
        for (wx_ref, b_ref, whh_ref) in layer_refs:
            # Hoisted input projection, both directions fused: one (S,Din)@(Din,8H) pass.
            gx = jnp.dot(x_in, wx_ref[...],
                         preferred_element_type=jnp.float32) + b_ref[...]      # (S, 8H)
            # Time-reverse the bwd lanes ONCE (off the recurrent chain) so each step
            # reads a single contiguous (1, 8H) row.
            gx_rev = jnp.dot(flip_mat, gx, preferred_element_type=jnp.float32)
            gx_scr[...] = jnp.where(bwd_lanes, gx_rev, gx)

            h = jnp.zeros((1, H2), jnp.float32)      # [h_fwd | h_bwd], loop-carried value
            c = jnp.zeros((1, H2), jnp.float32)
            hs = []
            # Fully unrolled (S small): the LLO scheduler overlaps step-t epilogue with
            # the step-(t+1) recurrent matmul; no h/c VMEM round trips.
            for t in range(S):
                rec = jnp.dot(h, whh_ref[...],
                              preferred_element_type=jnp.float32)               # (1, 8H)
                gates = rec + gx_scr[t:t + 1, :]
                # One EUP sigmoid over the row; tanh(x) = 2*sigmoid(2x) - 1 on g lanes.
                act = jax.nn.sigmoid(gates * act_scale) * act_scale + act_shift
                i_g = act[:, 0 * H2:1 * H2]
                f_g = act[:, 1 * H2:2 * H2]
                g_g = act[:, 2 * H2:3 * H2]
                o_g = act[:, 3 * H2:4 * H2]
                c = f_g * c + i_g * g_g
                h = o_g * jnp.tanh(c)
                hs.append(h)                         # trace-time collection, no stores

            h_all = jnp.concatenate(hs, axis=0)      # (S, 2H) in step order
            # fwd half already in time order; bwd half was recorded in reversed time.
            y_bwd = jnp.dot(flip_mat, h_all[:, H:],
                            preferred_element_type=jnp.float32)
            x_in = jnp.concatenate([h_all[:, :H], y_bwd], axis=1)               # (S, 2H)

        # Fused final Linear(2H -> H): one bulk output store.
        o_ref[...] = (jnp.dot(x_in, wlin_ref[...],
                              preferred_element_type=jnp.float32) + blin_ref[...])

    return kernel


def turn_level_lstm_forward(inputs, prep):
    """Fused forward pass. `prep` comes from prepare_params()."""
    S, H = inputs.shape
    num_layers = len(prep["lstm"])
    n_in = 1 + 3 * num_layers + 2
    vmem = pl.BlockSpec(memory_space=pltpu.MemorySpace.VMEM)
    call = pl.pallas_call(
        _make_fused_kernel(S, H, num_layers),
        out_shape=jax.ShapeDtypeStruct((S, H), jnp.float32),
        in_specs=[vmem] * n_in,
        out_specs=vmem,
        scratch_shapes=[
            pltpu.VMEM((S, 8 * H), jnp.float32),     # combined (fwd|bwd-reversed) gate inputs
        ],
        compiler_params=pltpu.CompilerParams(vmem_limit_bytes=32 * 1024 * 1024),
    )
    args = [inputs]
    for lp in prep["lstm"]:
        args += [lp["wx"], lp["b"], lp["whh"]]
    args += [prep["linear"]["w_t"], prep["linear"]["b"]]
    return call(*args)


# ---------------------------------------------------------------------------
# Parameter init (PyTorch layout) + one-time kernel-layout preparation
# ---------------------------------------------------------------------------
def init_params(key, hidden_size, num_layers):
    H = hidden_size
    k = 1.0 / float(H) ** 0.5
    params = {"lstm": []}
    for layer in range(num_layers):
        in_size = H if layer == 0 else 2 * H
        layer_p = {}
        for d in ("fwd", "bwd"):
            key, k1, k2, k3, k4 = jax.random.split(key, 5)
            layer_p[d] = {
                "w_ih": jax.random.uniform(k1, (4 * H, in_size), jnp.float32, -k, k),
                "w_hh": jax.random.uniform(k2, (4 * H, H), jnp.float32, -k, k),
                "b_ih": jax.random.uniform(k3, (4 * H,), jnp.float32, -k, k),
                "b_hh": jax.random.uniform(k4, (4 * H,), jnp.float32, -k, k),
            }
        params["lstm"].append(layer_p)
    kl = 1.0 / float(2 * H) ** 0.5
    key, k1, k2 = jax.random.split(key, 3)
    params["linear"] = {
        "w": jax.random.uniform(k1, (H, 2 * H), jnp.float32, -kl, kl),
        "b": jax.random.uniform(k2, (H,), jnp.float32, -kl, kl),
    }
    return params


def prepare_params(raw):
    """Pre-transpose / pre-combine / gate-interleave once (not on every forward)."""
    prep = {"lstm": []}
    for layer in raw["lstm"]:
        fd, bd = layer["fwd"], layer["bwd"]
        H = fd["w_hh"].shape[1]
        wih_f, wih_b = fd["w_ih"].T, bd["w_ih"].T          # (Din, 4H), cols [i,f,g,o]
        whh_f, whh_b = fd["w_hh"].T, bd["w_hh"].T          # (H, 4H)
        bias_f = fd["b_ih"] + fd["b_hh"]                   # (4H,)
        bias_b = bd["b_ih"] + bd["b_hh"]

        wx_cols, whh_cols, b_parts = [], [], []
        zH = jnp.zeros((H, H), jnp.float32)
        for k in range(4):                                  # gate order i, f, g, o
            sl = slice(k * H, (k + 1) * H)
            wx_cols += [wih_f[:, sl], wih_b[:, sl]]
            whh_cols += [jnp.concatenate([whh_f[:, sl], zH], axis=0),   # fwd rows only
                         jnp.concatenate([zH, whh_b[:, sl]], axis=0)]   # bwd rows only
            b_parts += [bias_f[sl], bias_b[sl]]
        prep["lstm"].append({
            "wx": jnp.concatenate(wx_cols, axis=1),         # (Din, 8H) interleaved
            "whh": jnp.concatenate(whh_cols, axis=1),       # (2H, 8H) block-diagonal
            "b": jnp.concatenate(b_parts).reshape(1, -1),   # (1, 8H)
        })
    prep["linear"] = {
        "w_t": raw["linear"]["w"].T,                        # (2H, H)
        "b": raw["linear"]["b"].reshape(1, -1),             # (1, H)
    }
    return prep


# ---------------------------------------------------------------------------
# Pure-JAX reference (mirrors nn.LSTM(bidirectional=True) + Linear, eval mode)
# ---------------------------------------------------------------------------
def _reference_forward(inputs, raw):
    hp = jax.lax.Precision.HIGHEST
    x = inputs
    H = inputs.shape[1]
    for layer in raw["lstm"]:
        outs = []
        for d in ("fwd", "bwd"):
            p = layer[d]
            xs = x[::-1] if d == "bwd" else x
            h = jnp.zeros((H,), jnp.float32)
            c = jnp.zeros((H,), jnp.float32)
            ys = []
            for t in range(xs.shape[0]):
                gates = (jnp.dot(xs[t], p["w_ih"].T, precision=hp) + p["b_ih"]
                         + jnp.dot(h, p["w_hh"].T, precision=hp) + p["b_hh"])
                i = jax.nn.sigmoid(gates[0:H])
                f = jax.nn.sigmoid(gates[H:2 * H])
                g = jnp.tanh(gates[2 * H:3 * H])
                o = jax.nn.sigmoid(gates[3 * H:4 * H])
                c = f * c + i * g
                h = o * jnp.tanh(c)
                ys.append(h)
            y = jnp.stack(ys)
            if d == "bwd":
                y = y[::-1]
            outs.append(y)
        x = jnp.concatenate(outs, axis=-1)
    return jnp.dot(x, raw["linear"]["w"].T, precision=hp) + raw["linear"]["b"]


# ---------------------------------------------------------------------------
if __name__ == "__main__":
    SEQ, HIDDEN, NUM_LAYERS = 8, 32, 2

    key = jax.random.PRNGKey(0)
    key_x, key_p = jax.random.split(key)
    inputs = jax.random.normal(key_x, (SEQ, HIDDEN), jnp.float32)
    raw_params = init_params(key_p, HIDDEN, NUM_LAYERS)
    prep_params = prepare_params(raw_params)

    fwd = jax.jit(turn_level_lstm_forward)
    out = jax.block_until_ready(fwd(inputs, prep_params))

    assert out.shape == (SEQ, HIDDEN), out.shape
    assert out.dtype == jnp.float32
    assert bool(jnp.all(jnp.isfinite(out)))

    ref = jax.block_until_ready(_reference_forward(inputs, raw_params))
    max_err = float(jnp.max(jnp.abs(out - ref)))
    assert max_err < 5e-3, f"max abs error vs reference: {max_err}"

    print("KERNEL_OK")
</pallas_src>

<mosaic_0001>
module attributes {stable_mosaic.version = 11 : i64} {
  func.func @kernel(%arg0: memref<8x32xf32, #tpu.memory_space<vmem>>, %arg1: memref<32x256xf32, #tpu.memory_space<vmem>>, %arg2: memref<1x256xf32, #tpu.memory_space<vmem>>, %arg3: memref<64x256xf32, #tpu.memory_space<vmem>>, %arg4: memref<64x256xf32, #tpu.memory_space<vmem>>, %arg5: memref<1x256xf32, #tpu.memory_space<vmem>>, %arg6: memref<64x256xf32, #tpu.memory_space<vmem>>, %arg7: memref<64x32xf32, #tpu.memory_space<vmem>>, %arg8: memref<1x32xf32, #tpu.memory_space<vmem>>, %arg9: memref<8x32xf32, #tpu.memory_space<vmem>>, %arg10: memref<8x256xf32, #tpu.memory_space<vmem>>) attributes {dimension_semantics = [], scalar_prefetch = 0 : i64, scratch_operands = 1 : i64, tpu.core_type = #tpu.core_type<tc>} {
    %0 = tpu.iota {dimensions = array<i32: 1>} : vector<1x256xi32>
    %c128_i32 = arith.constant 128 : i32
    %1 = vector.broadcast %c128_i32 : i32 to vector<1x256xi32>
    %2 = arith.cmpi sge, %0, %1 : vector<1x256xi32>
    %c192_i32 = arith.constant 192 : i32
    %3 = vector.broadcast %c192_i32 : i32 to vector<1x256xi32>
    %4 = arith.cmpi slt, %0, %3 : vector<1x256xi32>
    %5 = arith.andi %2, %4 : vector<1x256xi1>
    %cst = arith.constant 2.000000e+00 : f32
    %cst_0 = arith.constant 1.000000e+00 : f32
    %6 = vector.broadcast %cst : f32 to vector<1x256xf32>
    %7 = vector.broadcast %cst_0 : f32 to vector<1x256xf32>
    %8 = arith.select %5, %6, %7 : vector<1x256xi1>, vector<1x256xf32>
    %cst_1 = arith.constant -1.000000e+00 : f32
    %cst_2 = arith.constant 0.000000e+00 : f32
    %9 = vector.broadcast %cst_1 : f32 to vector<1x256xf32>
    %10 = vector.broadcast %cst_2 : f32 to vector<1x256xf32>
    %11 = arith.select %5, %9, %10 : vector<1x256xi1>, vector<1x256xf32>
    %12 = tpu.iota {dimensions = array<i32: 1>} : vector<8x256xi32>
    %c32_i32 = arith.constant 32 : i32
    %13 = vector.broadcast %c32_i32 : i32 to vector<8x256xi32>
    %14 = arith.cmpi sge, %12, %13 : vector<8x256xi32>
    %c64_i32 = arith.constant 64 : i32
    %15 = vector.broadcast %c64_i32 : i32 to vector<8x256xi32>
    %16 = arith.cmpi slt, %12, %15 : vector<8x256xi32>
    %17 = arith.andi %14, %16 : vector<8x256xi1>
    %c96_i32 = arith.constant 96 : i32
    %18 = vector.broadcast %c96_i32 : i32 to vector<8x256xi32>
    %19 = arith.cmpi sge, %12, %18 : vector<8x256xi32>
    %c128_i32_3 = arith.constant 128 : i32
    %20 = vector.broadcast %c128_i32_3 : i32 to vector<8x256xi32>
    %21 = arith.cmpi slt, %12, %20 : vector<8x256xi32>
    %22 = arith.andi %19, %21 : vector<8x256xi1>
    %23 = arith.ori %17, %22 : vector<8x256xi1>
    %c160_i32 = arith.constant 160 : i32
    %24 = vector.broadcast %c160_i32 : i32 to vector<8x256xi32>
    %25 = arith.cmpi sge, %12, %24 : vector<8x256xi32>
    %c192_i32_4 = arith.constant 192 : i32
    %26 = vector.broadcast %c192_i32_4 : i32 to vector<8x256xi32>
    %27 = arith.cmpi slt, %12, %26 : vector<8x256xi32>
    %28 = arith.andi %25, %27 : vector<8x256xi1>
    %29 = arith.ori %23, %28 : vector<8x256xi1>
    %c224_i32 = arith.constant 224 : i32
    %30 = vector.broadcast %c224_i32 : i32 to vector<8x256xi32>
    %31 = arith.cmpi sge, %12, %30 : vector<8x256xi32>
    %c256_i32 = arith.constant 256 : i32
    %32 = vector.broadcast %c256_i32 : i32 to vector<8x256xi32>
    %33 = arith.cmpi slt, %12, %32 : vector<8x256xi32>
    %34 = arith.andi %31, %33 : vector<8x256xi1>
    %35 = arith.ori %29, %34 : vector<8x256xi1>
    %36 = tpu.iota {dimensions = array<i32: 0>} : vector<8x8xi32>
    %37 = tpu.iota {dimensions = array<i32: 1>} : vector<8x8xi32>
    %38 = arith.addi %36, %37 : vector<8x8xi32>
    %c7_i32 = arith.constant 7 : i32
    %39 = vector.broadcast %c7_i32 : i32 to vector<8x8xi32>
    %40 = arith.cmpi eq, %38, %39 : vector<8x8xi32>
    %cst_5 = arith.constant 1.000000e+00 : f32
    %cst_6 = arith.constant 0.000000e+00 : f32
    %41 = vector.broadcast %cst_5 : f32 to vector<8x8xf32>
    %42 = vector.broadcast %cst_6 : f32 to vector<8x8xf32>
    %43 = arith.select %40, %41, %42 : vector<8x8xi1>, vector<8x8xf32>
    %c0 = arith.constant 0 : index
    %c0_7 = arith.constant 0 : index
    %44 = vector.load %arg0[%c0, %c0_7] : memref<8x32xf32, #tpu.memory_space<vmem>>, vector<8x32xf32>
    %c0_8 = arith.constant 0 : index
    %c0_9 = arith.constant 0 : index
    %45 = vector.load %arg1[%c0_8, %c0_9] : memref<32x256xf32, #tpu.memory_space<vmem>>, vector<32x256xf32>
    %cst_10 = arith.constant dense<0.000000e+00> : vector<8x256xf32>
    %46 = tpu.matmul %44, %45, %cst_10 {dimension_numbers = #tpu.dot_dimension_numbers<[1], [0], [0], [1], [0, 0, 1, 1], [], []>} : vector<8x32xf32>, vector<32x256xf32>, vector<8x256xf32> -> vector<8x256xf32>
    %c0_11 = arith.constant 0 : index
    %c0_12 = arith.constant 0 : index
    %47 = vector.load %arg2[%c0_11, %c0_12] : memref<1x256xf32, #tpu.memory_space<vmem>>, vector<1x256xf32>
    %48 = vector.broadcast %47 : vector<1x256xf32> to vector<8x256xf32>
    %49 = arith.addf %46, %48 : vector<8x256xf32>
    %cst_13 = arith.constant dense<0.000000e+00> : vector<8x256xf32>
    %50 = tpu.matmul %43, %49, %cst_13 {dimension_numbers = #tpu.dot_dimension_numbers<[1], [0], [0], [1], [0, 0, 1, 1], [], []>} : vector<8x8xf32>, vector<8x256xf32>, vector<8x256xf32> -> vector<8x256xf32>
    %51 = arith.select %35, %50, %49 : vector<8x256xi1>, vector<8x256xf32>
    %c0_14 = arith.constant 0 : index
    %c0_15 = arith.constant 0 : index
    %52 = vector.load %arg10[%c0_14, %c0_15] : memref<8x256xf32, #tpu.memory_space<vmem>>, vector<8x256xf32>
    tpu.vector_store %arg10[%c0_14, %c0_15], %51 {strides = array<i32>} : memref<8x256xf32, #tpu.memory_space<vmem>>, vector<8x256xf32>,
    %cst_16 = arith.constant 0.000000e+00 : f32
    %53 = vector.broadcast %cst_16 : f32 to vector<1x64xf32>
    %cst_17 = arith.constant 0.000000e+00 : f32
    %54 = vector.broadcast %cst_17 : f32 to vector<1x64xf32>
    %c0_18 = arith.constant 0 : index
    %c0_19 = arith.constant 0 : index
    %55 = vector.load %arg3[%c0_18, %c0_19] : memref<64x256xf32, #tpu.memory_space<vmem>>, vector<64x256xf32>
    %cst_20 = arith.constant dense<0.000000e+00> : vector<1x256xf32>
    %56 = tpu.matmul %53, %55, %cst_20 {dimension_numbers = #tpu.dot_dimension_numbers<[1], [0], [0], [1], [0, 0, 1, 1], [], []>} : vector<1x64xf32>, vector<64x256xf32>, vector<1x256xf32> -> vector<1x256xf32>
    %c0_21 = arith.constant 0 : index
    %c0_22 = arith.constant 0 : index
    %57 = vector.load %arg10[%c0_21, %c0_22] : memref<8x256xf32, #tpu.memory_space<vmem>>, vector<1x256xf32>
    %58 = arith.addf %56, %57 : vector<1x256xf32>
    %59 = arith.mulf %58, %8 : vector<1x256xf32>
    %60 = arith.negf %59 : vector<1x256xf32>
    %61 = math.exp %60 : vector<1x256xf32>
    %cst_23 = arith.constant 1.000000e+00 : f32
    %62 = vector.broadcast %cst_23 : f32 to vector<1x256xf32>
    %63 = arith.addf %62, %61 : vector<1x256xf32>
    %64 = arith.divf %62, %63 : vector<1x256xf32>
    %65 = arith.mulf %64, %8 : vector<1x256xf32>
    %66 = arith.addf %65, %11 : vector<1x256xf32>
    %67 = vector.extract_strided_slice %66 {offsets = [0, 0], sizes = [1, 64], strides = [1, 1]} : vector<1x256xf32> to vector<1x64xf32>
    %68 = vector.extract_strided_slice %66 {offsets = [0, 64], sizes = [1, 64], strides = [1, 1]} : vector<1x256xf32> to vector<1x64xf32>
    %69 = vector.extract_strided_slice %66 {offsets = [0, 128], sizes = [1, 64], strides = [1, 1]} : vector<1x256xf32> to vector<1x64xf32>
    %70 = vector.extract_strided_slice %66 {offsets = [0, 192], sizes = [1, 64], strides = [1, 1]} : vector<1x256xf32> to vector<1x64xf32>
    %71 = arith.mulf %68, %54 : vector<1x64xf32>
    %72 = arith.mulf %67, %69 : vector<1x64xf32>
    %73 = arith.addf %71, %72 : vector<1x64xf32>
    %74 = math.tanh %73 : vector<1x64xf32>
    %75 = arith.mulf %70, %74 : vector<1x64xf32>
    %c0_24 = arith.constant 0 : index
    %c0_25 = arith.constant 0 : index
    %76 = vector.load %arg3[%c0_24, %c0_25] : memref<64x256xf32, #tpu.memory_space<vmem>>, vector<64x256xf32>
    %cst_26 = arith.constant dense<0.000000e+00> : vector<1x256xf32>
    %77 = tpu.matmul %75, %76, %cst_26 {dimension_numbers = #tpu.dot_dimension_numbers<[1], [0], [0], [1], [0, 0, 1, 1], [], []>} : vector<1x64xf32>, vector<64x256xf32>, vector<1x256xf32> -> vector<1x256xf32>
    %c1 = arith.constant 1 : index
    %c0_27 = arith.constant 0 : index
    %78 = vector.load %arg10[%c1, %c0_27] : memref<8x256xf32, #tpu.memory_space<vmem>>, vector<1x256xf32>
    %79 = arith.addf %77, %78 : vector<1x256xf32>
    %80 = arith.mulf %79, %8 : vector<1x256xf32>
    %81 = arith.negf %80 : vector<1x256xf32>
    %82 = math.exp %81 : vector<1x256xf32>
    %cst_28 = arith.constant 1.000000e+00 : f32
    %83 = vector.broadcast %cst_28 : f32 to vector<1x256xf32>
    %84 = arith.addf %83, %82 : vector<1x256xf32>
    %85 = arith.divf %83, %84 : vector<1x256xf32>
    %86 = arith.mulf %85, %8 : vector<1x256xf32>
    %87 = arith.addf %86, %11 : vector<1x256xf32>
    %88 = vector.extract_strided_slice %87 {offsets = [0, 0], sizes = [1, 64], strides = [1, 1]} : vector<1x256xf32> to vector<1x64xf32>
    %89 = vector.extract_strided_slice %87 {offsets = [0, 64], sizes = [1, 64], strides = [1, 1]} : vector<1x256xf32> to vector<1x64xf32>
    %90 = vector.extract_strided_slice %87 {offsets = [0, 128], sizes = [1, 64], strides = [1, 1]} : vector<1x256xf32> to vector<1x64xf32>
    %91 = vector.extract_strided_slice %87 {offsets = [0, 192], sizes = [1, 64], strides = [1, 1]} : vector<1x256xf32> to vector<1x64xf32>
    %92 = arith.mulf %89, %73 : vector<1x64xf32>
    %93 = arith.mulf %88, %90 : vector<1x64xf32>
    %94 = arith.addf %92, %93 : vector<1x64xf32>
    %95 = math.tanh %94 : vector<1x64xf32>
    %96 = arith.mulf %91, %95 : vector<1x64xf32>
    %c0_29 = arith.constant 0 : index
    %c0_30 = arith.constant 0 : index
    %97 = vector.load %arg3[%c0_29, %c0_30] : memref<64x256xf32, #tpu.memory_space<vmem>>, vector<64x256xf32>
    %cst_31 = arith.constant dense<0.000000e+00> : vector<1x256xf32>
    %98 = tpu.matmul %96, %97, %cst_31 {dimension_numbers = #tpu.dot_dimension_numbers<[1], [0], [0], [1], [0, 0, 1, 1], [], []>} : vector<1x64xf32>, vector<64x256xf32>, vector<1x256xf32> -> vector<1x256xf32>
    %c2 = arith.constant 2 : index
    %c0_32 = arith.constant 0 : index
    %99 = vector.load %arg10[%c2, %c0_32] : memref<8x256xf32, #tpu.memory_space<vmem>>, vector<1x256xf32>
    %100 = arith.addf %98, %99 : vector<1x256xf32>
    %101 = arith.mulf %100, %8 : vector<1x256xf32>
    %102 = arith.negf %101 : vector<1x256xf32>
    %103 = math.exp %102 : vector<1x256xf32>
    %cst_33 = arith.constant 1.000000e+00 : f32
    %104 = vector.broadcast %cst_33 : f32 to vector<1x256xf32>
    %105 = arith.addf %104, %103 : vector<1x256xf32>
    %106 = arith.divf %104, %105 : vector<1x256xf32>
    %107 = arith.mulf %106, %8 : vector<1x256xf32>
    %108 = arith.addf %107, %11 : vector<1x256xf32>
    %109 = vector.extract_strided_slice %108 {offsets = [0, 0], sizes = [1, 64], strides = [1, 1]} : vector<1x256xf32> to vector<1x64xf32>
    %110 = vector.extract_strided_slice %108 {offsets = [0, 64], sizes = [1, 64], strides = [1, 1]} : vector<1x256xf32> to vector<1x64xf32>
    %111 = vector.extract_strided_slice %108 {offsets = [0, 128], sizes = [1, 64], strides = [1, 1]} : vector<1x256xf32> to vector<1x64xf32>
    %112 = vector.extract_strided_slice %108 {offsets = [0, 192], sizes = [1, 64], strides = [1, 1]} : vector<1x256xf32> to vector<1x64xf32>
    %113 = arith.mulf %110, %94 : vector<1x64xf32>
    %114 = arith.mulf %109, %111 : vector<1x64xf32>
    %115 = arith.addf %113, %114 : vector<1x64xf32>
    %116 = math.tanh %115 : vector<1x64xf32>
    %117 = arith.mulf %112, %116 : vector<1x64xf32>
    %c0_34 = arith.constant 0 : index
    %c0_35 = arith.constant 0 : index
    %118 = vector.load %arg3[%c0_34, %c0_35] : memref<64x256xf32, #tpu.memory_space<vmem>>, vector<64x256xf32>
    %cst_36 = arith.constant dense<0.000000e+00> : vector<1x256xf32>
    %119 = tpu.matmul %117, %118, %cst_36 {dimension_numbers = #tpu.dot_dimension_numbers<[1], [0], [0], [1], [0, 0, 1, 1], [], []>} : vector<1x64xf32>, vector<64x256xf32>, vector<1x256xf32> -> vector<1x256xf32>
    %c3 = arith.constant 3 : index
    %c0_37 = arith.constant 0 : index
    %120 = vector.load %arg10[%c3, %c0_37] : memref<8x256xf32, #tpu.memory_space<vmem>>, vector<1x256xf32>
    %121 = arith.addf %119, %120 : vector<1x256xf32>
    %122 = arith.mulf %121, %8 : vector<1x256xf32>
    %123 = arith.negf %122 : vector<1x256xf32>
    %124 = math.exp %123 : vector<1x256xf32>
    %cst_38 = arith.constant 1.000000e+00 : f32
    %125 = vector.broadcast %cst_38 : f32 to vector<1x256xf32>
    %126 = arith.addf %125, %124 : vector<1x256xf32>
    %127 = arith.divf %125, %126 : vector<1x256xf32>
    %128 = arith.mulf %127, %8 : vector<1x256xf32>
    %129 = arith.addf %128, %11 : vector<1x256xf32>
    %130 = vector.extract_strided_slice %129 {offsets = [0, 0], sizes = [1, 64], strides = [1, 1]} : vector<1x256xf32> to vector<1x64xf32>
    %131 = vector.extract_strided_slice %129 {offsets = [0, 64], sizes = [1, 64], strides = [1, 1]} : vector<1x256xf32> to vector<1x64xf32>
    %132 = vector.extract_strided_slice %129 {offsets = [0, 128], sizes = [1, 64], strides = [1, 1]} : vector<1x256xf32> to vector<1x64xf32>
    %133 = vector.extract_strided_slice %129 {offsets = [0, 192], sizes = [1, 64], strides = [1, 1]} : vector<1x256xf32> to vector<1x64xf32>
    %134 = arith.mulf %131, %115 : vector<1x64xf32>
    %135 = arith.mulf %130, %132 : vector<1x64xf32>
    %136 = arith.addf %134, %135 : vector<1x64xf32>
    %137 = math.tanh %136 : vector<1x64xf32>
    %138 = arith.mulf %133, %137 : vector<1x64xf32>
    %c0_39 = arith.constant 0 : index
    %c0_40 = arith.constant 0 : index
    %139 = vector.load %arg3[%c0_39, %c0_40] : memref<64x256xf32, #tpu.memory_space<vmem>>, vector<64x256xf32>
    %cst_41 = arith.constant dense<0.000000e+00> : vector<1x256xf32>
    %140 = tpu.matmul %138, %139, %cst_41 {dimension_numbers = #tpu.dot_dimension_numbers<[1], [0], [0], [1], [0, 0, 1, 1], [], []>} : vector<1x64xf32>, vector<64x256xf32>, vector<1x256xf32> -> vector<1x256xf32>
    %c4 = arith.constant 4 : index
    %c0_42 = arith.constant 0 : index
    %141 = vector.load %arg10[%c4, %c0_42] : memref<8x256xf32, #tpu.memory_space<vmem>>, vector<1x256xf32>
    %142 = arith.addf %140, %141 : vector<1x256xf32>
    %143 = arith.mulf %142, %8 : vector<1x256xf32>
    %144 = arith.negf %143 : vector<1x256xf32>
    %145 = math.exp %144 : vector<1x256xf32>
    %cst_43 = arith.constant 1.000000e+00 : f32
    %146 = vector.broadcast %cst_43 : f32 to vector<1x256xf32>
    %147 = arith.addf %146, %145 : vector<1x256xf32>
    %148 = arith.divf %146, %147 : vector<1x256xf32>
    %149 = arith.mulf %148, %8 : vector<1x256xf32>
    %150 = arith.addf %149, %11 : vector<1x256xf32>
    %151 = vector.extract_strided_slice %150 {offsets = [0, 0], sizes = [1, 64], strides = [1, 1]} : vector<1x256xf32> to vector<1x64xf32>
    %152 = vector.extract_strided_slice %150 {offsets = [0, 64], sizes = [1, 64], strides = [1, 1]} : vector<1x256xf32> to vector<1x64xf32>
    %153 = vector.extract_strided_slice %150 {offsets = [0, 128], sizes = [1, 64], strides = [1, 1]} : vector<1x256xf32> to vector<1x64xf32>
    %154 = vector.extract_strided_slice %150 {offsets = [0, 192], sizes = [1, 64], strides = [1, 1]} : vector<1x256xf32> to vector<1x64xf32>
    %155 = arith.mulf %152, %136 : vector<1x64xf32>
    %156 = arith.mulf %151, %153 : vector<1x64xf32>
    %157 = arith.addf %155, %156 : vector<1x64xf32>
    %158 = math.tanh %157 : vector<1x64xf32>
    %159 = arith.mulf %154, %158 : vector<1x64xf32>
    %c0_44 = arith.constant 0 : index
    %c0_45 = arith.constant 0 : index
    %160 = vector.load %arg3[%c0_44, %c0_45] : memref<64x256xf32, #tpu.memory_space<vmem>>, vector<64x256xf32>
    %cst_46 = arith.constant dense<0.000000e+00> : vector<1x256xf32>
    %161 = tpu.matmul %159, %160, %cst_46 {dimension_numbers = #tpu.dot_dimension_numbers<[1], [0], [0], [1], [0, 0, 1, 1], [], []>} : vector<1x64xf32>, vector<64x256xf32>, vector<1x256xf32> -> vector<1x256xf32>
    %c5 = arith.constant 5 : index
    %c0_47 = arith.constant 0 : index
    %162 = vector.load %arg10[%c5, %c0_47] : memref<8x256xf32, #tpu.memory_space<vmem>>, vector<1x256xf32>
    %163 = arith.addf %161, %162 : vector<1x256xf32>
    %164 = arith.mulf %163, %8 : vector<1x256xf32>
    %165 = arith.negf %164 : vector<1x256xf32>
    %166 = math.exp %165 : vector<1x256xf32>
    %cst_48 = arith.constant 1.000000e+00 : f32
    %167 = vector.broadcast %cst_48 : f32 to vector<1x256xf32>
    %168 = arith.addf %167, %166 : vector<1x256xf32>
    %169 = arith.divf %167, %168 : vector<1x256xf32>
    %170 = arith.mulf %169, %8 : vector<1x256xf32>
    %171 = arith.addf %170, %11 : vector<1x256xf32>
    %172 = vector.extract_strided_slice %171 {offsets = [0, 0], sizes = [1, 64], strides = [1, 1]} : vector<1x256xf32> to vector<1x64xf32>
    %173 = vector.extract_strided_slice %171 {offsets = [0, 64], sizes = [1, 64], strides = [1, 1]} : vector<1x256xf32> to vector<1x64xf32>
    %174 = vector.extract_strided_slice %171 {offsets = [0, 128], sizes = [1, 64], strides = [1, 1]} : vector<1x256xf32> to vector<1x64xf32>
    %175 = vector.extract_strided_slice %171 {offsets = [0, 192], sizes = [1, 64], strides = [1, 1]} : vector<1x256xf32> to vector<1x64xf32>
    %176 = arith.mulf %173, %157 : vector<1x64xf32>
    %177 = arith.mulf %172, %174 : vector<1x64xf32>
    %178 = arith.addf %176, %177 : vector<1x64xf32>
    %179 = math.tanh %178 : vector<1x64xf32>
    %180 = arith.mulf %175, %179 : vector<1x64xf32>
    %c0_49 = arith.constant 0 : index
    %c0_50 = arith.constant 0 : index
    %181 = vector.load %arg3[%c0_49, %c0_50] : memref<64x256xf32, #tpu.memory_space<vmem>>, vector<64x256xf32>
    %cst_51 = arith.constant dense<0.000000e+00> : vector<1x256xf32>
    %182 = tpu.matmul %180, %181, %cst_51 {dimension_numbers = #tpu.dot_dimension_numbers<[1], [0], [0], [1], [0, 0, 1, 1], [], []>} : vector<1x64xf32>, vector<64x256xf32>, vector<1x256xf32> -> vector<1x256xf32>
    %c6 = arith.constant 6 : index
    %c0_52 = arith.constant 0 : index
    %183 = vector.load %arg10[%c6, %c0_52] : memref<8x256xf32, #tpu.memory_space<vmem>>, vector<1x256xf32>
    %184 = arith.addf %182, %183 : vector<1x256xf32>
    %185 = arith.mulf %184, %8 : vector<1x256xf32>
    %186 = arith.negf %185 : vector<1x256xf32>
    %187 = math.exp %186 : vector<1x256xf32>
    %cst_53 = arith.constant 1.000000e+00 : f32
    %188 = vector.broadcast %cst_53 : f32 to vector<1x256xf32>
    %189 = arith.addf %188, %187 : vector<1x256xf32>
    %190 = arith.divf %188, %189 : vector<1x256xf32>
    %191 = arith.mulf %190, %8 : vector<1x256xf32>
    %192 = arith.addf %191, %11 : vector<1x256xf32>
    %193 = vector.extract_strided_slice %192 {offsets = [0, 0], sizes = [1, 64], strides = [1, 1]} : vector<1x256xf32> to vector<1x64xf32>
    %194 = vector.extract_strided_slice %192 {offsets = [0, 64], sizes = [1, 64], strides = [1, 1]} : vector<1x256xf32> to vector<1x64xf32>
    %195 = vector.extract_strided_slice %192 {offsets = [0, 128], sizes = [1, 64], strides = [1, 1]} : vector<1x256xf32> to vector<1x64xf32>
    %196 = vector.extract_strided_slice %192 {offsets = [0, 192], sizes = [1, 64], strides = [1, 1]} : vector<1x256xf32> to vector<1x64xf32>
    %197 = arith.mulf %194, %178 : vector<1x64xf32>
    %198 = arith.mulf %193, %195 : vector<1x64xf32>
    %199 = arith.addf %197, %198 : vector<1x64xf32>
    %200 = math.tanh %199 : vector<1x64xf32>
    %201 = arith.mulf %196, %200 : vector<1x64xf32>
    %c0_54 = arith.constant 0 : index
    %c0_55 = arith.constant 0 : index
    %202 = vector.load %arg3[%c0_54, %c0_55] : memref<64x256xf32, #tpu.memory_space<vmem>>, vector<64x256xf32>
    %cst_56 = arith.constant dense<0.000000e+00> : vector<1x256xf32>
    %203 = tpu.matmul %201, %202, %cst_56 {dimension_numbers = #tpu.dot_dimension_numbers<[1], [0], [0], [1], [0, 0, 1, 1], [], []>} : vector<1x64xf32>, vector<64x256xf32>, vector<1x256xf32> -> vector<1x256xf32>
    %c7 = arith.constant 7 : index
    %c0_57 = arith.constant 0 : index
    %204 = vector.load %arg10[%c7, %c0_57] : memref<8x256xf32, #tpu.memory_space<vmem>>, vector<1x256xf32>
    %205 = arith.addf %203, %204 : vector<1x256xf32>
    %206 = arith.mulf %205, %8 : vector<1x256xf32>
    %207 = arith.negf %206 : vector<1x256xf32>
    %208 = math.exp %207 : vector<1x256xf32>
    %cst_58 = arith.constant 1.000000e+00 : f32
    %209 = vector.broadcast %cst_58 : f32 to vector<1x256xf32>
    %210 = arith.addf %209, %208 : vector<1x256xf32>
    %211 = arith.divf %209, %210 : vector<1x256xf32>
    %212 = arith.mulf %211, %8 : vector<1x256xf32>
    %213 = arith.addf %212, %11 : vector<1x256xf32>
    %214 = vector.extract_strided_slice %213 {offsets = [0, 0], sizes = [1, 64], strides = [1, 1]} : vector<1x256xf32> to vector<1x64xf32>
    %215 = vector.extract_strided_slice %213 {offsets = [0, 64], sizes = [1, 64], strides = [1, 1]} : vector<1x256xf32> to vector<1x64xf32>
    %216 = vector.extract_strided_slice %213 {offsets = [0, 128], sizes = [1, 64], strides = [1, 1]} : vector<1x256xf32> to vector<1x64xf32>
    %217 = vector.extract_strided_slice %213 {offsets = [0, 192], sizes = [1, 64], strides = [1, 1]} : vector<1x256xf32> to vector<1x64xf32>
    %218 = arith.mulf %215, %199 : vector<1x64xf32>
    %219 = arith.mulf %214, %216 : vector<1x64xf32>
    %220 = arith.addf %218, %219 : vector<1x64xf32>
    %221 = math.tanh %220 : vector<1x64xf32>
    %222 = arith.mulf %217, %221 : vector<1x64xf32>
    %223 = tpu.concatenate %75, %96, %117, %138, %159, %180, %201, %222 in 0 : vector<1x64xf32>, vector<1x64xf32>, vector<1x64xf32>, vector<1x64xf32>, vector<1x64xf32>, vector<1x64xf32>, vector<1x64xf32>, vector<1x64xf32> -> vector<8x64xf32>
    %224 = vector.extract_strided_slice %223 {offsets = [0, 32], sizes = [8, 32], strides = [1, 1]} : vector<8x64xf32> to vector<8x32xf32>
    %cst_59 = arith.constant dense<0.000000e+00> : vector<8x32xf32>
    %225 = tpu.matmul %43, %224, %cst_59 {dimension_numbers = #tpu.dot_dimension_numbers<[1], [0], [0], [1], [0, 0, 1, 1], [], []>} : vector<8x8xf32>, vector<8x32xf32>, vector<8x32xf32> -> vector<8x32xf32>
    %226 = vector.extract_strided_slice %223 {offsets = [0, 0], sizes = [8, 32], strides = [1, 1]} : vector<8x64xf32> to vector<8x32xf32>
    %227 = tpu.concatenate %226, %225 in 1 : vector<8x32xf32>, vector<8x32xf32> -> vector<8x64xf32>
    %c0_60 = arith.constant 0 : index
    %c0_61 = arith.constant 0 : index
    %228 = vector.load %arg4[%c0_60, %c0_61] : memref<64x256xf32, #tpu.memory_space<vmem>>, vector<64x256xf32>
    %cst_62 = arith.constant dense<0.000000e+00> : vector<8x256xf32>
    %229 = tpu.matmul %227, %228, %cst_62 {dimension_numbers = #tpu.dot_dimension_numbers<[1], [0], [0], [1], [0, 0, 1, 1], [], []>} : vector<8x64xf32>, vector<64x256xf32>, vector<8x256xf32> -> vector<8x256xf32>
    %c0_63 = arith.constant 0 : index
    %c0_64 = arith.constant 0 : index
    %230 = vector.load %arg5[%c0_63, %c0_64] : memref<1x256xf32, #tpu.memory_space<vmem>>, vector<1x256xf32>
    %231 = vector.broadcast %230 : vector<1x256xf32> to vector<8x256xf32>
    %232 = arith.addf %229, %231 : vector<8x256xf32>
    %cst_65 = arith.constant dense<0.000000e+00> : vector<8x256xf32>
    %233 = tpu.matmul %43, %232, %cst_65 {dimension_numbers = #tpu.dot_dimension_numbers<[1], [0], [0], [1], [0, 0, 1, 1], [], []>} : vector<8x8xf32>, vector<8x256xf32>, vector<8x256xf32> -> vector<8x256xf32>
    %234 = arith.select %35, %233, %232 : vector<8x256xi1>, vector<8x256xf32>
    %c0_66 = arith.constant 0 : index
    %c0_67 = arith.constant 0 : index
    %235 = vector.load %arg10[%c0_66, %c0_67] : memref<8x256xf32, #tpu.memory_space<vmem>>, vector<8x256xf32>
    tpu.vector_store %arg10[%c0_66, %c0_67], %234 {strides = array<i32>} : memref<8x256xf32, #tpu.memory_space<vmem>>, vector<8x256xf32>,
    %cst_68 = arith.constant 0.000000e+00 : f32
    %236 = vector.broadcast %cst_68 : f32 to vector<1x64xf32>
    %cst_69 = arith.constant 0.000000e+00 : f32
    %237 = vector.broadcast %cst_69 : f32 to vector<1x64xf32>
    %c0_70 = arith.constant 0 : index
    %c0_71 = arith.constant 0 : index
    %238 = vector.load %arg6[%c0_70, %c0_71] : memref<64x256xf32, #tpu.memory_space<vmem>>, vector<64x256xf32>
    %cst_72 = arith.constant dense<0.000000e+00> : vector<1x256xf32>
    %239 = tpu.matmul %236, %238, %cst_72 {dimension_numbers = #tpu.dot_dimension_numbers<[1], [0], [0], [1], [0, 0, 1, 1], [], []>} : vector<1x64xf32>, vector<64x256xf32>, vector<1x256xf32> -> vector<1x256xf32>
    %c0_73 = arith.constant 0 : index
    %c0_74 = arith.constant 0 : index
    %240 = vector.load %arg10[%c0_73, %c0_74] : memref<8x256xf32, #tpu.memory_space<vmem>>, vector<1x256xf32>
    %241 = arith.addf %239, %240 : vector<1x256xf32>
    %242 = arith.mulf %241, %8 : vector<1x256xf32>
    %243 = arith.negf %242 : vector<1x256xf32>
    %244 = math.exp %243 : vector<1x256xf32>
    %cst_75 = arith.constant 1.000000e+00 : f32
    %245 = vector.broadcast %cst_75 : f32 to vector<1x256xf32>
    %246 = arith.addf %245, %244 : vector<1x256xf32>
    %247 = arith.divf %245, %246 : vector<1x256xf32>
    %248 = arith.mulf %247, %8 : vector<1x256xf32>
    %249 = arith.addf %248, %11 : vector<1x256xf32>
    %250 = vector.extract_strided_slice %249 {offsets = [0, 0], sizes = [1, 64], strides = [1, 1]} : vector<1x256xf32> to vector<1x64xf32>
    %251 = vector.extract_strided_slice %249 {offsets = [0, 64], sizes = [1, 64], strides = [1, 1]} : vector<1x256xf32> to vector<1x64xf32>
    %252 = vector.extract_strided_slice %249 {offsets = [0, 128], sizes = [1, 64], strides = [1, 1]} : vector<1x256xf32> to vector<1x64xf32>
    %253 = vector.extract_strided_slice %249 {offsets = [0, 192], sizes = [1, 64], strides = [1, 1]} : vector<1x256xf32> to vector<1x64xf32>
    %254 = arith.mulf %251, %237 : vector<1x64xf32>
    %255 = arith.mulf %250, %252 : vector<1x64xf32>
    %256 = arith.addf %254, %255 : vector<1x64xf32>
    %257 = math.tanh %256 : vector<1x64xf32>
    %258 = arith.mulf %253, %257 : vector<1x64xf32>
    %c0_76 = arith.constant 0 : index
    %c0_77 = arith.constant 0 : index
    %259 = vector.load %arg6[%c0_76, %c0_77] : memref<64x256xf32, #tpu.memory_space<vmem>>, vector<64x256xf32>
    %cst_78 = arith.constant dense<0.000000e+00> : vector<1x256xf32>
    %260 = tpu.matmul %258, %259, %cst_78 {dimension_numbers = #tpu.dot_dimension_numbers<[1], [0], [0], [1], [0, 0, 1, 1], [], []>} : vector<1x64xf32>, vector<64x256xf32>, vector<1x256xf32> -> vector<1x256xf32>
    %c1_79 = arith.constant 1 : index
    %c0_80 = arith.constant 0 : index
    %261 = vector.load %arg10[%c1_79, %c0_80] : memref<8x256xf32, #tpu.memory_space<vmem>>, vector<1x256xf32>
    %262 = arith.addf %260, %261 : vector<1x256xf32>
    %263 = arith.mulf %262, %8 : vector<1x256xf32>
    %264 = arith.negf %263 : vector<1x256xf32>
    %265 = math.exp %264 : vector<1x256xf32>
    %cst_81 = arith.constant 1.000000e+00 : f32
    %266 = vector.broadcast %cst_81 : f32 to vector<1x256xf32>
    %267 = arith.addf %266, %265 : vector<1x256xf32>
    %268 = arith.divf %266, %267 : vector<1x256xf32>
    %269 = arith.mulf %268, %8 : vector<1x256xf32>
    %270 = arith.addf %269, %11 : vector<1x256xf32>
    %271 = vector.extract_strided_slice %270 {offsets = [0, 0], sizes = [1, 64], strides = [1, 1]} : vector<1x256xf32> to vector<1x64xf32>
    %272 = vector.extract_strided_slice %270 {offsets = [0, 64], sizes = [1, 64], strides = [1, 1]} : vector<1x256xf32> to vector<1x64xf32>
    %273 = vector.extract_strided_slice %270 {offsets = [0, 128], sizes = [1, 64], strides = [1, 1]} : vector<1x256xf32> to vector<1x64xf32>
    %274 = vector.extract_strided_slice %270 {offsets = [0, 192], sizes = [1, 64], strides = [1, 1]} : vector<1x256xf32> to vector<1x64xf32>
    %275 = arith.mulf %272, %256 : vector<1x64xf32>
    %276 = arith.mulf %271, %273 : vector<1x64xf32>
    %277 = arith.addf %275, %276 : vector<1x64xf32>
    %278 = math.tanh %277 : vector<1x64xf32>
    %279 = arith.mulf %274, %278 : vector<1x64xf32>
    %c0_82 = arith.constant 0 : index
    %c0_83 = arith.constant 0 : index
    %280 = vector.load %arg6[%c0_82, %c0_83] : memref<64x256xf32, #tpu.memory_space<vmem>>, vector<64x256xf32>
    %cst_84 = arith.constant dense<0.000000e+00> : vector<1x256xf32>
    %281 = tpu.matmul %279, %280, %cst_84 {dimension_numbers = #tpu.dot_dimension_numbers<[1], [0], [0], [1], [0, 0, 1, 1], [], []>} : vector<1x64xf32>, vector<64x256xf32>, vector<1x256xf32> -> vector<1x256xf32>
    %c2_85 = arith.constant 2 : index
    %c0_86 = arith.constant 0 : index
    %282 = vector.load %arg10[%c2_85, %c0_86] : memref<8x256xf32, #tpu.memory_space<vmem>>, vector<1x256xf32>
    %283 = arith.addf %281, %282 : vector<1x256xf32>
    %284 = arith.mulf %283, %8 : vector<1x256xf32>
    %285 = arith.negf %284 : vector<1x256xf32>
    %286 = math.exp %285 : vector<1x256xf32>
    %cst_87 = arith.constant 1.000000e+00 : f32
    %287 = vector.broadcast %cst_87 : f32 to vector<1x256xf32>
    %288 = arith.addf %287, %286 : vector<1x256xf32>
    %289 = arith.divf %287, %288 : vector<1x256xf32>
    %290 = arith.mulf %289, %8 : vector<1x256xf32>
    %291 = arith.addf %290, %11 : vector<1x256xf32>
    %292 = vector.extract_strided_slice %291 {offsets = [0, 0], sizes = [1, 64], strides = [1, 1]} : vector<1x256xf32> to vector<1x64xf32>
    %293 = vector.extract_strided_slice %291 {offsets = [0, 64], sizes = [1, 64], strides = [1, 1]} : vector<1x256xf32> to vector<1x64xf32>
    %294 = vector.extract_strided_slice %291 {offsets = [0, 128], sizes = [1, 64], strides = [1, 1]} : vector<1x256xf32> to vector<1x64xf32>
    %295 = vector.extract_strided_slice %291 {offsets = [0, 192], sizes = [1, 64], strides = [1, 1]} : vector<1x256xf32> to vector<1x64xf32>
    %296 = arith.mulf %293, %277 : vector<1x64xf32>
    %297 = arith.mulf %292, %294 : vector<1x64xf32>
    %298 = arith.addf %296, %297 : vector<1x64xf32>
    %299 = math.tanh %298 : vector<1x64xf32>
    %300 = arith.mulf %295, %299 : vector<1x64xf32>
    %c0_88 = arith.constant 0 : index
    %c0_89 = arith.constant 0 : index
    %301 = vector.load %arg6[%c0_88, %c0_89] : memref<64x256xf32, #tpu.memory_space<vmem>>, vector<64x256xf32>
    %cst_90 = arith.constant dense<0.000000e+00> : vector<1x256xf32>
    %302 = tpu.matmul %300, %301, %cst_90 {dimension_numbers = #tpu.dot_dimension_numbers<[1], [0], [0], [1], [0, 0, 1, 1], [], []>} : vector<1x64xf32>, vector<64x256xf32>, vector<1x256xf32> -> vector<1x256xf32>
    %c3_91 = arith.constant 3 : index
    %c0_92 = arith.constant 0 : index
    %303 = vector.load %arg10[%c3_91, %c0_92] : memref<8x256xf32, #tpu.memory_space<vmem>>, vector<1x256xf32>
    %304 = arith.addf %302, %303 : vector<1x256xf32>
    %305 = arith.mulf %304, %8 : vector<1x256xf32>
    %306 = arith.negf %305 : vector<1x256xf32>
    %307 = math.exp %306 : vector<1x256xf32>
    %cst_93 = arith.constant 1.000000e+00 : f32
    %308 = vector.broadcast %cst_93 : f32 to vector<1x256xf32>
    %309 = arith.addf %308, %307 : vector<1x256xf32>
    %310 = arith.divf %308, %309 : vector<1x256xf32>
    %311 = arith.mulf %310, %8 : vector<1x256xf32>
    %312 = arith.addf %311, %11 : vector<1x256xf32>
    %313 = vector.extract_strided_slice %312 {offsets = [0, 0], sizes = [1, 64], strides = [1, 1]} : vector<1x256xf32> to vector<1x64xf32>
    %314 = vector.extract_strided_slice %312 {offsets = [0, 64], sizes = [1, 64], strides = [1, 1]} : vector<1x256xf32> to vector<1x64xf32>
    %315 = vector.extract_strided_slice %312 {offsets = [0, 128], sizes = [1, 64], strides = [1, 1]} : vector<1x256xf32> to vector<1x64xf32>
    %316 = vector.extract_strided_slice %312 {offsets = [0, 192], sizes = [1, 64], strides = [1, 1]} : vector<1x256xf32> to vector<1x64xf32>
    %317 = arith.mulf %314, %298 : vector<1x64xf32>
    %318 = arith.mulf %313, %315 : vector<1x64xf32>
    %319 = arith.addf %317, %318 : vector<1x64xf32>
    %320 = math.tanh %319 : vector<1x64xf32>
    %321 = arith.mulf %316, %320 : vector<1x64xf32>
    %c0_94 = arith.constant 0 : index
    %c0_95 = arith.constant 0 : index
    %322 = vector.load %arg6[%c0_94, %c0_95] : memref<64x256xf32, #tpu.memory_space<vmem>>, vector<64x256xf32>
    %cst_96 = arith.constant dense<0.000000e+00> : vector<1x256xf32>
    %323 = tpu.matmul %321, %322, %cst_96 {dimension_numbers = #tpu.dot_dimension_numbers<[1], [0], [0], [1], [0, 0, 1, 1], [], []>} : vector<1x64xf32>, vector<64x256xf32>, vector<1x256xf32> -> vector<1x256xf32>
    %c4_97 = arith.constant 4 : index
    %c0_98 = arith.constant 0 : index
    %324 = vector.load %arg10[%c4_97, %c0_98] : memref<8x256xf32, #tpu.memory_space<vmem>>, vector<1x256xf32>
    %325 = arith.addf %323, %324 : vector<1x256xf32>
    %326 = arith.mulf %325, %8 : vector<1x256xf32>
    %327 = arith.negf %326 : vector<1x256xf32>
    %328 = math.exp %327 : vector<1x256xf32>
    %cst_99 = arith.constant 1.000000e+00 : f32
    %329 = vector.broadcast %cst_99 : f32 to vector<1x256xf32>
    %330 = arith.addf %329, %328 : vector<1x256xf32>
    %331 = arith.divf %329, %330 : vector<1x256xf32>
    %332 = arith.mulf %331, %8 : vector<1x256xf32>
    %333 = arith.addf %332, %11 : vector<1x256xf32>
    %334 = vector.extract_strided_slice %333 {offsets = [0, 0], sizes = [1, 64], strides = [1, 1]} : vector<1x256xf32> to vector<1x64xf32>
    %335 = vector.extract_strided_slice %333 {offsets = [0, 64], sizes = [1, 64], strides = [1, 1]} : vector<1x256xf32> to vector<1x64xf32>
    %336 = vector.extract_strided_slice %333 {offsets = [0, 128], sizes = [1, 64], strides = [1, 1]} : vector<1x256xf32> to vector<1x64xf32>
    %337 = vector.extract_strided_slice %333 {offsets = [0, 192], sizes = [1, 64], strides = [1, 1]} : vector<1x256xf32> to vector<1x64xf32>
    %338 = arith.mulf %335, %319 : vector<1x64xf32>
    %339 = arith.mulf %334, %336 : vector<1x64xf32>
    %340 = arith.addf %338, %339 : vector<1x64xf32>
    %341 = math.tanh %340 : vector<1x64xf32>
    %342 = arith.mulf %337, %341 : vector<1x64xf32>
    %c0_100 = arith.constant 0 : index
    %c0_101 = arith.constant 0 : index
    %343 = vector.load %arg6[%c0_100, %c0_101] : memref<64x256xf32, #tpu.memory_space<vmem>>, vector<64x256xf32>
    %cst_102 = arith.constant dense<0.000000e+00> : vector<1x256xf32>
    %344 = tpu.matmul %342, %343, %cst_102 {dimension_numbers = #tpu.dot_dimension_numbers<[1], [0], [0], [1], [0, 0, 1, 1], [], []>} : vector<1x64xf32>, vector<64x256xf32>, vector<1x256xf32> -> vector<1x256xf32>
    %c5_103 = arith.constant 5 : index
    %c0_104 = arith.constant 0 : index
    %345 = vector.load %arg10[%c5_103, %c0_104] : memref<8x256xf32, #tpu.memory_space<vmem>>, vector<1x256xf32>
    %346 = arith.addf %344, %345 : vector<1x256xf32>
    %347 = arith.mulf %346, %8 : vector<1x256xf32>
    %348 = arith.negf %347 : vector<1x256xf32>
    %349 = math.exp %348 : vector<1x256xf32>
    %cst_105 = arith.constant 1.000000e+00 : f32
    %350 = vector.broadcast %cst_105 : f32 to vector<1x256xf32>
    %351 = arith.addf %350, %349 : vector<1x256xf32>
    %352 = arith.divf %350, %351 : vector<1x256xf32>
    %353 = arith.mulf %352, %8 : vector<1x256xf32>
    %354 = arith.addf %353, %11 : vector<1x256xf32>
    %355 = vector.extract_strided_slice %354 {offsets = [0, 0], sizes = [1, 64], strides = [1, 1]} : vector<1x256xf32> to vector<1x64xf32>
    %356 = vector.extract_strided_slice %354 {offsets = [0, 64], sizes = [1, 64], strides = [1, 1]} : vector<1x256xf32> to vector<1x64xf32>
    %357 = vector.extract_strided_slice %354 {offsets = [0, 128], sizes = [1, 64], strides = [1, 1]} : vector<1x256xf32> to vector<1x64xf32>
    %358 = vector.extract_strided_slice %354 {offsets = [0, 192], sizes = [1, 64], strides = [1, 1]} : vector<1x256xf32> to vector<1x64xf32>
    %359 = arith.mulf %356, %340 : vector<1x64xf32>
    %360 = arith.mulf %355, %357 : vector<1x64xf32>
    %361 = arith.addf %359, %360 : vector<1x64xf32>
    %362 = math.tanh %361 : vector<1x64xf32>
    %363 = arith.mulf %358, %362 : vector<1x64xf32>
    %c0_106 = arith.constant 0 : index
    %c0_107 = arith.constant 0 : index
    %364 = vector.load %arg6[%c0_106, %c0_107] : memref<64x256xf32, #tpu.memory_space<vmem>>, vector<64x256xf32>
    %cst_108 = arith.constant dense<0.000000e+00> : vector<1x256xf32>
    %365 = tpu.matmul %363, %364, %cst_108 {dimension_numbers = #tpu.dot_dimension_numbers<[1], [0], [0], [1], [0, 0, 1, 1], [], []>} : vector<1x64xf32>, vector<64x256xf32>, vector<1x256xf32> -> vector<1x256xf32>
    %c6_109 = arith.constant 6 : index
    %c0_110 = arith.constant 0 : index
    %366 = vector.load %arg10[%c6_109, %c0_110] : memref<8x256xf32, #tpu.memory_space<vmem>>, vector<1x256xf32>
    %367 = arith.addf %365, %366 : vector<1x256xf32>
    %368 = arith.mulf %367, %8 : vector<1x256xf32>
    %369 = arith.negf %368 : vector<1x256xf32>
    %370 = math.exp %369 : vector<1x256xf32>
    %cst_111 = arith.constant 1.000000e+00 : f32
    %371 = vector.broadcast %cst_111 : f32 to vector<1x256xf32>
    %372 = arith.addf %371, %370 : vector<1x256xf32>
    %373 = arith.divf %371, %372 : vector<1x256xf32>
    %374 = arith.mulf %373, %8 : vector<1x256xf32>
    %375 = arith.addf %374, %11 : vector<1x256xf32>
    %376 = vector.extract_strided_slice %375 {offsets = [0, 0], sizes = [1, 64], strides = [1, 1]} : vector<1x256xf32> to vector<1x64xf32>
    %377 = vector.extract_strided_slice %375 {offsets = [0, 64], sizes = [1, 64], strides = [1, 1]} : vector<1x256xf32> to vector<1x64xf32>
    %378 = vector.extract_strided_slice %375 {offsets = [0, 128], sizes = [1, 64], strides = [1, 1]} : vector<1x256xf32> to vector<1x64xf32>
    %379 = vector.extract_strided_slice %375 {offsets = [0, 192], sizes = [1, 64], strides = [1, 1]} : vector<1x256xf32> to vector<1x64xf32>
    %380 = arith.mulf %377, %361 : vector<1x64xf32>
    %381 = arith.mulf %376, %378 : vector<1x64xf32>
    %382 = arith.addf %380, %381 : vector<1x64xf32>
    %383 = math.tanh %382 : vector<1x64xf32>
    %384 = arith.mulf %379, %383 : vector<1x64xf32>
    %c0_112 = arith.constant 0 : index
    %c0_113 = arith.constant 0 : index
    %385 = vector.load %arg6[%c0_112, %c0_113] : memref<64x256xf32, #tpu.memory_space<vmem>>, vector<64x256xf32>
    %cst_114 = arith.constant dense<0.000000e+00> : vector<1x256xf32>
    %386 = tpu.matmul %384, %385, %cst_114 {dimension_numbers = #tpu.dot_dimension_numbers<[1], [0], [0], [1], [0, 0, 1, 1], [], []>} : vector<1x64xf32>, vector<64x256xf32>, vector<1x256xf32> -> vector<1x256xf32>
    %c7_115 = arith.constant 7 : index
    %c0_116 = arith.constant 0 : index
    %387 = vector.load %arg10[%c7_115, %c0_116] : memref<8x256xf32, #tpu.memory_space<vmem>>, vector<1x256xf32>
    %388 = arith.addf %386, %387 : vector<1x256xf32>
    %389 = arith.mulf %388, %8 : vector<1x256xf32>
    %390 = arith.negf %389 : vector<1x256xf32>
    %391 = math.exp %390 : vector<1x256xf32>
    %cst_117 = arith.constant 1.000000e+00 : f32
    %392 = vector.broadcast %cst_117 : f32 to vector<1x256xf32>
    %393 = arith.addf %392, %391 : vector<1x256xf32>
    %394 = arith.divf %392, %393 : vector<1x256xf32>
    %395 = arith.mulf %394, %8 : vector<1x256xf32>
    %396 = arith.addf %395, %11 : vector<1x256xf32>
    %397 = vector.extract_strided_slice %396 {offsets = [0, 0], sizes = [1, 64], strides = [1, 1]} : vector<1x256xf32> to vector<1x64xf32>
    %398 = vector.extract_strided_slice %396 {offsets = [0, 64], sizes = [1, 64], strides = [1, 1]} : vector<1x256xf32> to vector<1x64xf32>
    %399 = vector.extract_strided_slice %396 {offsets = [0, 128], sizes = [1, 64], strides = [1, 1]} : vector<1x256xf32> to vector<1x64xf32>
    %400 = vector.extract_strided_slice %396 {offsets = [0, 192], sizes = [1, 64], strides = [1, 1]} : vector<1x256xf32> to vector<1x64xf32>
    %401 = arith.mulf %398, %382 : vector<1x64xf32>
    %402 = arith.mulf %397, %399 : vector<1x64xf32>
    %403 = arith.addf %401, %402 : vector<1x64xf32>
    %404 = math.tanh %403 : vector<1x64xf32>
    %405 = arith.mulf %400, %404 : vector<1x64xf32>
    %406 = tpu.concatenate %258, %279, %300, %321, %342, %363, %384, %405 in 0 : vector<1x64xf32>, vector<1x64xf32>, vector<1x64xf32>, vector<1x64xf32>, vector<1x64xf32>, vector<1x64xf32>, vector<1x64xf32>, vector<1x64xf32> -> vector<8x64xf32>
    %407 = vector.extract_strided_slice %406 {offsets = [0, 32], sizes = [8, 32], strides = [1, 1]} : vector<8x64xf32> to vector<8x32xf32>
    %cst_118 = arith.constant dense<0.000000e+00> : vector<8x32xf32>
    %408 = tpu.matmul %43, %407, %cst_118 {dimension_numbers = #tpu.dot_dimension_numbers<[1], [0], [0], [1], [0, 0, 1, 1], [], []>} : vector<8x8xf32>, vector<8x32xf32>, vector<8x32xf32> -> vector<8x32xf32>
    %409 = vector.extract_strided_slice %406 {offsets = [0, 0], sizes = [8, 32], strides = [1, 1]} : vector<8x64xf32> to vector<8x32xf32>
    %410 = tpu.concatenate %409, %408 in 1 : vector<8x32xf32>, vector<8x32xf32> -> vector<8x64xf32>
    %c0_119 = arith.constant 0 : index
    %c0_120 = arith.constant 0 : index
    %411 = vector.load %arg7[%c0_119, %c0_120] : memref<64x32xf32, #tpu.memory_space<vmem>>, vector<64x32xf32>
    %cst_121 = arith.constant dense<0.000000e+00> : vector<8x32xf32>
    %412 = tpu.matmul %410, %411, %cst_121 {dimension_numbers = #tpu.dot_dimension_numbers<[1], [0], [0], [1], [0, 0, 1, 1], [], []>} : vector<8x64xf32>, vector<64x32xf32>, vector<8x32xf32> -> vector<8x32xf32>
    %c0_122 = arith.constant 0 : index
    %c0_123 = arith.constant 0 : index
    %413 = vector.load %arg8[%c0_122, %c0_123] : memref<1x32xf32, #tpu.memory_space<vmem>>, vector<1x32xf32>
    %414 = vector.broadcast %413 : vector<1x32xf32> to vector<8x32xf32>
    %415 = arith.addf %412, %414 : vector<8x32xf32>
    %c0_124 = arith.constant 0 : index
    %c0_125 = arith.constant 0 : index
    %416 = vector.load %arg9[%c0_124, %c0_125] : memref<8x32xf32, #tpu.memory_space<vmem>>, vector<8x32xf32>
    tpu.vector_store %arg9[%c0_124, %c0_125], %415 {strides = array<i32>} : memref<8x32xf32, #tpu.memory_space<vmem>>, vector<8x32xf32>,
    return
  }
}

</mosaic_0001>

<llo_original>
// kernel: turn_level_lstm_forward.1
$region0: #{turn_level_lstm_forward.1}
  #allocation0 [shape = 'u32[]', space=smem, size = 0x4, offset = 0x4, fixed_abs, tag = 'smem constant byte address 0x4 - core index']
  #allocation1 [shape = 'u32[144,128]{1,0:T(1,128)}', space=vmem, size = 0x12000, scoped, tag = 'internal scratch']
  #allocation2 [shape = 'f32[8,256]{1,0:T(8,128)}', space=vmem, size = 0x2000, scoped, tag = 'scratch operand']
  %s0 = inlined_call_operand.vmem [shape: f32[8,32], index: 0, kind: input, shape index: {}]
  %s1 = inlined_call_operand.vmem [shape: f32[32,256], index: 1, kind: input, shape index: {}]
  %s2 = inlined_call_operand.vmem [shape: f32[1,256], index: 2, kind: input, shape index: {}]
  %s3 = inlined_call_operand.hbm [shape: f32[64,256], index: 3, kind: input, shape index: {}]
  %s4 = inlined_call_operand.hbm [shape: f32[64,256], index: 4, kind: input, shape index: {}]
  %s5 = inlined_call_operand.vmem [shape: f32[1,256], index: 5, kind: input, shape index: {}]
  %s6 = inlined_call_operand.hbm [shape: f32[64,256], index: 6, kind: input, shape index: {}]
  %s7 = inlined_call_operand.vmem [shape: f32[64,32], index: 7, kind: input, shape index: {}]
  %s8 = inlined_call_operand.vmem [shape: f32[1,32], index: 8, kind: input, shape index: {}]
  %s9 = inlined_call_operand.hbm [shape: f32[8,32], index: 9, kind: output, shape index: {}]
  %s10 = sld [smem:[#allocation0]]
  $region58: #{turn_level_lstm_forward.1} parent=0
    _
  %s12 = ssub.s32 1, %s10
  %s13 = scalar_select 0, %s12, %s10
  $region1: #{turn_level_lstm_forward.1} parent=0
    #allocation3 [shape = 'u8[65536]{0}', space=vmem, size = 0x10000, scoped, tag = 'input window, operand 3, single buffered']
    #allocation4 [shape = 's32[1]{0}', space=sflag, size = 0x4, scoped, tag = 'scoped memory for turn_level_lstm_forward.1']
    #allocation5 [shape = 's32[1]{0}', space=sflag, size = 0x4, scoped, tag = 'scoped memory for turn_level_lstm_forward.1']
    #allocation6 [shape = 'u8[65536]{0}', space=vmem, size = 0x10000, scoped, tag = 'input window, operand 4, single buffered']
    #allocation7 [shape = 's32[1]{0}', space=sflag, size = 0x4, scoped, tag = 'scoped memory for turn_level_lstm_forward.1']
    #allocation8 [shape = 'u8[65536]{0}', space=vmem, size = 0x10000, scoped, tag = 'input window, operand 6, single buffered']
    #allocation9 [shape = 'u8[4096]{0}', space=vmem, size = 0x1000, scoped, tag = 'output window, operand 0, single buffered']
    %14 = vsyncpa [#allocation4], 0
    %15 = vsyncpa [#allocation7], 0
    %16 = vsyncpa [#allocation5], 0
    // Predicated region
    $region2: #{turn_level_lstm_forward.1} parent=1 // pred_check
      _
    $region3: #{turn_level_lstm_forward.1} parent=1 // pred_check_branch
      %18 = sbr.rel (0) target = $region5
    $region4: #{turn_level_lstm_forward.1} parent=1 // pred_region
      _
    $region5: #{turn_level_lstm_forward.1} parent=1 // pred_fallthru
      _
    // Predicated region
    $region6: #{turn_level_lstm_forward.1} parent=1 // pred_check
      _
    $region7: #{turn_level_lstm_forward.1} parent=1 // pred_check_branch
      %20 = sbr.rel (0) target = $region9
    $region8: #{turn_level_lstm_forward.1} parent=1 // pred_region
      _
    $region9: #{turn_level_lstm_forward.1} parent=1 // pred_fallthru
      _
    // Predicated region
    $region10: #{turn_level_lstm_forward.1} parent=1 // pred_check
      _
    $region11: #{turn_level_lstm_forward.1} parent=1 // pred_check_branch
      %22 = sbr.rel (0) target = $region13
    $region12: #{turn_level_lstm_forward.1} parent=1 // pred_region
      _
    $region13: #{turn_level_lstm_forward.1} parent=1 // pred_fallthru
      _
    // Predicated region
    $region14: #{turn_level_lstm_forward.1} parent=1 // pred_check
      _
    $region15: #{turn_level_lstm_forward.1} parent=1 // pred_check_branch
      %24 = sbr.rel (0) target = $region17
    $region16: #{turn_level_lstm_forward.1} parent=1 // pred_region
      %s26 = ssub.s32 2048, 2048
      %27 = vsyncadd [#allocation4], %s26
      %s28 = sshll.u32 [#allocation3], 4
      %s29 = int_to_ptr.vmem [resolvable:$true] %s28
      %34 = dma.hbm_to_vmem [thread:$0]  %s3, 2048, %s29, [#allocation4], 256, 256, 16
    $region17: #{turn_level_lstm_forward.1} parent=1 // pred_fallthru
      _
    // Predicated region
    $region18: #{turn_level_lstm_forward.1} parent=1 // pred_check
      _
    $region19: #{turn_level_lstm_forward.1} parent=1 // pred_check_branch
      %36 = sbr.rel (0) target = $region21
    $region20: #{turn_level_lstm_forward.1} parent=1 // pred_region
      %s38 = ssub.s32 2048, 2048
      %39 = vsyncadd [#allocation7], %s38
      %s40 = sshll.u32 [#allocation6], 4
      %s41 = int_to_ptr.vmem [resolvable:$true] %s40
      %46 = dma.hbm_to_vmem [thread:$0]  %s4, 2048, %s41, [#allocation7], 256, 256, 16
    $region21: #{turn_level_lstm_forward.1} parent=1 // pred_fallthru
      _
    // Predicated region
    $region22: #{turn_level_lstm_forward.1} parent=1 // pred_check
      _
    $region23: #{turn_level_lstm_forward.1} parent=1 // pred_check_branch
      %48 = sbr.rel (0) target = $region25
    $region24: #{turn_level_lstm_forward.1} parent=1 // pred_region
      _
    $region25: #{turn_level_lstm_forward.1} parent=1 // pred_fallthru
      _
    // Predicated region
    $region26: #{turn_level_lstm_forward.1} parent=1 // pred_check
      _
    $region27: #{turn_level_lstm_forward.1} parent=1 // pred_check_branch
      %50 = sbr.rel (0) target = $region29
    $region28: #{turn_level_lstm_forward.1} parent=1 // pred_region
      %s52 = ssub.s32 2048, 2048
      %53 = vsyncadd [#allocation7], %s52
      %s54 = sshll.u32 [#allocation8], 4
      %s55 = int_to_ptr.vmem [resolvable:$true] %s54
      %60 = dma.hbm_to_vmem [thread:$0]  %s6, 2048, %s55, [#allocation7], 256, 256, 16
    $region29: #{turn_level_lstm_forward.1} parent=1 // pred_fallthru
      _
    // Predicated region
    $region30: #{turn_level_lstm_forward.1} parent=1 // pred_check
      _
    $region31: #{turn_level_lstm_forward.1} parent=1 // pred_check_branch
      %62 = sbr.rel (0) target = $region33
    $region32: #{turn_level_lstm_forward.1} parent=1 // pred_region
      _
    $region33: #{turn_level_lstm_forward.1} parent=1 // pred_fallthru
      _
    // Predicated region
    $region34: #{turn_level_lstm_forward.1} parent=1 // pred_check
      _
    $region35: #{turn_level_lstm_forward.1} parent=1 // pred_check_branch
      %64 = sbr.rel (0) target = $region37
    $region36: #{turn_level_lstm_forward.1} parent=1 // pred_region
      _
    $region37: #{turn_level_lstm_forward.1} parent=1 // pred_fallthru
      _
    // Predicated region
    $region38: #{turn_level_lstm_forward.1} parent=1 // pred_check
      _
    $region39: #{turn_level_lstm_forward.1} parent=1 // pred_check_branch
      %66 = sbr.rel (0) target = $region41
    $region40: #{turn_level_lstm_forward.1} parent=1 // pred_region
      %67 = dma.done [#allocation4], 2048
    $region41: #{turn_level_lstm_forward.1} parent=1 // pred_fallthru
      _
    // Predicated region
    $region42: #{turn_level_lstm_forward.1} parent=1 // pred_check
      _
    $region43: #{turn_level_lstm_forward.1} parent=1 // pred_check_branch
      %69 = sbr.rel (0) target = $region45
    $region44: #{turn_level_lstm_forward.1} parent=1 // pred_region
      %70 = dma.done [#allocation7], 2048
    $region45: #{turn_level_lstm_forward.1} parent=1 // pred_fallthru
      _
    // Predicated region
    $region46: #{turn_level_lstm_forward.1} parent=1 // pred_check
      _
    $region47: #{turn_level_lstm_forward.1} parent=1 // pred_check_branch
      %72 = sbr.rel (0) target = $region49
    $region48: #{turn_level_lstm_forward.1} parent=1 // pred_region
      %73 = dma.done [#allocation7], 2048
    $region49: #{turn_level_lstm_forward.1} parent=1 // pred_fallthru
      _
    %v74 = vlaneseq
    %v75 = vand.u32 %v74, 127
    %v76 = vadd.s32 %v75, 128
    %vm77 = vcmp.ge.s32.totalorder %v75, 128
    %vm78 = vcmp.ge.s32.totalorder %v76, 128
    %vm79 = vcmp.lt.s32.totalorder %v75, 192
    %vm80 = vcmp.lt.s32.totalorder %v76, 192
    %vm81 = vmand %vm77, %vm79
    %vm82 = vmand %vm78, %vm80
    %v83 = vsel %vm81, 2.0, 1.0
    %v84 = vsel %vm82, 2.0, 1.0
    %v85 = vsel %vm81, -1.0, 0.0
    %v86 = vsel %vm82, -1.0, 0.0
    %vm87 = vcmp.ge.s32.totalorder %v75, 32
    %vm88 = vcmp.ge.s32.totalorder %v76, 32
    %vm89 = vcmp.lt.s32.totalorder %v75, 64
    %vm90 = vcmp.lt.s32.totalorder %v76, 64
    %vm91 = vmand %vm87, %vm89
    %vm92 = vmand %vm88, %vm90
    %vm93 = vcmp.ge.s32.totalorder %v75, 96
    %vm94 = vcmp.ge.s32.totalorder %v76, 96
    %vm95 = vcmp.lt.s32.totalorder %v75, 128
    %vm96 = vcmp.lt.s32.totalorder %v76, 128
    %vm97 = vmand %vm93, %vm95
    %vm98 = vmand %vm94, %vm96
    %vm99 = vmor %vm91, %vm97
    %vm100 = vmor %vm92, %vm98
    %vm101 = vcmp.ge.s32.totalorder %v75, 160
    %vm102 = vcmp.ge.s32.totalorder %v76, 160
    %vm103 = vmand %vm101, %vm79
    %vm104 = vmand %vm102, %vm80
    %vm105 = vmor %vm99, %vm103
    %vm106 = vmor %vm100, %vm104
    %vm107 = vcmp.ge.s32.totalorder %v75, 224
    %vm108 = vcmp.ge.s32.totalorder %v76, 224
    %vm109 = vcmp.lt.s32.totalorder %v75, 256
    %vm110 = vcmp.lt.s32.totalorder %v76, 256
    %vm111 = vmand %vm107, %vm109
    %vm112 = vmand %vm108, %vm110
    %vm113 = vmor %vm105, %vm111
    %vm114 = vmor %vm106, %vm112
    %v115 = vlaneseq
    %v116 = vshrl.u32 %v115, 7
    %v117 = vadd.s32 %v116, %v75
    %vm118 = vcmp.eq.s32.totalorder %v117, 7
    %v119 = vsel %vm118, 1.0, 0.0
    %v120 = vld [vmem:[%s0] sm:$0xff]
    %v121 = vld [vmem:[%s1] sm:$0xff]
    %v122 = vld [vmem:[%s1 + $0x8] sm:$0xff]
    %v123 = vld [vmem:[%s1 + $0x10] sm:$0xff]
    %v124 = vld [vmem:[%s1 + $0x18] sm:$0xff]
    %v125 = vld [vmem:[%s1 + $0x20] sm:$0xff]
    %v126 = vld [vmem:[%s1 + $0x28] sm:$0xff]
    %v127 = vld [vmem:[%s1 + $0x30] sm:$0xff]
    %v128 = vld [vmem:[%s1 + $0x38] sm:$0xff]
    %v129 = vld [vmem:[%s2] sm:$0x3]
    %v131 = vlaneseq
    %v132 = vshrl.u32 %v131, 7
    %v133 = vsub.s32 0, %v132
    %v134 = vrot.slane %v129, %v133
    %v135 = vlaneseq
    %v136 = vshrl.u32 %v135, 7
    %v137 = vsub.s32 1, %v136
    %v138 = vrot.slane %v129, %v137
    %vm141 = vcmask 261120
    %v143 = vsel %vm141, %v120, 0
    %145 = vmatprep.subr.mxu0 %v122
    %146 = vmatpush1.msra.mxu0 %v121
    %147 = vmatprep.subr.mxu0 %v124
    %148 = vmatpush1.msra.mxu0 %v123
    %149 = vmatprep.subr.mxu0 %v126
    %150 = vmatpush1.msra.mxu0 %v125
    %151 = vmatprep.subr.mxu0 %v128
    %152 = vmatpush1.msra.mxu0 %v127
    %153 = vmatprep.subr.mxu0 0.0
    %154 = vmatpush1.msra.mxu0 0.0
    %155 = vmatprep.subr.mxu0 0.0
    %156 = vmatpush1.msra.mxu0 0.0
    %157 = vmatprep.subr.mxu0 0.0
    %158 = vmatpush1.msra.mxu0 0.0
    %159 = vmatprep.subr.mxu0 0.0
    %160 = vmatpush1.msra.mxu0 0.0
    %161 = vmatprep.subr.mxu0 0.0
    %162 = vmatpush1.msra.mxu0 0.0
    %163 = vmatprep.subr.mxu0 0.0
    %164 = vmatpush1.msra.mxu0 0.0
    %165 = vmatprep.subr.mxu0 0.0
    %166 = vmatpush1.msra.mxu0 0.0
    %167 = vmatprep.subr.mxu0 0.0
    %168 = vmatpush1.msra.mxu0 0.0
    %169 = vmatprep.subr.mxu0 0.0
    %170 = vmatpush1.msra.mxu0 0.0
    %171 = vmatprep.subr.mxu0 0.0
    %172 = vmatpush1.msra.mxu0 0.0
    %173 = vmatprep.subr.mxu0 0.0
    %174 = vmatpush1.msra.mxu0 0.0
    %175 = vmatprep.subr.mxu0 0.0
    %176 = vmatpush1.msra.mxu0 0.0
    %177 = vmatprep.subr.mxu0 0.0
    %178 = vmatpush1.msra.mxu0 0.0
    %179 = vmatprep.subr.mxu0 0.0
    %180 = vmatpush1.msra.mxu0 0.0
    %181 = vmatprep.subr.mxu0 0.0
    %182 = vmatpush1.msra.mxu0 0.0
    %183 = vmatprep.subr.mxu0 0.0
    %184 = vmatpush1.msra.mxu0 0.0
    %185 = vmatprep.subr.mxu0 0.0
    %186 = vmatpush1.msra.mxu0 0.0
    %187 = vmatprep.subr.mxu0 0.0
    %188 = vmatpush1.msra.mxu0 0.0
    %189 = vmatprep.subr.mxu0 0.0
    %190 = vmatpush1.msra.mxu0 0.0
    %191 = vmatprep.subr.mxu0 0.0
    %192 = vmatpush1.msra.mxu0 0.0
    %193 = vmatprep.subr.mxu0 0.0
    %194 = vmatpush1.msra.mxu0 0.0
    %195 = vmatprep.subr.mxu0 0.0
    %196 = vmatpush1.msra.mxu0 0.0
    %197 = vmatprep.subr.mxu0 0.0
    %198 = vmatpush1.msra.mxu0 0.0
    %199 = vmatprep.subr.mxu0 0.0
    %200 = vmatpush1.msra.mxu0 0.0
    %201 = vmatprep.subr.mxu0 0.0
    %202 = vmatpush1.msra.mxu0 0.0
    %203 = vmatprep.subr.mxu0 0.0
    %204 = vmatpush1.msra.mxu0 0.0
    %205 = vmatprep.subr.mxu0 0.0
    %206 = vmatpush1.msra.mxu0 0.0
    %207 = vmatprep.subr.mxu0 0.0
    %208 = vmatpush1.msra.mxu0 0.0
    %209 = vmatprep.mubr.f32.mxu0 0.0
    %210 = vmatmul.mubr.f32.gmra.mrb[0].mxu0 %v143
    %v211 = vpop.f32.mrb[0].mxu0
    %v212 = vadd.f32 %v134, %v211
    %v213 = vpop.f32.mrb[0].mxu0
    %v214 = vadd.f32 %v138, %v213
    %215 = vdwg.mxu0
    %vm216 = vcmask 64512
    %v218 = vsel %vm216, %v119, 0
    %220 = vmatprep.subr.mxu0 %v214
    %221 = vmatpush1.msra.mxu0 %v212
    %222 = vmatprep.subr.mxu0 0.0
    %223 = vmatpush1.msra.mxu0 0.0
    %224 = vmatprep.subr.mxu0 0.0
    %225 = vmatpush1.msra.mxu0 0.0
    %226 = vmatprep.subr.mxu0 0.0
    %227 = vmatpush1.msra.mxu0 0.0
    %228 = vmatprep.subr.mxu0 0.0
    %229 = vmatpush1.msra.mxu0 0.0
    %230 = vmatprep.subr.mxu0 0.0
    %231 = vmatpush1.msra.mxu0 0.0
    %232 = vmatprep.subr.mxu0 0.0
    %233 = vmatpush1.msra.mxu0 0.0
    %234 = vmatprep.subr.mxu0 0.0
    %235 = vmatpush1.msra.mxu0 0.0
    %236 = vmatprep.subr.mxu0 0.0
    %237 = vmatpush1.msra.mxu0 0.0
    %238 = vmatprep.subr.mxu0 0.0
    %239 = vmatpush1.msra.mxu0 0.0
    %240 = vmatprep.subr.mxu0 0.0
    %241 = vmatpush1.msra.mxu0 0.0
    %242 = vmatprep.subr.mxu0 0.0
    %243 = vmatpush1.msra.mxu0 0.0
    %244 = vmatprep.subr.mxu0 0.0
    %245 = vmatpush1.msra.mxu0 0.0
    %246 = vmatprep.subr.mxu0 0.0
    %247 = vmatpush1.msra.mxu0 0.0
    %248 = vmatprep.subr.mxu0 0.0
    %249 = vmatpush1.msra.mxu0 0.0
    %250 = vmatprep.subr.mxu0 0.0
    %251 = vmatpush1.msra.mxu0 0.0
    %252 = vmatprep.subr.mxu0 0.0
    %253 = vmatpush1.msra.mxu0 0.0
    %254 = vmatprep.subr.mxu0 0.0
    %255 = vmatpush1.msra.mxu0 0.0
    %256 = vmatprep.subr.mxu0 0.0
    %257 = vmatpush1.msra.mxu0 0.0
    %258 = vmatprep.subr.mxu0 0.0
    %259 = vmatpush1.msra.mxu0 0.0
    %260 = vmatprep.subr.mxu0 0.0
    %261 = vmatpush1.msra.mxu0 0.0
    %262 = vmatprep.subr.mxu0 0.0
    %263 = vmatpush1.msra.mxu0 0.0
    %264 = vmatprep.subr.mxu0 0.0
    %265 = vmatpush1.msra.mxu0 0.0
    %266 = vmatprep.subr.mxu0 0.0
    %267 = vmatpush1.msra.mxu0 0.0
    %268 = vmatprep.subr.mxu0 0.0
    %269 = vmatpush1.msra.mxu0 0.0
    %270 = vmatprep.subr.mxu0 0.0
    %271 = vmatpush1.msra.mxu0 0.0
    %272 = vmatprep.subr.mxu0 0.0
    %273 = vmatpush1.msra.mxu0 0.0
    %274 = vmatprep.subr.mxu0 0.0
    %275 = vmatpush1.msra.mxu0 0.0
    %276 = vmatprep.subr.mxu0 0.0
    %277 = vmatpush1.msra.mxu0 0.0
    %278 = vmatprep.subr.mxu0 0.0
    %279 = vmatpush1.msra.mxu0 0.0
    %280 = vmatprep.subr.mxu0 0.0
    %281 = vmatpush1.msra.mxu0 0.0
    %282 = vmatprep.subr.mxu0 0.0
    %283 = vmatpush1.msra.mxu0 0.0
    %284 = vmatprep.mubr.f32.mxu0 0.0
    %285 = vmatmul.mubr.f32.gmra.mrb[0].mxu0 %v218
    %v286 = vpop.f32.mrb[0].mxu0
    %v287 = vadd.f32 0.0, %v286
    %v288 = vpop.f32.mrb[0].mxu0
    %v289 = vadd.f32 0.0, %v288
    %290 = vdwg.mxu0
    %v291 = vsel %vm113, %v287, %v212
    %v292 = vsel %vm114, %v289, %v214
    %293 = vst [vmem:[#allocation2] sm:$0xff] %v291
    %294 = vst [vmem:[#allocation2 + $0x8] sm:$0xff] %v292
    %v295 = vld [vmem:[#allocation3] sm:$0xff]
    %v296 = vld [vmem:[#allocation3 + $0x8] sm:$0xff]
    %v297 = vld [vmem:[#allocation3 + $0x10] sm:$0xff]
    %v298 = vld [vmem:[#allocation3 + $0x18] sm:$0xff]
    %v299 = vld [vmem:[#allocation3 + $0x20] sm:$0xff]
    %v300 = vld [vmem:[#allocation3 + $0x28] sm:$0xff]
    %v301 = vld [vmem:[#allocation3 + $0x30] sm:$0xff]
    %v302 = vld [vmem:[#allocation3 + $0x38] sm:$0xff]
    %v303 = vld [vmem:[#allocation3 + $0x40] sm:$0xff]
    %v304 = vld [vmem:[#allocation3 + $0x48] sm:$0xff]
    %v305 = vld [vmem:[#allocation3 + $0x50] sm:$0xff]
    %v306 = vld [vmem:[#allocation3 + $0x58] sm:$0xff]
    %v307 = vld [vmem:[#allocation3 + $0x60] sm:$0xff]
    %v308 = vld [vmem:[#allocation3 + $0x68] sm:$0xff]
    %v309 = vld [vmem:[#allocation3 + $0x70] sm:$0xff]
    %v310 = vld [vmem:[#allocation3 + $0x78] sm:$0xff]
    %v311 = vld [vmem:[#allocation2] ss:$8 sm:$0x3]
    %v313 = vlaneseq
    %v314 = vshrl.u32 %v313, 7
    %v315 = vsub.s32 0, %v314
    %v316 = vrot.slane %v311, %v315
    %v317 = vlaneseq
    %v318 = vshrl.u32 %v317, 7
    %v319 = vsub.s32 1, %v318
    %v320 = vrot.slane %v311, %v319
    %vm323 = vcmask 523264
    %v325 = vsel %vm323, 0.0, 0
    %327 = vmatprep.subr.mxu0 %v296
    %328 = vmatpush1.msra.mxu0 %v295
    %329 = vmatprep.subr.mxu0 %v298
    %330 = vmatpush1.msra.mxu0 %v297
    %331 = vmatprep.subr.mxu0 %v300
    %332 = vmatpush1.msra.mxu0 %v299
    %333 = vmatprep.subr.mxu0 %v302
    %334 = vmatpush1.msra.mxu0 %v301
    %335 = vmatprep.subr.mxu0 %v304
    %336 = vmatpush1.msra.mxu0 %v303
    %337 = vmatprep.subr.mxu0 %v306
    %338 = vmatpush1.msra.mxu0 %v305
    %339 = vmatprep.subr.mxu0 %v308
    %340 = vmatpush1.msra.mxu0 %v307
    %341 = vmatprep.subr.mxu0 %v310
    %342 = vmatpush1.msra.mxu0 %v309
    %343 = vmatprep.subr.mxu0 0.0
    %344 = vmatpush1.msra.mxu0 0.0
    %345 = vmatprep.subr.mxu0 0.0
    %346 = vmatpush1.msra.mxu0 0.0
    %347 = vmatprep.subr.mxu0 0.0
    %348 = vmatpush1.msra.mxu0 0.0
    %349 = vmatprep.subr.mxu0 0.0
    %350 = vmatpush1.msra.mxu0 0.0
    %351 = vmatprep.subr.mxu0 0.0
    %352 = vmatpush1.msra.mxu0 0.0
    %353 = vmatprep.subr.mxu0 0.0
    %354 = vmatpush1.msra.mxu0 0.0
    %355 = vmatprep.subr.mxu0 0.0
    %356 = vmatpush1.msra.mxu0 0.0
    %357 = vmatprep.subr.mxu0 0.0
    %358 = vmatpush1.msra.mxu0 0.0
    %359 = vmatprep.subr.mxu0 0.0
    %360 = vmatpush1.msra.mxu0 0.0
    %361 = vmatprep.subr.mxu0 0.0
    %362 = vmatpush1.msra.mxu0 0.0
    %363 = vmatprep.subr.mxu0 0.0
    %364 = vmatpush1.msra.mxu0 0.0
    %365 = vmatprep.subr.mxu0 0.0
    %366 = vmatpush1.msra.mxu0 0.0
    %367 = vmatprep.subr.mxu0 0.0
    %368 = vmatpush1.msra.mxu0 0.0
    %369 = vmatprep.subr.mxu0 0.0
    %370 = vmatpush1.msra.mxu0 0.0
    %371 = vmatprep.subr.mxu0 0.0
    %372 = vmatpush1.msra.mxu0 0.0
    %373 = vmatprep.subr.mxu0 0.0
    %374 = vmatpush1.msra.mxu0 0.0
    %375 = vmatprep.subr.mxu0 0.0
    %376 = vmatpush1.msra.mxu0 0.0
    %377 = vmatprep.subr.mxu0 0.0
    %378 = vmatpush1.msra.mxu0 0.0
    %379 = vmatprep.subr.mxu0 0.0
    %380 = vmatpush1.msra.mxu0 0.0
    %381 = vmatprep.subr.mxu0 0.0
    %382 = vmatpush1.msra.mxu0 0.0
    %383 = vmatprep.subr.mxu0 0.0
    %384 = vmatpush1.msra.mxu0 0.0
    %385 = vmatprep.subr.mxu0 0.0
    %386 = vmatpush1.msra.mxu0 0.0
    %387 = vmatprep.subr.mxu0 0.0
    %388 = vmatpush1.msra.mxu0 0.0
    %389 = vmatprep.subr.mxu0 0.0
    %390 = vmatpush1.msra.mxu0 0.0
    %391 = vmatprep.mubr.f32.mxu0 0.0
    %392 = vmatmul.mubr.f32.gmra.mrb[0].mxu0 %v325
    %v393 = vpop.f32.mrb[0].mxu0
    %v394 = vadd.f32 %v316, %v393
    %v395 = vpop.f32.mrb[0].mxu0
    %v396 = vadd.f32 %v320, %v395
    %397 = vdwg.mxu0
    %v398 = vmul.f32 %v394, %v83
    %v399 = vmul.f32 %v396, %v84
    %v400 = vxor.u32 %v398, 2147483648
    %v401 = vxor.u32 %v399, 2147483648
    %v402 = vmul.f32 %v400, 1.442695
    %v403 = vpow.pop %v402
    %v404 = vmul.f32 %v401, 1.442695
    %v405 = vpow.pop %v404
    %v406 = vadd.f32 %v403, 1.0
    %v407 = vadd.f32 %v405, 1.0
    %v408 = vrcp.pop %v406
    %v409 = vmul.f32 1.0, %v408
    %v410 = vrcp.pop %v407
    %v411 = vmul.f32 1.0, %v410
    %v412 = vmul.f32 %v409, %v83
    %v413 = vmul.f32 %v411, %v84
    %v414 = vadd.f32 %v412, %v85
    %v415 = vadd.f32 %v413, %v86
    %v416 = vmul.f32 %v414, 0.0
    %v417 = vmul.f32 %v414, %v415
    %419 = vrot.lane.b32.xlu0 %v417, 64
    %v420 = vpop.permute.xlu0 %419
    %v422 = vadd.f32 %v416, %v420
    %v423 = vtanh.pop %v422
    %v424 = vmul.f32 %v415, %v423
    %s425 = scalar_lea.vmem [#allocation2], 1
    %v426 = vld [vmem:[%s425] ss:$8 sm:$0x3]
    %428 = vrot.lane.b32.xlu0 %v424, 64
    %v429 = vpop.permute.xlu0 %428
    %v431 = vlaneseq
    %v432 = vshrl.u32 %v431, 7
    %v433 = vsub.s32 0, %v432
    %v434 = vrot.slane %v426, %v433
    %v435 = vlaneseq
    %v436 = vshrl.u32 %v435, 7
    %v437 = vsub.s32 1, %v436
    %v438 = vrot.slane %v426, %v437
    %v441 = vsel %vm323, %v429, 0
    %443 = vmatprep.subr.mxu0 %v296
    %444 = vmatpush1.msra.mxu0 %v295
    %445 = vmatprep.subr.mxu0 %v298
    %446 = vmatpush1.msra.mxu0 %v297
    %447 = vmatprep.subr.mxu0 %v300
    %448 = vmatpush1.msra.mxu0 %v299
    %449 = vmatprep.subr.mxu0 %v302
    %450 = vmatpush1.msra.mxu0 %v301
    %451 = vmatprep.subr.mxu0 %v304
    %452 = vmatpush1.msra.mxu0 %v303
    %453 = vmatprep.subr.mxu0 %v306
    %454 = vmatpush1.msra.mxu0 %v305
    %455 = vmatprep.subr.mxu0 %v308
    %456 = vmatpush1.msra.mxu0 %v307
    %457 = vmatprep.subr.mxu0 %v310
    %458 = vmatpush1.msra.mxu0 %v309
    %459 = vmatprep.subr.mxu0 0.0
    %460 = vmatpush1.msra.mxu0 0.0
    %461 = vmatprep.subr.mxu0 0.0
    %462 = vmatpush1.msra.mxu0 0.0
    %463 = vmatprep.subr.mxu0 0.0
    %464 = vmatpush1.msra.mxu0 0.0
    %465 = vmatprep.subr.mxu0 0.0
    %466 = vmatpush1.msra.mxu0 0.0
    %467 = vmatprep.subr.mxu0 0.0
    %468 = vmatpush1.msra.mxu0 0.0
    %469 = vmatprep.subr.mxu0 0.0
    %470 = vmatpush1.msra.mxu0 0.0
    %471 = vmatprep.subr.mxu0 0.0
    %472 = vmatpush1.msra.mxu0 0.0
    %473 = vmatprep.subr.mxu0 0.0
    %474 = vmatpush1.msra.mxu0 0.0
    %475 = vmatprep.subr.mxu0 0.0
    %476 = vmatpush1.msra.mxu0 0.0
    %477 = vmatprep.subr.mxu0 0.0
    %478 = vmatpush1.msra.mxu0 0.0
    %479 = vmatprep.subr.mxu0 0.0
    %480 = vmatpush1.msra.mxu0 0.0
    %481 = vmatprep.subr.mxu0 0.0
    %482 = vmatpush1.msra.mxu0 0.0
    %483 = vmatprep.subr.mxu0 0.0
    %484 = vmatpush1.msra.mxu0 0.0
    %485 = vmatprep.subr.mxu0 0.0
    %486 = vmatpush1.msra.mxu0 0.0
    %487 = vmatprep.subr.mxu0 0.0
    %488 = vmatpush1.msra.mxu0 0.0
    %489 = vmatprep.subr.mxu0 0.0
    %490 = vmatpush1.msra.mxu0 0.0
    %491 = vmatprep.subr.mxu0 0.0
    %492 = vmatpush1.msra.mxu0 0.0
    %493 = vmatprep.subr.mxu0 0.0
    %494 = vmatpush1.msra.mxu0 0.0
    %495 = vmatprep.subr.mxu0 0.0
    %496 = vmatpush1.msra.mxu0 0.0
    %497 = vmatprep.subr.mxu0 0.0
    %498 = vmatpush1.msra.mxu0 0.0
    %499 = vmatprep.subr.mxu0 0.0
    %500 = vmatpush1.msra.mxu0 0.0
    %501 = vmatprep.subr.mxu0 0.0
    %502 = vmatpush1.msra.mxu0 0.0
    %503 = vmatprep.subr.mxu0 0.0
    %504 = vmatpush1.msra.mxu0 0.0
    %505 = vmatprep.subr.mxu0 0.0
    %506 = vmatpush1.msra.mxu0 0.0
    %507 = vmatprep.mubr.f32.mxu0 0.0
    %508 = vmatmul.mubr.f32.gmra.mrb[0].mxu0 %v441
    %v509 = vpop.f32.mrb[0].mxu0
    %v510 = vadd.f32 %v434, %v509
    %v511 = vpop.f32.mrb[0].mxu0
    %v512 = vadd.f32 %v438, %v511
    %513 = vdwg.mxu0
    %v514 = vmul.f32 %v510, %v83
    %v515 = vmul.f32 %v512, %v84
    %v516 = vxor.u32 %v514, 2147483648
    %v517 = vxor.u32 %v515, 2147483648
    %v518 = vmul.f32 %v516, 1.442695
    %v519 = vpow.pop %v518
    %v520 = vmul.f32 %v517, 1.442695
    %v521 = vpow.pop %v520
    %v522 = vadd.f32 %v519, 1.0
    %v523 = vadd.f32 %v521, 1.0
    %v524 = vrcp.pop %v522
    %v525 = vmul.f32 1.0, %v524
    %v526 = vrcp.pop %v523
    %v527 = vmul.f32 1.0, %v526
    %v528 = vmul.f32 %v525, %v83
    %v529 = vmul.f32 %v527, %v84
    %v530 = vadd.f32 %v528, %v85
    %v531 = vadd.f32 %v529, %v86
    %v532 = vmul.f32 %v530, %v422
    %v533 = vmul.f32 %v530, %v531
    %535 = vrot.lane.b32.xlu0 %v533, 64
    %v536 = vpop.permute.xlu0 %535
    %v538 = vadd.f32 %v532, %v536
    %v539 = vtanh.pop %v538
    %v540 = vmul.f32 %v531, %v539
    %s541 = scalar_lea.vmem [#allocation2], 2
    %v542 = vld [vmem:[%s541] ss:$8 sm:$0x3]
    %544 = vrot.lane.b32.xlu0 %v540, 64
    %v545 = vpop.permute.xlu0 %544
    %v547 = vlaneseq
    %v548 = vshrl.u32 %v547, 7
    %v549 = vsub.s32 0, %v548
    %v550 = vrot.slane %v542, %v549
    %v551 = vlaneseq
    %v552 = vshrl.u32 %v551, 7
    %v553 = vsub.s32 1, %v552
    %v554 = vrot.slane %v542, %v553
    %v557 = vsel %vm323, %v545, 0
    %559 = vmatprep.subr.mxu0 %v296
    %560 = vmatpush1.msra.mxu0 %v295
    %561 = vmatprep.subr.mxu0 %v298
    %562 = vmatpush1.msra.mxu0 %v297
    %563 = vmatprep.subr.mxu0 %v300
    %564 = vmatpush1.msra.mxu0 %v299
    %565 = vmatprep.subr.mxu0 %v302
    %566 = vmatpush1.msra.mxu0 %v301
    %567 = vmatprep.subr.mxu0 %v304
    %568 = vmatpush1.msra.mxu0 %v303
    %569 = vmatprep.subr.mxu0 %v306
    %570 = vmatpush1.msra.mxu0 %v305
    %571 = vmatprep.subr.mxu0 %v308
    %572 = vmatpush1.msra.mxu0 %v307
    %573 = vmatprep.subr.mxu0 %v310
    %574 = vmatpush1.msra.mxu0 %v309
    %575 = vmatprep.subr.mxu0 0.0
    %576 = vmatpush1.msra.mxu0 0.0
    %577 = vmatprep.subr.mxu0 0.0
    %578 = vmatpush1.msra.mxu0 0.0
    %579 = vmatprep.subr.mxu0 0.0
    %580 = vmatpush1.msra.mxu0 0.0
    %581 = vmatprep.subr.mxu0 0.0
    %582 = vmatpush1.msra.mxu0 0.0
    %583 = vmatprep.subr.mxu0 0.0
    %584 = vmatpush1.msra.mxu0 0.0
    %585 = vmatprep.subr.mxu0 0.0
    %586 = vmatpush1.msra.mxu0 0.0
    %587 = vmatprep.subr.mxu0 0.0
    %588 = vmatpush1.msra.mxu0 0.0
    %589 = vmatprep.subr.mxu0 0.0
    %590 = vmatpush1.msra.mxu0 0.0
    %591 = vmatprep.subr.mxu0 0.0
    %592 = vmatpush1.msra.mxu0 0.0
    %593 = vmatprep.subr.mxu0 0.0
    %594 = vmatpush1.msra.mxu0 0.0
    %595 = vmatprep.subr.mxu0 0.0
    %596 = vmatpush1.msra.mxu0 0.0
    %597 = vmatprep.subr.mxu0 0.0
    %598 = vmatpush1.msra.mxu0 0.0
    %599 = vmatprep.subr.mxu0 0.0
    %600 = vmatpush1.msra.mxu0 0.0
    %601 = vmatprep.subr.mxu0 0.0
    %602 = vmatpush1.msra.mxu0 0.0
    %603 = vmatprep.subr.mxu0 0.0
    %604 = vmatpush1.msra.mxu0 0.0
    %605 = vmatprep.subr.mxu0 0.0
    %606 = vmatpush1.msra.mxu0 0.0
    %607 = vmatprep.subr.mxu0 0.0
    %608 = vmatpush1.msra.mxu0 0.0
    %609 = vmatprep.subr.mxu0 0.0
    %610 = vmatpush1.msra.mxu0 0.0
    %611 = vmatprep.subr.mxu0 0.0
    %612 = vmatpush1.msra.mxu0 0.0
    %613 = vmatprep.subr.mxu0 0.0
    %614 = vmatpush1.msra.mxu0 0.0
    %615 = vmatprep.subr.mxu0 0.0
    %616 = vmatpush1.msra.mxu0 0.0
    %617 = vmatprep.subr.mxu0 0.0
    %618 = vmatpush1.msra.mxu0 0.0
    %619 = vmatprep.subr.mxu0 0.0
    %620 = vmatpush1.msra.mxu0 0.0
    %621 = vmatprep.subr.mxu0 0.0
    %622 = vmatpush1.msra.mxu0 0.0
    %623 = vmatprep.mubr.f32.mxu0 0.0
    %624 = vmatmul.mubr.f32.gmra.mrb[0].mxu0 %v557
    %v625 = vpop.f32.mrb[0].mxu0
    %v626 = vadd.f32 %v550, %v625
    %v627 = vpop.f32.mrb[0].mxu0
    %v628 = vadd.f32 %v554, %v627
    %629 = vdwg.mxu0
    %v630 = vmul.f32 %v626, %v83
    %v631 = vmul.f32 %v628, %v84
    %v632 = vxor.u32 %v630, 2147483648
    %v633 = vxor.u32 %v631, 2147483648
    %v634 = vmul.f32 %v632, 1.442695
    %v635 = vpow.pop %v634
    %v636 = vmul.f32 %v633, 1.442695
    %v637 = vpow.pop %v636
    %v638 = vadd.f32 %v635, 1.0
    %v639 = vadd.f32 %v637, 1.0
    %v640 = vrcp.pop %v638
    %v641 = vmul.f32 1.0, %v640
    %v642 = vrcp.pop %v639
    %v643 = vmul.f32 1.0, %v642
    %v644 = vmul.f32 %v641, %v83
    %v645 = vmul.f32 %v643, %v84
    %v646 = vadd.f32 %v644, %v85
    %v647 = vadd.f32 %v645, %v86
    %v648 = vmul.f32 %v646, %v538
    %v649 = vmul.f32 %v646, %v647
    %651 = vrot.lane.b32.xlu0 %v649, 64
    %v652 = vpop.permute.xlu0 %651
    %v654 = vadd.f32 %v648, %v652
    %v655 = vtanh.pop %v654
    %v656 = vmul.f32 %v647, %v655
    %s657 = scalar_lea.vmem [#allocation2], 3
    %v658 = vld [vmem:[%s657] ss:$8 sm:$0x3]
    %660 = vrot.lane.b32.xlu0 %v656, 64
    %v661 = vpop.permute.xlu0 %660
    %v663 = vlaneseq
    %v664 = vshrl.u32 %v663, 7
    %v665 = vsub.s32 0, %v664
    %v666 = vrot.slane %v658, %v665
    %v667 = vlaneseq
    %v668 = vshrl.u32 %v667, 7
    %v669 = vsub.s32 1, %v668
    %v670 = vrot.slane %v658, %v669
    %v673 = vsel %vm323, %v661, 0
    %675 = vmatprep.subr.mxu0 %v296
    %676 = vmatpush1.msra.mxu0 %v295
    %677 = vmatprep.subr.mxu0 %v298
    %678 = vmatpush1.msra.mxu0 %v297
    %679 = vmatprep.subr.mxu0 %v300
    %680 = vmatpush1.msra.mxu0 %v299
    %681 = vmatprep.subr.mxu0 %v302
    %682 = vmatpush1.msra.mxu0 %v301
    %683 = vmatprep.subr.mxu0 %v304
    %684 = vmatpush1.msra.mxu0 %v303
    %685 = vmatprep.subr.mxu0 %v306
    %686 = vmatpush1.msra.mxu0 %v305
    %687 = vmatprep.subr.mxu0 %v308
    %688 = vmatpush1.msra.mxu0 %v307
    %689 = vmatprep.subr.mxu0 %v310
    %690 = vmatpush1.msra.mxu0 %v309
    %691 = vmatprep.subr.mxu0 0.0
    %692 = vmatpush1.msra.mxu0 0.0
    %693 = vmatprep.subr.mxu0 0.0
    %694 = vmatpush1.msra.mxu0 0.0
    %695 = vmatprep.subr.mxu0 0.0
    %696 = vmatpush1.msra.mxu0 0.0
    %697 = vmatprep.subr.mxu0 0.0
    %698 = vmatpush1.msra.mxu0 0.0
    %699 = vmatprep.subr.mxu0 0.0
    %700 = vmatpush1.msra.mxu0 0.0
    %701 = vmatprep.subr.mxu0 0.0
    %702 = vmatpush1.msra.mxu0 0.0
    %703 = vmatprep.subr.mxu0 0.0
    %704 = vmatpush1.msra.mxu0 0.0
    %705 = vmatprep.subr.mxu0 0.0
    %706 = vmatpush1.msra.mxu0 0.0
    %707 = vmatprep.subr.mxu0 0.0
    %708 = vmatpush1.msra.mxu0 0.0
    %709 = vmatprep.subr.mxu0 0.0
    %710 = vmatpush1.msra.mxu0 0.0
    %711 = vmatprep.subr.mxu0 0.0
    %712 = vmatpush1.msra.mxu0 0.0
    %713 = vmatprep.subr.mxu0 0.0
    %714 = vmatpush1.msra.mxu0 0.0
    %715 = vmatprep.subr.mxu0 0.0
    %716 = vmatpush1.msra.mxu0 0.0
    %717 = vmatprep.subr.mxu0 0.0
    %718 = vmatpush1.msra.mxu0 0.0
    %719 = vmatprep.subr.mxu0 0.0
    %720 = vmatpush1.msra.mxu0 0.0
    %721 = vmatprep.subr.mxu0 0.0
    %722 = vmatpush1.msra.mxu0 0.0
    %723 = vmatprep.subr.mxu0 0.0
    %724 = vmatpush1.msra.mxu0 0.0
    %725 = vmatprep.subr.mxu0 0.0
    %726 = vmatpush1.msra.mxu0 0.0
    %727 = vmatprep.subr.mxu0 0.0
    %728 = vmatpush1.msra.mxu0 0.0
    %729 = vmatprep.subr.mxu0 0.0
    %730 = vmatpush1.msra.mxu0 0.0
    %731 = vmatprep.subr.mxu0 0.0
    %732 = vmatpush1.msra.mxu0 0.0
    %733 = vmatprep.subr.mxu0 0.0
    %734 = vmatpush1.msra.mxu0 0.0
    %735 = vmatprep.subr.mxu0 0.0
    %736 = vmatpush1.msra.mxu0 0.0
    %737 = vmatprep.subr.mxu0 0.0
    %738 = vmatpush1.msra.mxu0 0.0
    %739 = vmatprep.mubr.f32.mxu0 0.0
    %740 = vmatmul.mubr.f32.gmra.mrb[0].mxu0 %v673
    %v741 = vpop.f32.mrb[0].mxu0
    %v742 = vadd.f32 %v666, %v741
    %v743 = vpop.f32.mrb[0].mxu0
    %v744 = vadd.f32 %v670, %v743
    %745 = vdwg.mxu0
    %v746 = vmul.f32 %v742, %v83
    %v747 = vmul.f32 %v744, %v84
    %v748 = vxor.u32 %v746, 2147483648
    %v749 = vxor.u32 %v747, 2147483648
    %v750 = vmul.f32 %v748, 1.442695
    %v751 = vpow.pop %v750
    %v752 = vmul.f32 %v749, 1.442695
    %v753 = vpow.pop %v752
    %v754 = vadd.f32 %v751, 1.0
    %v755 = vadd.f32 %v753, 1.0
    %v756 = vrcp.pop %v754
    %v757 = vmul.f32 1.0, %v756
    %v758 = vrcp.pop %v755
    %v759 = vmul.f32 1.0, %v758
    %v760 = vmul.f32 %v757, %v83
    %v761 = vmul.f32 %v759, %v84
    %v762 = vadd.f32 %v760, %v85
    %v763 = vadd.f32 %v761, %v86
    %v764 = vmul.f32 %v762, %v654
    %v765 = vmul.f32 %v762, %v763
    %767 = vrot.lane.b32.xlu0 %v765, 64
    %v768 = vpop.permute.xlu0 %767
    %v770 = vadd.f32 %v764, %v768
    %v771 = vtanh.pop %v770
    %v772 = vmul.f32 %v763, %v771
    %s773 = scalar_lea.vmem [#allocation2], 4
    %v774 = vld [vmem:[%s773] ss:$8 sm:$0x3]
    %776 = vrot.lane.b32.xlu0 %v772, 64
    %v777 = vpop.permute.xlu0 %776
    %v779 = vlaneseq
    %v780 = vshrl.u32 %v779, 7
    %v781 = vsub.s32 0, %v780
    %v782 = vrot.slane %v774, %v781
    %v783 = vlaneseq
    %v784 = vshrl.u32 %v783, 7
    %v785 = vsub.s32 1, %v784
    %v786 = vrot.slane %v774, %v785
    %v789 = vsel %vm323, %v777, 0
    %791 = vmatprep.subr.mxu0 %v296
    %792 = vmatpush1.msra.mxu0 %v295
    %793 = vmatprep.subr.mxu0 %v298
    %794 = vmatpush1.msra.mxu0 %v297
    %795 = vmatprep.subr.mxu0 %v300
    %796 = vmatpush1.msra.mxu0 %v299
    %797 = vmatprep.subr.mxu0 %v302
    %798 = vmatpush1.msra.mxu0 %v301
    %799 = vmatprep.subr.mxu0 %v304
    %800 = vmatpush1.msra.mxu0 %v303
    %801 = vmatprep.subr.mxu0 %v306
    %802 = vmatpush1.msra.mxu0 %v305
    %803 = vmatprep.subr.mxu0 %v308
    %804 = vmatpush1.msra.mxu0 %v307
    %805 = vmatprep.subr.mxu0 %v310
    %806 = vmatpush1.msra.mxu0 %v309
    %807 = vmatprep.subr.mxu0 0.0
    %808 = vmatpush1.msra.mxu0 0.0
    %809 = vmatprep.subr.mxu0 0.0
    %810 = vmatpush1.msra.mxu0 0.0
    %811 = vmatprep.subr.mxu0 0.0
    %812 = vmatpush1.msra.mxu0 0.0
    %813 = vmatprep.subr.mxu0 0.0
    %814 = vmatpush1.msra.mxu0 0.0
    %815 = vmatprep.subr.mxu0 0.0
    %816 = vmatpush1.msra.mxu0 0.0
    %817 = vmatprep.subr.mxu0 0.0
    %818 = vmatpush1.msra.mxu0 0.0
    %819 = vmatprep.subr.mxu0 0.0
    %820 = vmatpush1.msra.mxu0 0.0
    %821 = vmatprep.subr.mxu0 0.0
    %822 = vmatpush1.msra.mxu0 0.0
    %823 = vmatprep.subr.mxu0 0.0
    %824 = vmatpush1.msra.mxu0 0.0
    %825 = vmatprep.subr.mxu0 0.0
    %826 = vmatpush1.msra.mxu0 0.0
    %827 = vmatprep.subr.mxu0 0.0
    %828 = vmatpush1.msra.mxu0 0.0
    %829 = vmatprep.subr.mxu0 0.0
    %830 = vmatpush1.msra.mxu0 0.0
    %831 = vmatprep.subr.mxu0 0.0
    %832 = vmatpush1.msra.mxu0 0.0
    %833 = vmatprep.subr.mxu0 0.0
    %834 = vmatpush1.msra.mxu0 0.0
    %835 = vmatprep.subr.mxu0 0.0
    %836 = vmatpush1.msra.mxu0 0.0
    %837 = vmatprep.subr.mxu0 0.0
    %838 = vmatpush1.msra.mxu0 0.0
    %839 = vmatprep.subr.mxu0 0.0
    %840 = vmatpush1.msra.mxu0 0.0
    %841 = vmatprep.subr.mxu0 0.0
    %842 = vmatpush1.msra.mxu0 0.0
    %843 = vmatprep.subr.mxu0 0.0
    %844 = vmatpush1.msra.mxu0 0.0
    %845 = vmatprep.subr.mxu0 0.0
    %846 = vmatpush1.msra.mxu0 0.0
    %847 = vmatprep.subr.mxu0 0.0
    %848 = vmatpush1.msra.mxu0 0.0
    %849 = vmatprep.subr.mxu0 0.0
    %850 = vmatpush1.msra.mxu0 0.0
    %851 = vmatprep.subr.mxu0 0.0
    %852 = vmatpush1.msra.mxu0 0.0
    %853 = vmatprep.subr.mxu0 0.0
    %854 = vmatpush1.msra.mxu0 0.0
    %855 = vmatprep.mubr.f32.mxu0 0.0
    %856 = vmatmul.mubr.f32.gmra.mrb[0].mxu0 %v789
    %v857 = vpop.f32.mrb[0].mxu0
    %v858 = vadd.f32 %v782, %v857
    %v859 = vpop.f32.mrb[0].mxu0
    %v860 = vadd.f32 %v786, %v859
    %861 = vdwg.mxu0
    %v862 = vmul.f32 %v858, %v83
    %v863 = vmul.f32 %v860, %v84
    %v864 = vxor.u32 %v862, 2147483648
    %v865 = vxor.u32 %v863, 2147483648
    %v866 = vmul.f32 %v864, 1.442695
    %v867 = vpow.pop %v866
    %v868 = vmul.f32 %v865, 1.442695
    %v869 = vpow.pop %v868
    %v870 = vadd.f32 %v867, 1.0
    %v871 = vadd.f32 %v869, 1.0
    %v872 = vrcp.pop %v870
    %v873 = vmul.f32 1.0, %v872
    %v874 = vrcp.pop %v871
    %v875 = vmul.f32 1.0, %v874
    %v876 = vmul.f32 %v873, %v83
    %v877 = vmul.f32 %v875, %v84
    %v878 = vadd.f32 %v876, %v85
    %v879 = vadd.f32 %v877, %v86
    %v880 = vmul.f32 %v878, %v770
    %v881 = vmul.f32 %v878, %v879
    %883 = vrot.lane.b32.xlu0 %v881, 64
    %v884 = vpop.permute.xlu0 %883
    %v886 = vadd.f32 %v880, %v884
    %v887 = vtanh.pop %v886
    %v888 = vmul.f32 %v879, %v887
    %s889 = scalar_lea.vmem [#allocation2], 5
    %v890 = vld [vmem:[%s889] ss:$8 sm:$0x3]
    %892 = vrot.lane.b32.xlu0 %v888, 64
    %v893 = vpop.permute.xlu0 %892
    %v895 = vlaneseq
    %v896 = vshrl.u32 %v895, 7
    %v897 = vsub.s32 0, %v896
    %v898 = vrot.slane %v890, %v897
    %v899 = vlaneseq
    %v900 = vshrl.u32 %v899, 7
    %v901 = vsub.s32 1, %v900
    %v902 = vrot.slane %v890, %v901
    %v905 = vsel %vm323, %v893, 0
    %907 = vmatprep.subr.mxu0 %v296
    %908 = vmatpush1.msra.mxu0 %v295
    %909 = vmatprep.subr.mxu0 %v298
    %910 = vmatpush1.msra.mxu0 %v297
    %911 = vmatprep.subr.mxu0 %v300
    %912 = vmatpush1.msra.mxu0 %v299
    %913 = vmatprep.subr.mxu0 %v302
    %914 = vmatpush1.msra.mxu0 %v301
    %915 = vmatprep.subr.mxu0 %v304
    %916 = vmatpush1.msra.mxu0 %v303
    %917 = vmatprep.subr.mxu0 %v306
    %918 = vmatpush1.msra.mxu0 %v305
    %919 = vmatprep.subr.mxu0 %v308
    %920 = vmatpush1.msra.mxu0 %v307
    %921 = vmatprep.subr.mxu0 %v310
    %922 = vmatpush1.msra.mxu0 %v309
    %923 = vmatprep.subr.mxu0 0.0
    %924 = vmatpush1.msra.mxu0 0.0
    %925 = vmatprep.subr.mxu0 0.0
    %926 = vmatpush1.msra.mxu0 0.0
    %927 = vmatprep.subr.mxu0 0.0
    %928 = vmatpush1.msra.mxu0 0.0
    %929 = vmatprep.subr.mxu0 0.0
    %930 = vmatpush1.msra.mxu0 0.0
    %931 = vmatprep.subr.mxu0 0.0
    %932 = vmatpush1.msra.mxu0 0.0
    %933 = vmatprep.subr.mxu0 0.0
    %934 = vmatpush1.msra.mxu0 0.0
    %935 = vmatprep.subr.mxu0 0.0
    %936 = vmatpush1.msra.mxu0 0.0
    %937 = vmatprep.subr.mxu0 0.0
    %938 = vmatpush1.msra.mxu0 0.0
    %939 = vmatprep.subr.mxu0 0.0
    %940 = vmatpush1.msra.mxu0 0.0
    %941 = vmatprep.subr.mxu0 0.0
    %942 = vmatpush1.msra.mxu0 0.0
    %943 = vmatprep.subr.mxu0 0.0
    %944 = vmatpush1.msra.mxu0 0.0
    %945 = vmatprep.subr.mxu0 0.0
    %946 = vmatpush1.msra.mxu0 0.0
    %947 = vmatprep.subr.mxu0 0.0
    %948 = vmatpush1.msra.mxu0 0.0
    %949 = vmatprep.subr.mxu0 0.0
    %950 = vmatpush1.msra.mxu0 0.0
    %951 = vmatprep.subr.mxu0 0.0
    %952 = vmatpush1.msra.mxu0 0.0
    %953 = vmatprep.subr.mxu0 0.0
    %954 = vmatpush1.msra.mxu0 0.0
    %955 = vmatprep.subr.mxu0 0.0
    %956 = vmatpush1.msra.mxu0 0.0
    %957 = vmatprep.subr.mxu0 0.0
    %958 = vmatpush1.msra.mxu0 0.0
    %959 = vmatprep.subr.mxu0 0.0
    %960 = vmatpush1.msra.mxu0 0.0
    %961 = vmatprep.subr.mxu0 0.0
    %962 = vmatpush1.msra.mxu0 0.0
    %963 = vmatprep.subr.mxu0 0.0
    %964 = vmatpush1.msra.mxu0 0.0
    %965 = vmatprep.subr.mxu0 0.0
    %966 = vmatpush1.msra.mxu0 0.0
    %967 = vmatprep.subr.mxu0 0.0
    %968 = vmatpush1.msra.mxu0 0.0
    %969 = vmatprep.subr.mxu0 0.0
    %970 = vmatpush1.msra.mxu0 0.0
    %971 = vmatprep.mubr.f32.mxu0 0.0
    %972 = vmatmul.mubr.f32.gmra.mrb[0].mxu0 %v905
    %v973 = vpop.f32.mrb[0].mxu0
    %v974 = vadd.f32 %v898, %v973
    %v975 = vpop.f32.mrb[0].mxu0
    %v976 = vadd.f32 %v902, %v975
    %977 = vdwg.mxu0
    %v978 = vmul.f32 %v974, %v83
    %v979 = vmul.f32 %v976, %v84
    %v980 = vxor.u32 %v978, 2147483648
    %v981 = vxor.u32 %v979, 2147483648
    %v982 = vmul.f32 %v980, 1.442695
    %v983 = vpow.pop %v982
    %v984 = vmul.f32 %v981, 1.442695
    %v985 = vpow.pop %v984
    %v986 = vadd.f32 %v983, 1.0
    %v987 = vadd.f32 %v985, 1.0
    %v988 = vrcp.pop %v986
    %v989 = vmul.f32 1.0, %v988
    %v990 = vrcp.pop %v987
    %v991 = vmul.f32 1.0, %v990
    %v992 = vmul.f32 %v989, %v83
    %v993 = vmul.f32 %v991, %v84
    %v994 = vadd.f32 %v992, %v85
    %v995 = vadd.f32 %v993, %v86
    %v996 = vmul.f32 %v994, %v886
    %v997 = vmul.f32 %v994, %v995
    %999 = vrot.lane.b32.xlu0 %v997, 64
    %v1000 = vpop.permute.xlu0 %999
    %v1002 = vadd.f32 %v996, %v1000
    %v1003 = vtanh.pop %v1002
    %v1004 = vmul.f32 %v995, %v1003
    %s1005 = scalar_lea.vmem [#allocation2], 6
    %v1006 = vld [vmem:[%s1005] ss:$8 sm:$0x3]
    %1008 = vrot.lane.b32.xlu0 %v1004, 64
    %v1009 = vpop.permute.xlu0 %1008
    %v1011 = vlaneseq
    %v1012 = vshrl.u32 %v1011, 7
    %v1013 = vsub.s32 0, %v1012
    %v1014 = vrot.slane %v1006, %v1013
    %v1015 = vlaneseq
    %v1016 = vshrl.u32 %v1015, 7
    %v1017 = vsub.s32 1, %v1016
    %v1018 = vrot.slane %v1006, %v1017
    %v1021 = vsel %vm323, %v1009, 0
    %1023 = vmatprep.subr.mxu0 %v296
    %1024 = vmatpush1.msra.mxu0 %v295
    %1025 = vmatprep.subr.mxu0 %v298
    %1026 = vmatpush1.msra.mxu0 %v297
    %1027 = vmatprep.subr.mxu0 %v300
    %1028 = vmatpush1.msra.mxu0 %v299
    %1029 = vmatprep.subr.mxu0 %v302
    %1030 = vmatpush1.msra.mxu0 %v301
    %1031 = vmatprep.subr.mxu0 %v304
    %1032 = vmatpush1.msra.mxu0 %v303
    %1033 = vmatprep.subr.mxu0 %v306
    %1034 = vmatpush1.msra.mxu0 %v305
    %1035 = vmatprep.subr.mxu0 %v308
    %1036 = vmatpush1.msra.mxu0 %v307
    %1037 = vmatprep.subr.mxu0 %v310
    %1038 = vmatpush1.msra.mxu0 %v309
    %1039 = vmatprep.subr.mxu0 0.0
    %1040 = vmatpush1.msra.mxu0 0.0
    %1041 = vmatprep.subr.mxu0 0.0
    %1042 = vmatpush1.msra.mxu0 0.0
    %1043 = vmatprep.subr.mxu0 0.0
    %1044 = vmatpush1.msra.mxu0 0.0
    %1045 = vmatprep.subr.mxu0 0.0
    %1046 = vmatpush1.msra.mxu0 0.0
    %1047 = vmatprep.subr.mxu0 0.0
    %1048 = vmatpush1.msra.mxu0 0.0
    %1049 = vmatprep.subr.mxu0 0.0
    %1050 = vmatpush1.msra.mxu0 0.0
    %1051 = vmatprep.subr.mxu0 0.0
    %1052 = vmatpush1.msra.mxu0 0.0
    %1053 = vmatprep.subr.mxu0 0.0
    %1054 = vmatpush1.msra.mxu0 0.0
    %1055 = vmatprep.subr.mxu0 0.0
    %1056 = vmatpush1.msra.mxu0 0.0
    %1057 = vmatprep.subr.mxu0 0.0
    %1058 = vmatpush1.msra.mxu0 0.0
    %1059 = vmatprep.subr.mxu0 0.0
    %1060 = vmatpush1.msra.mxu0 0.0
    %1061 = vmatprep.subr.mxu0 0.0
    %1062 = vmatpush1.msra.mxu0 0.0
    %1063 = vmatprep.subr.mxu0 0.0
    %1064 = vmatpush1.msra.mxu0 0.0
    %1065 = vmatprep.subr.mxu0 0.0
    %1066 = vmatpush1.msra.mxu0 0.0
    %1067 = vmatprep.subr.mxu0 0.0
    %1068 = vmatpush1.msra.mxu0 0.0
    %1069 = vmatprep.subr.mxu0 0.0
    %1070 = vmatpush1.msra.mxu0 0.0
    %1071 = vmatprep.subr.mxu0 0.0
    %1072 = vmatpush1.msra.mxu0 0.0
    %1073 = vmatprep.subr.mxu0 0.0
    %1074 = vmatpush1.msra.mxu0 0.0
    %1075 = vmatprep.subr.mxu0 0.0
    %1076 = vmatpush1.msra.mxu0 0.0
    %1077 = vmatprep.subr.mxu0 0.0
    %1078 = vmatpush1.msra.mxu0 0.0
    %1079 = vmatprep.subr.mxu0 0.0
    %1080 = vmatpush1.msra.mxu0 0.0
    %1081 = vmatprep.subr.mxu0 0.0
    %1082 = vmatpush1.msra.mxu0 0.0
    %1083 = vmatprep.subr.mxu0 0.0
    %1084 = vmatpush1.msra.mxu0 0.0
    %1085 = vmatprep.subr.mxu0 0.0
    %1086 = vmatpush1.msra.mxu0 0.0
    %1087 = vmatprep.mubr.f32.mxu0 0.0
    %1088 = vmatmul.mubr.f32.gmra.mrb[0].mxu0 %v1021
    %v1089 = vpop.f32.mrb[0].mxu0
    %v1090 = vadd.f32 %v1014, %v1089
    %v1091 = vpop.f32.mrb[0].mxu0
    %v1092 = vadd.f32 %v1018, %v1091
    %1093 = vdwg.mxu0
    %v1094 = vmul.f32 %v1090, %v83
    %v1095 = vmul.f32 %v1092, %v84
    %v1096 = vxor.u32 %v1094, 2147483648
    %v1097 = vxor.u32 %v1095, 2147483648
    %v1098 = vmul.f32 %v1096, 1.442695
    %v1099 = vpow.pop %v1098
    %v1100 = vmul.f32 %v1097, 1.442695
    %v1101 = vpow.pop %v1100
    %v1102 = vadd.f32 %v1099, 1.0
    %v1103 = vadd.f32 %v1101, 1.0
    %v1104 = vrcp.pop %v1102
    %v1105 = vmul.f32 1.0, %v1104
    %v1106 = vrcp.pop %v1103
    %v1107 = vmul.f32 1.0, %v1106
    %v1108 = vmul.f32 %v1105, %v83
    %v1109 = vmul.f32 %v1107, %v84
    %v1110 = vadd.f32 %v1108, %v85
    %v1111 = vadd.f32 %v1109, %v86
    %v1112 = vmul.f32 %v1110, %v1002
    %v1113 = vmul.f32 %v1110, %v1111
    %1115 = vrot.lane.b32.xlu0 %v1113, 64
    %v1116 = vpop.permute.xlu0 %1115
    %v1118 = vadd.f32 %v1112, %v1116
    %v1119 = vtanh.pop %v1118
    %v1120 = vmul.f32 %v1111, %v1119
    %s1121 = scalar_lea.vmem [#allocation2], 7
    %v1122 = vld [vmem:[%s1121] ss:$8 sm:$0x3]
    %1124 = vrot.lane.b32.xlu0 %v1120, 64
    %v1125 = vpop.permute.xlu0 %1124
    %v1127 = vlaneseq
    %v1128 = vshrl.u32 %v1127, 7
    %v1129 = vsub.s32 0, %v1128
    %v1130 = vrot.slane %v1122, %v1129
    %v1131 = vlaneseq
    %v1132 = vshrl.u32 %v1131, 7
    %v1133 = vsub.s32 1, %v1132
    %v1134 = vrot.slane %v1122, %v1133
    %v1137 = vsel %vm323, %v1125, 0
    %1139 = vmatprep.subr.mxu0 %v296
    %1140 = vmatpush1.msra.mxu0 %v295
    %1141 = vmatprep.subr.mxu0 %v298
    %1142 = vmatpush1.msra.mxu0 %v297
    %1143 = vmatprep.subr.mxu0 %v300
    %1144 = vmatpush1.msra.mxu0 %v299
    %1145 = vmatprep.subr.mxu0 %v302
    %1146 = vmatpush1.msra.mxu0 %v301
    %1147 = vmatprep.subr.mxu0 %v304
    %1148 = vmatpush1.msra.mxu0 %v303
    %1149 = vmatprep.subr.mxu0 %v306
    %1150 = vmatpush1.msra.mxu0 %v305
    %1151 = vmatprep.subr.mxu0 %v308
    %1152 = vmatpush1.msra.mxu0 %v307
    %1153 = vmatprep.subr.mxu0 %v310
    %1154 = vmatpush1.msra.mxu0 %v309
    %1155 = vmatprep.subr.mxu0 0.0
    %1156 = vmatpush1.msra.mxu0 0.0
    %1157 = vmatprep.subr.mxu0 0.0
    %1158 = vmatpush1.msra.mxu0 0.0
    %1159 = vmatprep.subr.mxu0 0.0
    %1160 = vmatpush1.msra.mxu0 0.0
    %1161 = vmatprep.subr.mxu0 0.0
    %1162 = vmatpush1.msra.mxu0 0.0
    %1163 = vmatprep.subr.mxu0 0.0
    %1164 = vmatpush1.msra.mxu0 0.0
    %1165 = vmatprep.subr.mxu0 0.0
    %1166 = vmatpush1.msra.mxu0 0.0
    %1167 = vmatprep.subr.mxu0 0.0
    %1168 = vmatpush1.msra.mxu0 0.0
    %1169 = vmatprep.subr.mxu0 0.0
    %1170 = vmatpush1.msra.mxu0 0.0
    %1171 = vmatprep.subr.mxu0 0.0
    %1172 = vmatpush1.msra.mxu0 0.0
    %1173 = vmatprep.subr.mxu0 0.0
    %1174 = vmatpush1.msra.mxu0 0.0
    %1175 = vmatprep.subr.mxu0 0.0
    %1176 = vmatpush1.msra.mxu0 0.0
    %1177 = vmatprep.subr.mxu0 0.0
    %1178 = vmatpush1.msra.mxu0 0.0
    %1179 = vmatprep.subr.mxu0 0.0
    %1180 = vmatpush1.msra.mxu0 0.0
    %1181 = vmatprep.subr.mxu0 0.0
    %1182 = vmatpush1.msra.mxu0 0.0
    %1183 = vmatprep.subr.mxu0 0.0
    %1184 = vmatpush1.msra.mxu0 0.0
    %1185 = vmatprep.subr.mxu0 0.0
    %1186 = vmatpush1.msra.mxu0 0.0
    %1187 = vmatprep.subr.mxu0 0.0
    %1188 = vmatpush1.msra.mxu0 0.0
    %1189 = vmatprep.subr.mxu0 0.0
    %1190 = vmatpush1.msra.mxu0 0.0
    %1191 = vmatprep.subr.mxu0 0.0
    %1192 = vmatpush1.msra.mxu0 0.0
    %1193 = vmatprep.subr.mxu0 0.0
    %1194 = vmatpush1.msra.mxu0 0.0
    %1195 = vmatprep.subr.mxu0 0.0
    %1196 = vmatpush1.msra.mxu0 0.0
    %1197 = vmatprep.subr.mxu0 0.0
    %1198 = vmatpush1.msra.mxu0 0.0
    %1199 = vmatprep.subr.mxu0 0.0
    %1200 = vmatpush1.msra.mxu0 0.0
    %1201 = vmatprep.subr.mxu0 0.0
    %1202 = vmatpush1.msra.mxu0 0.0
    %1203 = vmatprep.mubr.f32.mxu0 0.0
    %1204 = vmatmul.mubr.f32.gmra.mrb[0].mxu0 %v1137
    %v1205 = vpop.f32.mrb[0].mxu0
    %v1206 = vadd.f32 %v1130, %v1205
    %v1207 = vpop.f32.mrb[0].mxu0
    %v1208 = vadd.f32 %v1134, %v1207
    %1209 = vdwg.mxu0
    %v1210 = vmul.f32 %v1206, %v83
    %v1211 = vmul.f32 %v1208, %v84
    %v1212 = vxor.u32 %v1210, 2147483648
    %v1213 = vxor.u32 %v1211, 2147483648
    %v1214 = vmul.f32 %v1212, 1.442695
    %v1215 = vpow.pop %v1214
    %v1216 = vmul.f32 %v1213, 1.442695
    %v1217 = vpow.pop %v1216
    %v1218 = vadd.f32 %v1215, 1.0
    %v1219 = vadd.f32 %v1217, 1.0
    %v1220 = vrcp.pop %v1218
    %v1221 = vmul.f32 1.0, %v1220
    %v1222 = vrcp.pop %v1219
    %v1223 = vmul.f32 1.0, %v1222
    %v1224 = vmul.f32 %v1221, %v83
    %v1225 = vmul.f32 %v1223, %v84
    %v1226 = vadd.f32 %v1224, %v85
    %v1227 = vadd.f32 %v1225, %v86
    %v1228 = vmul.f32 %v1226, %v1118
    %v1229 = vmul.f32 %v1226, %v1227
    %1231 = vrot.lane.b32.xlu0 %v1229, 64
    %v1232 = vpop.permute.xlu0 %1231
    %v1234 = vadd.f32 %v1228, %v1232
    %v1235 = vtanh.pop %v1234
    %v1236 = vmul.f32 %v1227, %v1235
    %v1237 = vrot.slane %v540, 7
    %v1239 = vrot.slane %v656, 6
    %v1241 = vrot.slane %v772, 5
    %v1243 = vrot.slane %v888, 4
    %v1245 = vrot.slane %v1004, 3
    %v1247 = vrot.slane %v1120, 2
    %v1250 = vrot.slane %v1236, 1
    %vm1252 = vcmask 1040384
    %v1253 = vsel %vm1252, %v424, %v1237
    %vm1254 = vcmask 1041408
    %v1255 = vsel %vm1254, %v1253, %v1239
    %vm1256 = vcmask 1042432
    %v1257 = vsel %vm1256, %v1255, %v1241
    %vm1258 = vcmask 1043456
    %v1259 = vsel %vm1258, %v1257, %v1243
    %vm1260 = vcmask 1044480
    %v1261 = vsel %vm1260, %v1259, %v1245
    %vm1262 = vcmask 1045504
    %v1263 = vsel %vm1262, %v1261, %v1247
    %vm1264 = vcmask 1046528
    %v1265 = vsel %vm1264, %v1263, %v1250
    %1267 = vrot.lane.b32.xlu0 %v1265, 32
    %v1268 = vpop.permute.xlu0 %1267
    %1270 = vmatprep.subr.mxu0 0.0
    %1271 = vmatpush1.msra.mxu0 %v1268
    %1272 = vmatprep.subr.mxu0 0.0
    %1273 = vmatpush1.msra.mxu0 0.0
    %1274 = vmatprep.subr.mxu0 0.0
    %1275 = vmatpush1.msra.mxu0 0.0
    %1276 = vmatprep.subr.mxu0 0.0
    %1277 = vmatpush1.msra.mxu0 0.0
    %1278 = vmatprep.subr.mxu0 0.0
    %1279 = vmatpush1.msra.mxu0 0.0
    %1280 = vmatprep.subr.mxu0 0.0
    %1281 = vmatpush1.msra.mxu0 0.0
    %1282 = vmatprep.subr.mxu0 0.0
    %1283 = vmatpush1.msra.mxu0 0.0
    %1284 = vmatprep.subr.mxu0 0.0
    %1285 = vmatpush1.msra.mxu0 0.0
    %1286 = vmatprep.subr.mxu0 0.0
    %1287 = vmatpush1.msra.mxu0 0.0
    %1288 = vmatprep.subr.mxu0 0.0
    %1289 = vmatpush1.msra.mxu0 0.0
    %1290 = vmatprep.subr.mxu0 0.0
    %1291 = vmatpush1.msra.mxu0 0.0
    %1292 = vmatprep.subr.mxu0 0.0
    %1293 = vmatpush1.msra.mxu0 0.0
    %1294 = vmatprep.subr.mxu0 0.0
    %1295 = vmatpush1.msra.mxu0 0.0
    %1296 = vmatprep.subr.mxu0 0.0
    %1297 = vmatpush1.msra.mxu0 0.0
    %1298 = vmatprep.subr.mxu0 0.0
    %1299 = vmatpush1.msra.mxu0 0.0
    %1300 = vmatprep.subr.mxu0 0.0
    %1301 = vmatpush1.msra.mxu0 0.0
    %1302 = vmatprep.subr.mxu0 0.0
    %1303 = vmatpush1.msra.mxu0 0.0
    %1304 = vmatprep.subr.mxu0 0.0
    %1305 = vmatpush1.msra.mxu0 0.0
    %1306 = vmatprep.subr.mxu0 0.0
    %1307 = vmatpush1.msra.mxu0 0.0
    %1308 = vmatprep.subr.mxu0 0.0
    %1309 = vmatpush1.msra.mxu0 0.0
    %1310 = vmatprep.subr.mxu0 0.0
    %1311 = vmatpush1.msra.mxu0 0.0
    %1312 = vmatprep.subr.mxu0 0.0
    %1313 = vmatpush1.msra.mxu0 0.0
    %1314 = vmatprep.subr.mxu0 0.0
    %1315 = vmatpush1.msra.mxu0 0.0
    %1316 = vmatprep.subr.mxu0 0.0
    %1317 = vmatpush1.msra.mxu0 0.0
    %1318 = vmatprep.subr.mxu0 0.0
    %1319 = vmatpush1.msra.mxu0 0.0
    %1320 = vmatprep.subr.mxu0 0.0
    %1321 = vmatpush1.msra.mxu0 0.0
    %1322 = vmatprep.subr.mxu0 0.0
    %1323 = vmatpush1.msra.mxu0 0.0
    %1324 = vmatprep.subr.mxu0 0.0
    %1325 = vmatpush1.msra.mxu0 0.0
    %1326 = vmatprep.subr.mxu0 0.0
    %1327 = vmatpush1.msra.mxu0 0.0
    %1328 = vmatprep.subr.mxu0 0.0
    %1329 = vmatpush1.msra.mxu0 0.0
    %1330 = vmatprep.subr.mxu0 0.0
    %1331 = vmatpush1.msra.mxu0 0.0
    %1332 = vmatprep.subr.mxu0 0.0
    %1333 = vmatpush1.msra.mxu0 0.0
    %1334 = vmatprep.mubr.f32.mxu0 0.0
    %1335 = vmatmul.mubr.f32.gmra.mrb[0].mxu0 %v218
    %v1336 = vpop.f32.mrb[0].mxu0
    %v1337 = vadd.f32 0.0, %v1336
    %v1338 = vpop.f32.mrb[0].mxu0
    %1339 = vdwg.mxu0
    %1340 = vrot.lane.b32.xlu0 %v1265, 64
    %v1341 = vpop.permute.xlu0 %1340
    %1344 = vrot.lane.b32.xlu0 %v1337, 32
    %v1345 = vpop.permute.xlu0 %1344
    %v1347 = vsel %vm141, %v1341, %v1345
    %v1348 = vld [vmem:[#allocation6] sm:$0xff]
    %v1349 = vld [vmem:[#allocation6 + $0x8] sm:$0xff]
    %v1350 = vld [vmem:[#allocation6 + $0x10] sm:$0xff]
    %v1351 = vld [vmem:[#allocation6 + $0x18] sm:$0xff]
    %v1352 = vld [vmem:[#allocation6 + $0x20] sm:$0xff]
    %v1353 = vld [vmem:[#allocation6 + $0x28] sm:$0xff]
    %v1354 = vld [vmem:[#allocation6 + $0x30] sm:$0xff]
    %v1355 = vld [vmem:[#allocation6 + $0x38] sm:$0xff]
    %v1356 = vld [vmem:[#allocation6 + $0x40] sm:$0xff]
    %v1357 = vld [vmem:[#allocation6 + $0x48] sm:$0xff]
    %v1358 = vld [vmem:[#allocation6 + $0x50] sm:$0xff]
    %v1359 = vld [vmem:[#allocation6 + $0x58] sm:$0xff]
    %v1360 = vld [vmem:[#allocation6 + $0x60] sm:$0xff]
    %v1361 = vld [vmem:[#allocation6 + $0x68] sm:$0xff]
    %v1362 = vld [vmem:[#allocation6 + $0x70] sm:$0xff]
    %v1363 = vld [vmem:[#allocation6 + $0x78] sm:$0xff]
    %v1364 = vld [vmem:[%s5] sm:$0x3]
    %v1366 = vlaneseq
    %v1367 = vshrl.u32 %v1366, 7
    %v1368 = vsub.s32 0, %v1367
    %v1369 = vrot.slane %v1364, %v1368
    %v1370 = vlaneseq
    %v1371 = vshrl.u32 %v1370, 7
    %v1372 = vsub.s32 1, %v1371
    %v1373 = vrot.slane %v1364, %v1372
    %v1377 = vsel %vm323, %v1347, 0
    %1379 = vmatprep.subr.mxu0 %v1349
    %1380 = vmatpush1.msra.mxu0 %v1348
    %1381 = vmatprep.subr.mxu0 %v1351
    %1382 = vmatpush1.msra.mxu0 %v1350
    %1383 = vmatprep.subr.mxu0 %v1353
    %1384 = vmatpush1.msra.mxu0 %v1352
    %1385 = vmatprep.subr.mxu0 %v1355
    %1386 = vmatpush1.msra.mxu0 %v1354
    %1387 = vmatprep.subr.mxu0 %v1357
    %1388 = vmatpush1.msra.mxu0 %v1356
    %1389 = vmatprep.subr.mxu0 %v1359
    %1390 = vmatpush1.msra.mxu0 %v1358
    %1391 = vmatprep.subr.mxu0 %v1361
    %1392 = vmatpush1.msra.mxu0 %v1360
    %1393 = vmatprep.subr.mxu0 %v1363
    %1394 = vmatpush1.msra.mxu0 %v1362
    %1395 = vmatprep.subr.mxu0 0.0
    %1396 = vmatpush1.msra.mxu0 0.0
    %1397 = vmatprep.subr.mxu0 0.0
    %1398 = vmatpush1.msra.mxu0 0.0
    %1399 = vmatprep.subr.mxu0 0.0
    %1400 = vmatpush1.msra.mxu0 0.0
    %1401 = vmatprep.subr.mxu0 0.0
    %1402 = vmatpush1.msra.mxu0 0.0
    %1403 = vmatprep.subr.mxu0 0.0
    %1404 = vmatpush1.msra.mxu0 0.0
    %1405 = vmatprep.subr.mxu0 0.0
    %1406 = vmatpush1.msra.mxu0 0.0
    %1407 = vmatprep.subr.mxu0 0.0
    %1408 = vmatpush1.msra.mxu0 0.0
    %1409 = vmatprep.subr.mxu0 0.0
    %1410 = vmatpush1.msra.mxu0 0.0
    %1411 = vmatprep.subr.mxu0 0.0
    %1412 = vmatpush1.msra.mxu0 0.0
    %1413 = vmatprep.subr.mxu0 0.0
    %1414 = vmatpush1.msra.mxu0 0.0
    %1415 = vmatprep.subr.mxu0 0.0
    %1416 = vmatpush1.msra.mxu0 0.0
    %1417 = vmatprep.subr.mxu0 0.0
    %1418 = vmatpush1.msra.mxu0 0.0
    %1419 = vmatprep.subr.mxu0 0.0
    %1420 = vmatpush1.msra.mxu0 0.0
    %1421 = vmatprep.subr.mxu0 0.0
    %1422 = vmatpush1.msra.mxu0 0.0
    %1423 = vmatprep.subr.mxu0 0.0
    %1424 = vmatpush1.msra.mxu0 0.0
    %1425 = vmatprep.subr.mxu0 0.0
    %1426 = vmatpush1.msra.mxu0 0.0
    %1427 = vmatprep.subr.mxu0 0.0
    %1428 = vmatpush1.msra.mxu0 0.0
    %1429 = vmatprep.subr.mxu0 0.0
    %1430 = vmatpush1.msra.mxu0 0.0
    %1431 = vmatprep.subr.mxu0 0.0
    %1432 = vmatpush1.msra.mxu0 0.0
    %1433 = vmatprep.subr.mxu0 0.0
    %1434 = vmatpush1.msra.mxu0 0.0
    %1435 = vmatprep.subr.mxu0 0.0
    %1436 = vmatpush1.msra.mxu0 0.0
    %1437 = vmatprep.subr.mxu0 0.0
    %1438 = vmatpush1.msra.mxu0 0.0
    %1439 = vmatprep.subr.mxu0 0.0
    %1440 = vmatpush1.msra.mxu0 0.0
    %1441 = vmatprep.subr.mxu0 0.0
    %1442 = vmatpush1.msra.mxu0 0.0
    %1443 = vmatprep.mubr.f32.mxu0 0.0
    %1444 = vmatmul.mubr.f32.gmra.mrb[0].mxu0 %v1377
    %v1445 = vpop.f32.mrb[0].mxu0
    %v1446 = vadd.f32 %v1369, %v1445
    %v1447 = vpop.f32.mrb[0].mxu0
    %v1448 = vadd.f32 %v1373, %v1447
    %1449 = vdwg.mxu0
    %1450 = vmatprep.subr.mxu0 %v1448
    %1451 = vmatpush1.msra.mxu0 %v1446
    %1452 = vmatprep.subr.mxu0 0.0
    %1453 = vmatpush1.msra.mxu0 0.0
    %1454 = vmatprep.subr.mxu0 0.0
    %1455 = vmatpush1.msra.mxu0 0.0
    %1456 = vmatprep.subr.mxu0 0.0
    %1457 = vmatpush1.msra.mxu0 0.0
    %1458 = vmatprep.subr.mxu0 0.0
    %1459 = vmatpush1.msra.mxu0 0.0
    %1460 = vmatprep.subr.mxu0 0.0
    %1461 = vmatpush1.msra.mxu0 0.0
    %1462 = vmatprep.subr.mxu0 0.0
    %1463 = vmatpush1.msra.mxu0 0.0
    %1464 = vmatprep.subr.mxu0 0.0
    %1465 = vmatpush1.msra.mxu0 0.0
    %1466 = vmatprep.subr.mxu0 0.0
    %1467 = vmatpush1.msra.mxu0 0.0
    %1468 = vmatprep.subr.mxu0 0.0
    %1469 = vmatpush1.msra.mxu0 0.0
    %1470 = vmatprep.subr.mxu0 0.0
    %1471 = vmatpush1.msra.mxu0 0.0
    %1472 = vmatprep.subr.mxu0 0.0
    %1473 = vmatpush1.msra.mxu0 0.0
    %1474 = vmatprep.subr.mxu0 0.0
    %1475 = vmatpush1.msra.mxu0 0.0
    %1476 = vmatprep.subr.mxu0 0.0
    %1477 = vmatpush1.msra.mxu0 0.0
    %1478 = vmatprep.subr.mxu0 0.0
    %1479 = vmatpush1.msra.mxu0 0.0
    %1480 = vmatprep.subr.mxu0 0.0
    %1481 = vmatpush1.msra.mxu0 0.0
    %1482 = vmatprep.subr.mxu0 0.0
    %1483 = vmatpush1.msra.mxu0 0.0
    %1484 = vmatprep.subr.mxu0 0.0
    %1485 = vmatpush1.msra.mxu0 0.0
    %1486 = vmatprep.subr.mxu0 0.0
    %1487 = vmatpush1.msra.mxu0 0.0
    %1488 = vmatprep.subr.mxu0 0.0
    %1489 = vmatpush1.msra.mxu0 0.0
    %1490 = vmatprep.subr.mxu0 0.0
    %1491 = vmatpush1.msra.mxu0 0.0
    %1492 = vmatprep.subr.mxu0 0.0
    %1493 = vmatpush1.msra.mxu0 0.0
    %1494 = vmatprep.subr.mxu0 0.0
    %1495 = vmatpush1.msra.mxu0 0.0
    %1496 = vmatprep.subr.mxu0 0.0
    %1497 = vmatpush1.msra.mxu0 0.0
    %1498 = vmatprep.subr.mxu0 0.0
    %1499 = vmatpush1.msra.mxu0 0.0
    %1500 = vmatprep.subr.mxu0 0.0
    %1501 = vmatpush1.msra.mxu0 0.0
    %1502 = vmatprep.subr.mxu0 0.0
    %1503 = vmatpush1.msra.mxu0 0.0
    %1504 = vmatprep.subr.mxu0 0.0
    %1505 = vmatpush1.msra.mxu0 0.0
    %1506 = vmatprep.subr.mxu0 0.0
    %1507 = vmatpush1.msra.mxu0 0.0
    %1508 = vmatprep.subr.mxu0 0.0
    %1509 = vmatpush1.msra.mxu0 0.0
    %1510 = vmatprep.subr.mxu0 0.0
    %1511 = vmatpush1.msra.mxu0 0.0
    %1512 = vmatprep.subr.mxu0 0.0
    %1513 = vmatpush1.msra.mxu0 0.0
    %1514 = vmatprep.mubr.f32.mxu0 0.0
    %1515 = vmatmul.mubr.f32.gmra.mrb[0].mxu0 %v218
    %v1516 = vpop.f32.mrb[0].mxu0
    %v1517 = vadd.f32 0.0, %v1516
    %v1518 = vpop.f32.mrb[0].mxu0
    %v1519 = vadd.f32 0.0, %v1518
    %1520 = vdwg.mxu0
    %v1521 = vsel %vm113, %v1517, %v1446
    %v1522 = vsel %vm114, %v1519, %v1448
    %1523 = vst [vmem:[#allocation2] sm:$0xff] %v1521
    %1524 = vst [vmem:[#allocation2 + $0x8] sm:$0xff] %v1522
    %v1525 = vld [vmem:[#allocation8] sm:$0xff]
    %v1526 = vld [vmem:[#allocation8 + $0x8] sm:$0xff]
    %v1527 = vld [vmem:[#allocation8 + $0x10] sm:$0xff]
    %v1528 = vld [vmem:[#allocation8 + $0x18] sm:$0xff]
    %v1529 = vld [vmem:[#allocation8 + $0x20] sm:$0xff]
    %v1530 = vld [vmem:[#allocation8 + $0x28] sm:$0xff]
    %v1531 = vld [vmem:[#allocation8 + $0x30] sm:$0xff]
    %v1532 = vld [vmem:[#allocation8 + $0x38] sm:$0xff]
    %v1533 = vld [vmem:[#allocation8 + $0x40] sm:$0xff]
    %v1534 = vld [vmem:[#allocation8 + $0x48] sm:$0xff]
    %v1535 = vld [vmem:[#allocation8 + $0x50] sm:$0xff]
    %v1536 = vld [vmem:[#allocation8 + $0x58] sm:$0xff]
    %v1537 = vld [vmem:[#allocation8 + $0x60] sm:$0xff]
    %v1538 = vld [vmem:[#allocation8 + $0x68] sm:$0xff]
    %v1539 = vld [vmem:[#allocation8 + $0x70] sm:$0xff]
    %v1540 = vld [vmem:[#allocation8 + $0x78] sm:$0xff]
    %v1541 = vld [vmem:[#allocation2] ss:$8 sm:$0x3]
    %v1543 = vlaneseq
    %v1544 = vshrl.u32 %v1543, 7
    %v1545 = vsub.s32 0, %v1544
    %v1546 = vrot.slane %v1541, %v1545
    %v1547 = vlaneseq
    %v1548 = vshrl.u32 %v1547, 7
    %v1549 = vsub.s32 1, %v1548
    %v1550 = vrot.slane %v1541, %v1549
    %1553 = vmatprep.subr.mxu0 %v1526
    %1554 = vmatpush1.msra.mxu0 %v1525
    %1555 = vmatprep.subr.mxu0 %v1528
    %1556 = vmatpush1.msra.mxu0 %v1527
    %1557 = vmatprep.subr.mxu0 %v1530
    %1558 = vmatpush1.msra.mxu0 %v1529
    %1559 = vmatprep.subr.mxu0 %v1532
    %1560 = vmatpush1.msra.mxu0 %v1531
    %1561 = vmatprep.subr.mxu0 %v1534
    %1562 = vmatpush1.msra.mxu0 %v1533
    %1563 = vmatprep.subr.mxu0 %v1536
    %1564 = vmatpush1.msra.mxu0 %v1535
    %1565 = vmatprep.subr.mxu0 %v1538
    %1566 = vmatpush1.msra.mxu0 %v1537
    %1567 = vmatprep.subr.mxu0 %v1540
    %1568 = vmatpush1.msra.mxu0 %v1539
    %1569 = vmatprep.subr.mxu0 0.0
    %1570 = vmatpush1.msra.mxu0 0.0
    %1571 = vmatprep.subr.mxu0 0.0
    %1572 = vmatpush1.msra.mxu0 0.0
    %1573 = vmatprep.subr.mxu0 0.0
    %1574 = vmatpush1.msra.mxu0 0.0
    %1575 = vmatprep.subr.mxu0 0.0
    %1576 = vmatpush1.msra.mxu0 0.0
    %1577 = vmatprep.subr.mxu0 0.0
    %1578 = vmatpush1.msra.mxu0 0.0
    %1579 = vmatprep.subr.mxu0 0.0
    %1580 = vmatpush1.msra.mxu0 0.0
    %1581 = vmatprep.subr.mxu0 0.0
    %1582 = vmatpush1.msra.mxu0 0.0
    %1583 = vmatprep.subr.mxu0 0.0
    %1584 = vmatpush1.msra.mxu0 0.0
    %1585 = vmatprep.subr.mxu0 0.0
    %1586 = vmatpush1.msra.mxu0 0.0
    %1587 = vmatprep.subr.mxu0 0.0
    %1588 = vmatpush1.msra.mxu0 0.0
    %1589 = vmatprep.subr.mxu0 0.0
    %1590 = vmatpush1.msra.mxu0 0.0
    %1591 = vmatprep.subr.mxu0 0.0
    %1592 = vmatpush1.msra.mxu0 0.0
    %1593 = vmatprep.subr.mxu0 0.0
    %1594 = vmatpush1.msra.mxu0 0.0
    %1595 = vmatprep.subr.mxu0 0.0
    %1596 = vmatpush1.msra.mxu0 0.0
    %1597 = vmatprep.subr.mxu0 0.0
    %1598 = vmatpush1.msra.mxu0 0.0
    %1599 = vmatprep.subr.mxu0 0.0
    %1600 = vmatpush1.msra.mxu0 0.0
    %1601 = vmatprep.subr.mxu0 0.0
    %1602 = vmatpush1.msra.mxu0 0.0
    %1603 = vmatprep.subr.mxu0 0.0
    %1604 = vmatpush1.msra.mxu0 0.0
    %1605 = vmatprep.subr.mxu0 0.0
    %1606 = vmatpush1.msra.mxu0 0.0
    %1607 = vmatprep.subr.mxu0 0.0
    %1608 = vmatpush1.msra.mxu0 0.0
    %1609 = vmatprep.subr.mxu0 0.0
    %1610 = vmatpush1.msra.mxu0 0.0
    %1611 = vmatprep.subr.mxu0 0.0
    %1612 = vmatpush1.msra.mxu0 0.0
    %1613 = vmatprep.subr.mxu0 0.0
    %1614 = vmatpush1.msra.mxu0 0.0
    %1615 = vmatprep.subr.mxu0 0.0
    %1616 = vmatpush1.msra.mxu0 0.0
    %1617 = vmatprep.mubr.f32.mxu0 0.0
    %1618 = vmatmul.mubr.f32.gmra.mrb[0].mxu0 %v325
    %v1619 = vpop.f32.mrb[0].mxu0
    %v1620 = vadd.f32 %v1546, %v1619
    %v1621 = vpop.f32.mrb[0].mxu0
    %v1622 = vadd.f32 %v1550, %v1621
    %1623 = vdwg.mxu0
    %v1624 = vmul.f32 %v1620, %v83
    %v1625 = vmul.f32 %v1622, %v84
    %v1626 = vxor.u32 %v1624, 2147483648
    %v1627 = vxor.u32 %v1625, 2147483648
    %v1628 = vmul.f32 %v1626, 1.442695
    %v1629 = vpow.pop %v1628
    %v1630 = vmul.f32 %v1627, 1.442695
    %v1631 = vpow.pop %v1630
    %v1632 = vadd.f32 %v1629, 1.0
    %v1633 = vadd.f32 %v1631, 1.0
    %v1634 = vrcp.pop %v1632
    %v1635 = vmul.f32 1.0, %v1634
    %v1636 = vrcp.pop %v1633
    %v1637 = vmul.f32 1.0, %v1636
    %v1638 = vmul.f32 %v1635, %v83
    %v1639 = vmul.f32 %v1637, %v84
    %v1640 = vadd.f32 %v1638, %v85
    %v1641 = vadd.f32 %v1639, %v86
    %v1642 = vmul.f32 %v1640, 0.0
    %v1643 = vmul.f32 %v1640, %v1641
    %1645 = vrot.lane.b32.xlu0 %v1643, 64
    %v1646 = vpop.permute.xlu0 %1645
    %v1648 = vadd.f32 %v1642, %v1646
    %v1649 = vtanh.pop %v1648
    %v1650 = vmul.f32 %v1641, %v1649
    %v1651 = vld [vmem:[%s425] ss:$8 sm:$0x3]
    %1653 = vrot.lane.b32.xlu0 %v1650, 64
    %v1654 = vpop.permute.xlu0 %1653
    %v1656 = vlaneseq
    %v1657 = vshrl.u32 %v1656, 7
    %v1658 = vsub.s32 0, %v1657
    %v1659 = vrot.slane %v1651, %v1658
    %v1660 = vlaneseq
    %v1661 = vshrl.u32 %v1660, 7
    %v1662 = vsub.s32 1, %v1661
    %v1663 = vrot.slane %v1651, %v1662
    %v1666 = vsel %vm323, %v1654, 0
    %1668 = vmatprep.subr.mxu0 %v1526
    %1669 = vmatpush1.msra.mxu0 %v1525
    %1670 = vmatprep.subr.mxu0 %v1528
    %1671 = vmatpush1.msra.mxu0 %v1527
    %1672 = vmatprep.subr.mxu0 %v1530
    %1673 = vmatpush1.msra.mxu0 %v1529
    %1674 = vmatprep.subr.mxu0 %v1532
    %1675 = vmatpush1.msra.mxu0 %v1531
    %1676 = vmatprep.subr.mxu0 %v1534
    %1677 = vmatpush1.msra.mxu0 %v1533
    %1678 = vmatprep.subr.mxu0 %v1536
    %1679 = vmatpush1.msra.mxu0 %v1535
    %1680 = vmatprep.subr.mxu0 %v1538
    %1681 = vmatpush1.msra.mxu0 %v1537
    %1682 = vmatprep.subr.mxu0 %v1540
    %1683 = vmatpush1.msra.mxu0 %v1539
    %1684 = vmatprep.subr.mxu0 0.0
    %1685 = vmatpush1.msra.mxu0 0.0
    %1686 = vmatprep.subr.mxu0 0.0
    %1687 = vmatpush1.msra.mxu0 0.0
    %1688 = vmatprep.subr.mxu0 0.0
    %1689 = vmatpush1.msra.mxu0 0.0
    %1690 = vmatprep.subr.mxu0 0.0
    %1691 = vmatpush1.msra.mxu0 0.0
    %1692 = vmatprep.subr.mxu0 0.0
    %1693 = vmatpush1.msra.mxu0 0.0
    %1694 = vmatprep.subr.mxu0 0.0
    %1695 = vmatpush1.msra.mxu0 0.0
    %1696 = vmatprep.subr.mxu0 0.0
    %1697 = vmatpush1.msra.mxu0 0.0
    %1698 = vmatprep.subr.mxu0 0.0
    %1699 = vmatpush1.msra.mxu0 0.0
    %1700 = vmatprep.subr.mxu0 0.0
    %1701 = vmatpush1.msra.mxu0 0.0
    %1702 = vmatprep.subr.mxu0 0.0
    %1703 = vmatpush1.msra.mxu0 0.0
    %1704 = vmatprep.subr.mxu0 0.0
    %1705 = vmatpush1.msra.mxu0 0.0
    %1706 = vmatprep.subr.mxu0 0.0
    %1707 = vmatpush1.msra.mxu0 0.0
    %1708 = vmatprep.subr.mxu0 0.0
    %1709 = vmatpush1.msra.mxu0 0.0
    %1710 = vmatprep.subr.mxu0 0.0
    %1711 = vmatpush1.msra.mxu0 0.0
    %1712 = vmatprep.subr.mxu0 0.0
    %1713 = vmatpush1.msra.mxu0 0.0
    %1714 = vmatprep.subr.mxu0 0.0
    %1715 = vmatpush1.msra.mxu0 0.0
    %1716 = vmatprep.subr.mxu0 0.0
    %1717 = vmatpush1.msra.mxu0 0.0
    %1718 = vmatprep.subr.mxu0 0.0
    %1719 = vmatpush1.msra.mxu0 0.0
    %1720 = vmatprep.subr.mxu0 0.0
    %1721 = vmatpush1.msra.mxu0 0.0
    %1722 = vmatprep.subr.mxu0 0.0
    %1723 = vmatpush1.msra.mxu0 0.0
    %1724 = vmatprep.subr.mxu0 0.0
    %1725 = vmatpush1.msra.mxu0 0.0
    %1726 = vmatprep.subr.mxu0 0.0
    %1727 = vmatpush1.msra.mxu0 0.0
    %1728 = vmatprep.subr.mxu0 0.0
    %1729 = vmatpush1.msra.mxu0 0.0
    %1730 = vmatprep.subr.mxu0 0.0
    %1731 = vmatpush1.msra.mxu0 0.0
    %1732 = vmatprep.mubr.f32.mxu0 0.0
    %1733 = vmatmul.mubr.f32.gmra.mrb[0].mxu0 %v1666
    %v1734 = vpop.f32.mrb[0].mxu0
    %v1735 = vadd.f32 %v1659, %v1734
    %v1736 = vpop.f32.mrb[0].mxu0
    %v1737 = vadd.f32 %v1663, %v1736
    %1738 = vdwg.mxu0
    %v1739 = vmul.f32 %v1735, %v83
    %v1740 = vmul.f32 %v1737, %v84
    %v1741 = vxor.u32 %v1739, 2147483648
    %v1742 = vxor.u32 %v1740, 2147483648
    %v1743 = vmul.f32 %v1741, 1.442695
    %v1744 = vpow.pop %v1743
    %v1745 = vmul.f32 %v1742, 1.442695
    %v1746 = vpow.pop %v1745
    %v1747 = vadd.f32 %v1744, 1.0
    %v1748 = vadd.f32 %v1746, 1.0
    %v1749 = vrcp.pop %v1747
    %v1750 = vmul.f32 1.0, %v1749
    %v1751 = vrcp.pop %v1748
    %v1752 = vmul.f32 1.0, %v1751
    %v1753 = vmul.f32 %v1750, %v83
    %v1754 = vmul.f32 %v1752, %v84
    %v1755 = vadd.f32 %v1753, %v85
    %v1756 = vadd.f32 %v1754, %v86
    %v1757 = vmul.f32 %v1755, %v1648
    %v1758 = vmul.f32 %v1755, %v1756
    %1760 = vrot.lane.b32.xlu0 %v1758, 64
    %v1761 = vpop.permute.xlu0 %1760
    %v1763 = vadd.f32 %v1757, %v1761
    %v1764 = vtanh.pop %v1763
    %v1765 = vmul.f32 %v1756, %v1764
    %v1766 = vld [vmem:[%s541] ss:$8 sm:$0x3]
    %1768 = vrot.lane.b32.xlu0 %v1765, 64
    %v1769 = vpop.permute.xlu0 %1768
    %v1771 = vlaneseq
    %v1772 = vshrl.u32 %v1771, 7
    %v1773 = vsub.s32 0, %v1772
    %v1774 = vrot.slane %v1766, %v1773
    %v1775 = vlaneseq
    %v1776 = vshrl.u32 %v1775, 7
    %v1777 = vsub.s32 1, %v1776
    %v1778 = vrot.slane %v1766, %v1777
    %v1781 = vsel %vm323, %v1769, 0
    %1783 = vmatprep.subr.mxu0 %v1526
    %1784 = vmatpush1.msra.mxu0 %v1525
    %1785 = vmatprep.subr.mxu0 %v1528
    %1786 = vmatpush1.msra.mxu0 %v1527
    %1787 = vmatprep.subr.mxu0 %v1530
    %1788 = vmatpush1.msra.mxu0 %v1529
    %1789 = vmatprep.subr.mxu0 %v1532
    %1790 = vmatpush1.msra.mxu0 %v1531
    %1791 = vmatprep.subr.mxu0 %v1534
    %1792 = vmatpush1.msra.mxu0 %v1533
    %1793 = vmatprep.subr.mxu0 %v1536
    %1794 = vmatpush1.msra.mxu0 %v1535
    %1795 = vmatprep.subr.mxu0 %v1538
    %1796 = vmatpush1.msra.mxu0 %v1537
    %1797 = vmatprep.subr.mxu0 %v1540
    %1798 = vmatpush1.msra.mxu0 %v1539
    %1799 = vmatprep.subr.mxu0 0.0
    %1800 = vmatpush1.msra.mxu0 0.0
    %1801 = vmatprep.subr.mxu0 0.0
    %1802 = vmatpush1.msra.mxu0 0.0
    %1803 = vmatprep.subr.mxu0 0.0
    %1804 = vmatpush1.msra.mxu0 0.0
    %1805 = vmatprep.subr.mxu0 0.0
    %1806 = vmatpush1.msra.mxu0 0.0
    %1807 = vmatprep.subr.mxu0 0.0
    %1808 = vmatpush1.msra.mxu0 0.0
    %1809 = vmatprep.subr.mxu0 0.0
    %1810 = vmatpush1.msra.mxu0 0.0
    %1811 = vmatprep.subr.mxu0 0.0
    %1812 = vmatpush1.msra.mxu0 0.0
    %1813 = vmatprep.subr.mxu0 0.0
    %1814 = vmatpush1.msra.mxu0 0.0
    %1815 = vmatprep.subr.mxu0 0.0
    %1816 = vmatpush1.msra.mxu0 0.0
    %1817 = vmatprep.subr.mxu0 0.0
    %1818 = vmatpush1.msra.mxu0 0.0
    %1819 = vmatprep.subr.mxu0 0.0
    %1820 = vmatpush1.msra.mxu0 0.0
    %1821 = vmatprep.subr.mxu0 0.0
    %1822 = vmatpush1.msra.mxu0 0.0
    %1823 = vmatprep.subr.mxu0 0.0
    %1824 = vmatpush1.msra.mxu0 0.0
    %1825 = vmatprep.subr.mxu0 0.0
    %1826 = vmatpush1.msra.mxu0 0.0
    %1827 = vmatprep.subr.mxu0 0.0
    %1828 = vmatpush1.msra.mxu0 0.0
    %1829 = vmatprep.subr.mxu0 0.0
    %1830 = vmatpush1.msra.mxu0 0.0
    %1831 = vmatprep.subr.mxu0 0.0
    %1832 = vmatpush1.msra.mxu0 0.0
    %1833 = vmatprep.subr.mxu0 0.0
    %1834 = vmatpush1.msra.mxu0 0.0
    %1835 = vmatprep.subr.mxu0 0.0
    %1836 = vmatpush1.msra.mxu0 0.0
    %1837 = vmatprep.subr.mxu0 0.0
    %1838 = vmatpush1.msra.mxu0 0.0
    %1839 = vmatprep.subr.mxu0 0.0
    %1840 = vmatpush1.msra.mxu0 0.0
    %1841 = vmatprep.subr.mxu0 0.0
    %1842 = vmatpush1.msra.mxu0 0.0
    %1843 = vmatprep.subr.mxu0 0.0
    %1844 = vmatpush1.msra.mxu0 0.0
    %1845 = vmatprep.subr.mxu0 0.0
    %1846 = vmatpush1.msra.mxu0 0.0
    %1847 = vmatprep.mubr.f32.mxu0 0.0
    %1848 = vmatmul.mubr.f32.gmra.mrb[0].mxu0 %v1781
    %v1849 = vpop.f32.mrb[0].mxu0
    %v1850 = vadd.f32 %v1774, %v1849
    %v1851 = vpop.f32.mrb[0].mxu0
    %v1852 = vadd.f32 %v1778, %v1851
    %1853 = vdwg.mxu0
    %v1854 = vmul.f32 %v1850, %v83
    %v1855 = vmul.f32 %v1852, %v84
    %v1856 = vxor.u32 %v1854, 2147483648
    %v1857 = vxor.u32 %v1855, 2147483648
    %v1858 = vmul.f32 %v1856, 1.442695
    %v1859 = vpow.pop %v1858
    %v1860 = vmul.f32 %v1857, 1.442695
    %v1861 = vpow.pop %v1860
    %v1862 = vadd.f32 %v1859, 1.0
    %v1863 = vadd.f32 %v1861, 1.0
    %v1864 = vrcp.pop %v1862
    %v1865 = vmul.f32 1.0, %v1864
    %v1866 = vrcp.pop %v1863
    %v1867 = vmul.f32 1.0, %v1866
    %v1868 = vmul.f32 %v1865, %v83
    %v1869 = vmul.f32 %v1867, %v84
    %v1870 = vadd.f32 %v1868, %v85
    %v1871 = vadd.f32 %v1869, %v86
    %v1872 = vmul.f32 %v1870, %v1763
    %v1873 = vmul.f32 %v1870, %v1871
    %1875 = vrot.lane.b32.xlu0 %v1873, 64
    %v1876 = vpop.permute.xlu0 %1875
    %v1878 = vadd.f32 %v1872, %v1876
    %v1879 = vtanh.pop %v1878
    %v1880 = vmul.f32 %v1871, %v1879
    %v1881 = vld [vmem:[%s657] ss:$8 sm:$0x3]
    %1883 = vrot.lane.b32.xlu0 %v1880, 64
    %v1884 = vpop.permute.xlu0 %1883
    %v1886 = vlaneseq
    %v1887 = vshrl.u32 %v1886, 7
    %v1888 = vsub.s32 0, %v1887
    %v1889 = vrot.slane %v1881, %v1888
    %v1890 = vlaneseq
    %v1891 = vshrl.u32 %v1890, 7
    %v1892 = vsub.s32 1, %v1891
    %v1893 = vrot.slane %v1881, %v1892
    %v1896 = vsel %vm323, %v1884, 0
    %1898 = vmatprep.subr.mxu0 %v1526
    %1899 = vmatpush1.msra.mxu0 %v1525
    %1900 = vmatprep.subr.mxu0 %v1528
    %1901 = vmatpush1.msra.mxu0 %v1527
    %1902 = vmatprep.subr.mxu0 %v1530
    %1903 = vmatpush1.msra.mxu0 %v1529
    %1904 = vmatprep.subr.mxu0 %v1532
    %1905 = vmatpush1.msra.mxu0 %v1531
    %1906 = vmatprep.subr.mxu0 %v1534
    %1907 = vmatpush1.msra.mxu0 %v1533
    %1908 = vmatprep.subr.mxu0 %v1536
    %1909 = vmatpush1.msra.mxu0 %v1535
    %1910 = vmatprep.subr.mxu0 %v1538
    %1911 = vmatpush1.msra.mxu0 %v1537
    %1912 = vmatprep.subr.mxu0 %v1540
    %1913 = vmatpush1.msra.mxu0 %v1539
    %1914 = vmatprep.subr.mxu0 0.0
    %1915 = vmatpush1.msra.mxu0 0.0
    %1916 = vmatprep.subr.mxu0 0.0
    %1917 = vmatpush1.msra.mxu0 0.0
    %1918 = vmatprep.subr.mxu0 0.0
    %1919 = vmatpush1.msra.mxu0 0.0
    %1920 = vmatprep.subr.mxu0 0.0
    %1921 = vmatpush1.msra.mxu0 0.0
    %1922 = vmatprep.subr.mxu0 0.0
    %1923 = vmatpush1.msra.mxu0 0.0
    %1924 = vmatprep.subr.mxu0 0.0
    %1925 = vmatpush1.msra.mxu0 0.0
    %1926 = vmatprep.subr.mxu0 0.0
    %1927 = vmatpush1.msra.mxu0 0.0
    %1928 = vmatprep.subr.mxu0 0.0
    %1929 = vmatpush1.msra.mxu0 0.0
    %1930 = vmatprep.subr.mxu0 0.0
    %1931 = vmatpush1.msra.mxu0 0.0
    %1932 = vmatprep.subr.mxu0 0.0
    %1933 = vmatpush1.msra.mxu0 0.0
    %1934 = vmatprep.subr.mxu0 0.0
    %1935 = vmatpush1.msra.mxu0 0.0
    %1936 = vmatprep.subr.mxu0 0.0
    %1937 = vmatpush1.msra.mxu0 0.0
    %1938 = vmatprep.subr.mxu0 0.0
    %1939 = vmatpush1.msra.mxu0 0.0
    %1940 = vmatprep.subr.mxu0 0.0
    %1941 = vmatpush1.msra.mxu0 0.0
    %1942 = vmatprep.subr.mxu0 0.0
    %1943 = vmatpush1.msra.mxu0 0.0
    %1944 = vmatprep.subr.mxu0 0.0
    %1945 = vmatpush1.msra.mxu0 0.0
    %1946 = vmatprep.subr.mxu0 0.0
    %1947 = vmatpush1.msra.mxu0 0.0
    %1948 = vmatprep.subr.mxu0 0.0
    %1949 = vmatpush1.msra.mxu0 0.0
    %1950 = vmatprep.subr.mxu0 0.0
    %1951 = vmatpush1.msra.mxu0 0.0
    %1952 = vmatprep.subr.mxu0 0.0
    %1953 = vmatpush1.msra.mxu0 0.0
    %1954 = vmatprep.subr.mxu0 0.0
    %1955 = vmatpush1.msra.mxu0 0.0
    %1956 = vmatprep.subr.mxu0 0.0
    %1957 = vmatpush1.msra.mxu0 0.0
    %1958 = vmatprep.subr.mxu0 0.0
    %1959 = vmatpush1.msra.mxu0 0.0
    %1960 = vmatprep.subr.mxu0 0.0
    %1961 = vmatpush1.msra.mxu0 0.0
    %1962 = vmatprep.mubr.f32.mxu0 0.0
    %1963 = vmatmul.mubr.f32.gmra.mrb[0].mxu0 %v1896
    %v1964 = vpop.f32.mrb[0].mxu0
    %v1965 = vadd.f32 %v1889, %v1964
    %v1966 = vpop.f32.mrb[0].mxu0
    %v1967 = vadd.f32 %v1893, %v1966
    %1968 = vdwg.mxu0
    %v1969 = vmul.f32 %v1965, %v83
    %v1970 = vmul.f32 %v1967, %v84
    %v1971 = vxor.u32 %v1969, 2147483648
    %v1972 = vxor.u32 %v1970, 2147483648
    %v1973 = vmul.f32 %v1971, 1.442695
    %v1974 = vpow.pop %v1973
    %v1975 = vmul.f32 %v1972, 1.442695
    %v1976 = vpow.pop %v1975
    %v1977 = vadd.f32 %v1974, 1.0
    %v1978 = vadd.f32 %v1976, 1.0
    %v1979 = vrcp.pop %v1977
    %v1980 = vmul.f32 1.0, %v1979
    %v1981 = vrcp.pop %v1978
    %v1982 = vmul.f32 1.0, %v1981
    %v1983 = vmul.f32 %v1980, %v83
    %v1984 = vmul.f32 %v1982, %v84
    %v1985 = vadd.f32 %v1983, %v85
    %v1986 = vadd.f32 %v1984, %v86
    %v1987 = vmul.f32 %v1985, %v1878
    %v1988 = vmul.f32 %v1985, %v1986
    %1990 = vrot.lane.b32.xlu0 %v1988, 64
    %v1991 = vpop.permute.xlu0 %1990
    %v1993 = vadd.f32 %v1987, %v1991
    %v1994 = vtanh.pop %v1993
    %v1995 = vmul.f32 %v1986, %v1994
    %v1996 = vld [vmem:[%s773] ss:$8 sm:$0x3]
    %1998 = vrot.lane.b32.xlu0 %v1995, 64
    %v1999 = vpop.permute.xlu0 %1998
    %v2001 = vlaneseq
    %v2002 = vshrl.u32 %v2001, 7
    %v2003 = vsub.s32 0, %v2002
    %v2004 = vrot.slane %v1996, %v2003
    %v2005 = vlaneseq
    %v2006 = vshrl.u32 %v2005, 7
    %v2007 = vsub.s32 1, %v2006
    %v2008 = vrot.slane %v1996, %v2007
    %v2011 = vsel %vm323, %v1999, 0
    %2013 = vmatprep.subr.mxu0 %v1526
    %2014 = vmatpush1.msra.mxu0 %v1525
    %2015 = vmatprep.subr.mxu0 %v1528
    %2016 = vmatpush1.msra.mxu0 %v1527
    %2017 = vmatprep.subr.mxu0 %v1530
    %2018 = vmatpush1.msra.mxu0 %v1529
    %2019 = vmatprep.subr.mxu0 %v1532
    %2020 = vmatpush1.msra.mxu0 %v1531
    %2021 = vmatprep.subr.mxu0 %v1534
    %2022 = vmatpush1.msra.mxu0 %v1533
    %2023 = vmatprep.subr.mxu0 %v1536
    %2024 = vmatpush1.msra.mxu0 %v1535
    %2025 = vmatprep.subr.mxu0 %v1538
    %2026 = vmatpush1.msra.mxu0 %v1537
    %2027 = vmatprep.subr.mxu0 %v1540
    %2028 = vmatpush1.msra.mxu0 %v1539
    %2029 = vmatprep.subr.mxu0 0.0
    %2030 = vmatpush1.msra.mxu0 0.0
    %2031 = vmatprep.subr.mxu0 0.0
    %2032 = vmatpush1.msra.mxu0 0.0
    %2033 = vmatprep.subr.mxu0 0.0
    %2034 = vmatpush1.msra.mxu0 0.0
    %2035 = vmatprep.subr.mxu0 0.0
    %2036 = vmatpush1.msra.mxu0 0.0
    %2037 = vmatprep.subr.mxu0 0.0
    %2038 = vmatpush1.msra.mxu0 0.0
    %2039 = vmatprep.subr.mxu0 0.0
    %2040 = vmatpush1.msra.mxu0 0.0
    %2041 = vmatprep.subr.mxu0 0.0
    %2042 = vmatpush1.msra.mxu0 0.0
    %2043 = vmatprep.subr.mxu0 0.0
    %2044 = vmatpush1.msra.mxu0 0.0
    %2045 = vmatprep.subr.mxu0 0.0
    %2046 = vmatpush1.msra.mxu0 0.0
    %2047 = vmatprep.subr.mxu0 0.0
    %2048 = vmatpush1.msra.mxu0 0.0
    %2049 = vmatprep.subr.mxu0 0.0
    %2050 = vmatpush1.msra.mxu0 0.0
    %2051 = vmatprep.subr.mxu0 0.0
    %2052 = vmatpush1.msra.mxu0 0.0
    %2053 = vmatprep.subr.mxu0 0.0
    %2054 = vmatpush1.msra.mxu0 0.0
    %2055 = vmatprep.subr.mxu0 0.0
    %2056 = vmatpush1.msra.mxu0 0.0
    %2057 = vmatprep.subr.mxu0 0.0
    %2058 = vmatpush1.msra.mxu0 0.0
    %2059 = vmatprep.subr.mxu0 0.0
    %2060 = vmatpush1.msra.mxu0 0.0
    %2061 = vmatprep.subr.mxu0 0.0
    %2062 = vmatpush1.msra.mxu0 0.0
    %2063 = vmatprep.subr.mxu0 0.0
    %2064 = vmatpush1.msra.mxu0 0.0
    %2065 = vmatprep.subr.mxu0 0.0
    %2066 = vmatpush1.msra.mxu0 0.0
    %2067 = vmatprep.subr.mxu0 0.0
    %2068 = vmatpush1.msra.mxu0 0.0
    %2069 = vmatprep.subr.mxu0 0.0
    %2070 = vmatpush1.msra.mxu0 0.0
    %2071 = vmatprep.subr.mxu0 0.0
    %2072 = vmatpush1.msra.mxu0 0.0
    %2073 = vmatprep.subr.mxu0 0.0
    %2074 = vmatpush1.msra.mxu0 0.0
    %2075 = vmatprep.subr.mxu0 0.0
    %2076 = vmatpush1.msra.mxu0 0.0
    %2077 = vmatprep.mubr.f32.mxu0 0.0
    %2078 = vmatmul.mubr.f32.gmra.mrb[0].mxu0 %v2011
    %v2079 = vpop.f32.mrb[0].mxu0
    %v2080 = vadd.f32 %v2004, %v2079
    %v2081 = vpop.f32.mrb[0].mxu0
    %v2082 = vadd.f32 %v2008, %v2081
    %2083 = vdwg.mxu0
    %v2084 = vmul.f32 %v2080, %v83
    %v2085 = vmul.f32 %v2082, %v84
    %v2086 = vxor.u32 %v2084, 2147483648
    %v2087 = vxor.u32 %v2085, 2147483648
    %v2088 = vmul.f32 %v2086, 1.442695
    %v2089 = vpow.pop %v2088
    %v2090 = vmul.f32 %v2087, 1.442695
    %v2091 = vpow.pop %v2090
    %v2092 = vadd.f32 %v2089, 1.0
    %v2093 = vadd.f32 %v2091, 1.0
    %v2094 = vrcp.pop %v2092
    %v2095 = vmul.f32 1.0, %v2094
    %v2096 = vrcp.pop %v2093
    %v2097 = vmul.f32 1.0, %v2096
    %v2098 = vmul.f32 %v2095, %v83
    %v2099 = vmul.f32 %v2097, %v84
    %v2100 = vadd.f32 %v2098, %v85
    %v2101 = vadd.f32 %v2099, %v86
    %v2102 = vmul.f32 %v2100, %v1993
    %v2103 = vmul.f32 %v2100, %v2101
    %2105 = vrot.lane.b32.xlu0 %v2103, 64
    %v2106 = vpop.permute.xlu0 %2105
    %v2108 = vadd.f32 %v2102, %v2106
    %v2109 = vtanh.pop %v2108
    %v2110 = vmul.f32 %v2101, %v2109
    %v2111 = vld [vmem:[%s889] ss:$8 sm:$0x3]
    %2113 = vrot.lane.b32.xlu0 %v2110, 64
    %v2114 = vpop.permute.xlu0 %2113
    %v2116 = vlaneseq
    %v2117 = vshrl.u32 %v2116, 7
    %v2118 = vsub.s32 0, %v2117
    %v2119 = vrot.slane %v2111, %v2118
    %v2120 = vlaneseq
    %v2121 = vshrl.u32 %v2120, 7
    %v2122 = vsub.s32 1, %v2121
    %v2123 = vrot.slane %v2111, %v2122
    %v2126 = vsel %vm323, %v2114, 0
    %2128 = vmatprep.subr.mxu0 %v1526
    %2129 = vmatpush1.msra.mxu0 %v1525
    %2130 = vmatprep.subr.mxu0 %v1528
    %2131 = vmatpush1.msra.mxu0 %v1527
    %2132 = vmatprep.subr.mxu0 %v1530
    %2133 = vmatpush1.msra.mxu0 %v1529
    %2134 = vmatprep.subr.mxu0 %v1532
    %2135 = vmatpush1.msra.mxu0 %v1531
    %2136 = vmatprep.subr.mxu0 %v1534
    %2137 = vmatpush1.msra.mxu0 %v1533
    %2138 = vmatprep.subr.mxu0 %v1536
    %2139 = vmatpush1.msra.mxu0 %v1535
    %2140 = vmatprep.subr.mxu0 %v1538
    %2141 = vmatpush1.msra.mxu0 %v1537
    %2142 = vmatprep.subr.mxu0 %v1540
    %2143 = vmatpush1.msra.mxu0 %v1539
    %2144 = vmatprep.subr.mxu0 0.0
    %2145 = vmatpush1.msra.mxu0 0.0
    %2146 = vmatprep.subr.mxu0 0.0
    %2147 = vmatpush1.msra.mxu0 0.0
    %2148 = vmatprep.subr.mxu0 0.0
    %2149 = vmatpush1.msra.mxu0 0.0
    %2150 = vmatprep.subr.mxu0 0.0
    %2151 = vmatpush1.msra.mxu0 0.0
    %2152 = vmatprep.subr.mxu0 0.0
    %2153 = vmatpush1.msra.mxu0 0.0
    %2154 = vmatprep.subr.mxu0 0.0
    %2155 = vmatpush1.msra.mxu0 0.0
    %2156 = vmatprep.subr.mxu0 0.0
    %2157 = vmatpush1.msra.mxu0 0.0
    %2158 = vmatprep.subr.mxu0 0.0
    %2159 = vmatpush1.msra.mxu0 0.0
    %2160 = vmatprep.subr.mxu0 0.0
    %2161 = vmatpush1.msra.mxu0 0.0
    %2162 = vmatprep.subr.mxu0 0.0
    %2163 = vmatpush1.msra.mxu0 0.0
    %2164 = vmatprep.subr.mxu0 0.0
    %2165 = vmatpush1.msra.mxu0 0.0
    %2166 = vmatprep.subr.mxu0 0.0
    %2167 = vmatpush1.msra.mxu0 0.0
    %2168 = vmatprep.subr.mxu0 0.0
    %2169 = vmatpush1.msra.mxu0 0.0
    %2170 = vmatprep.subr.mxu0 0.0
    %2171 = vmatpush1.msra.mxu0 0.0
    %2172 = vmatprep.subr.mxu0 0.0
    %2173 = vmatpush1.msra.mxu0 0.0
    %2174 = vmatprep.subr.mxu0 0.0
    %2175 = vmatpush1.msra.mxu0 0.0
    %2176 = vmatprep.subr.mxu0 0.0
    %2177 = vmatpush1.msra.mxu0 0.0
    %2178 = vmatprep.subr.mxu0 0.0
    %2179 = vmatpush1.msra.mxu0 0.0
    %2180 = vmatprep.subr.mxu0 0.0
    %2181 = vmatpush1.msra.mxu0 0.0
    %2182 = vmatprep.subr.mxu0 0.0
    %2183 = vmatpush1.msra.mxu0 0.0
    %2184 = vmatprep.subr.mxu0 0.0
    %2185 = vmatpush1.msra.mxu0 0.0
    %2186 = vmatprep.subr.mxu0 0.0
    %2187 = vmatpush1.msra.mxu0 0.0
    %2188 = vmatprep.subr.mxu0 0.0
    %2189 = vmatpush1.msra.mxu0 0.0
    %2190 = vmatprep.subr.mxu0 0.0
    %2191 = vmatpush1.msra.mxu0 0.0
    %2192 = vmatprep.mubr.f32.mxu0 0.0
    %2193 = vmatmul.mubr.f32.gmra.mrb[0].mxu0 %v2126
    %v2194 = vpop.f32.mrb[0].mxu0
    %v2195 = vadd.f32 %v2119, %v2194
    %v2196 = vpop.f32.mrb[0].mxu0
    %v2197 = vadd.f32 %v2123, %v2196
    %2198 = vdwg.mxu0
    %v2199 = vmul.f32 %v2195, %v83
    %v2200 = vmul.f32 %v2197, %v84
    %v2201 = vxor.u32 %v2199, 2147483648
    %v2202 = vxor.u32 %v2200, 2147483648
    %v2203 = vmul.f32 %v2201, 1.442695
    %v2204 = vpow.pop %v2203
    %v2205 = vmul.f32 %v2202, 1.442695
    %v2206 = vpow.pop %v2205
    %v2207 = vadd.f32 %v2204, 1.0
    %v2208 = vadd.f32 %v2206, 1.0
    %v2209 = vrcp.pop %v2207
    %v2210 = vmul.f32 1.0, %v2209
    %v2211 = vrcp.pop %v2208
    %v2212 = vmul.f32 1.0, %v2211
    %v2213 = vmul.f32 %v2210, %v83
    %v2214 = vmul.f32 %v2212, %v84
    %v2215 = vadd.f32 %v2213, %v85
    %v2216 = vadd.f32 %v2214, %v86
    %v2217 = vmul.f32 %v2215, %v2108
    %v2218 = vmul.f32 %v2215, %v2216
    %2220 = vrot.lane.b32.xlu0 %v2218, 64
    %v2221 = vpop.permute.xlu0 %2220
    %v2223 = vadd.f32 %v2217, %v2221
    %v2224 = vtanh.pop %v2223
    %v2225 = vmul.f32 %v2216, %v2224
    %v2226 = vld [vmem:[%s1005] ss:$8 sm:$0x3]
    %2228 = vrot.lane.b32.xlu0 %v2225, 64
    %v2229 = vpop.permute.xlu0 %2228
    %v2231 = vlaneseq
    %v2232 = vshrl.u32 %v2231, 7
    %v2233 = vsub.s32 0, %v2232
    %v2234 = vrot.slane %v2226, %v2233
    %v2235 = vlaneseq
    %v2236 = vshrl.u32 %v2235, 7
    %v2237 = vsub.s32 1, %v2236
    %v2238 = vrot.slane %v2226, %v2237
    %v2241 = vsel %vm323, %v2229, 0
    %2243 = vmatprep.subr.mxu0 %v1526
    %2244 = vmatpush1.msra.mxu0 %v1525
    %2245 = vmatprep.subr.mxu0 %v1528
    %2246 = vmatpush1.msra.mxu0 %v1527
    %2247 = vmatprep.subr.mxu0 %v1530
    %2248 = vmatpush1.msra.mxu0 %v1529
    %2249 = vmatprep.subr.mxu0 %v1532
    %2250 = vmatpush1.msra.mxu0 %v1531
    %2251 = vmatprep.subr.mxu0 %v1534
    %2252 = vmatpush1.msra.mxu0 %v1533
    %2253 = vmatprep.subr.mxu0 %v1536
    %2254 = vmatpush1.msra.mxu0 %v1535
    %2255 = vmatprep.subr.mxu0 %v1538
    %2256 = vmatpush1.msra.mxu0 %v1537
    %2257 = vmatprep.subr.mxu0 %v1540
    %2258 = vmatpush1.msra.mxu0 %v1539
    %2259 = vmatprep.subr.mxu0 0.0
    %2260 = vmatpush1.msra.mxu0 0.0
    %2261 = vmatprep.subr.mxu0 0.0
    %2262 = vmatpush1.msra.mxu0 0.0
    %2263 = vmatprep.subr.mxu0 0.0
    %2264 = vmatpush1.msra.mxu0 0.0
    %2265 = vmatprep.subr.mxu0 0.0
    %2266 = vmatpush1.msra.mxu0 0.0
    %2267 = vmatprep.subr.mxu0 0.0
    %2268 = vmatpush1.msra.mxu0 0.0
    %2269 = vmatprep.subr.mxu0 0.0
    %2270 = vmatpush1.msra.mxu0 0.0
    %2271 = vmatprep.subr.mxu0 0.0
    %2272 = vmatpush1.msra.mxu0 0.0
    %2273 = vmatprep.subr.mxu0 0.0
    %2274 = vmatpush1.msra.mxu0 0.0
    %2275 = vmatprep.subr.mxu0 0.0
    %2276 = vmatpush1.msra.mxu0 0.0
    %2277 = vmatprep.subr.mxu0 0.0
    %2278 = vmatpush1.msra.mxu0 0.0
    %2279 = vmatprep.subr.mxu0 0.0
    %2280 = vmatpush1.msra.mxu0 0.0
    %2281 = vmatprep.subr.mxu0 0.0
    %2282 = vmatpush1.msra.mxu0 0.0
    %2283 = vmatprep.subr.mxu0 0.0
    %2284 = vmatpush1.msra.mxu0 0.0
    %2285 = vmatprep.subr.mxu0 0.0
    %2286 = vmatpush1.msra.mxu0 0.0
    %2287 = vmatprep.subr.mxu0 0.0
    %2288 = vmatpush1.msra.mxu0 0.0
    %2289 = vmatprep.subr.mxu0 0.0
    %2290 = vmatpush1.msra.mxu0 0.0
    %2291 = vmatprep.subr.mxu0 0.0
    %2292 = vmatpush1.msra.mxu0 0.0
    %2293 = vmatprep.subr.mxu0 0.0
    %2294 = vmatpush1.msra.mxu0 0.0
    %2295 = vmatprep.subr.mxu0 0.0
    %2296 = vmatpush1.msra.mxu0 0.0
    %2297 = vmatprep.subr.mxu0 0.0
    %2298 = vmatpush1.msra.mxu0 0.0
    %2299 = vmatprep.subr.mxu0 0.0
    %2300 = vmatpush1.msra.mxu0 0.0
    %2301 = vmatprep.subr.mxu0 0.0
    %2302 = vmatpush1.msra.mxu0 0.0
    %2303 = vmatprep.subr.mxu0 0.0
    %2304 = vmatpush1.msra.mxu0 0.0
    %2305 = vmatprep.subr.mxu0 0.0
    %2306 = vmatpush1.msra.mxu0 0.0
    %2307 = vmatprep.mubr.f32.mxu0 0.0
    %2308 = vmatmul.mubr.f32.gmra.mrb[0].mxu0 %v2241
    %v2309 = vpop.f32.mrb[0].mxu0
    %v2310 = vadd.f32 %v2234, %v2309
    %v2311 = vpop.f32.mrb[0].mxu0
    %v2312 = vadd.f32 %v2238, %v2311
    %2313 = vdwg.mxu0
    %v2314 = vmul.f32 %v2310, %v83
    %v2315 = vmul.f32 %v2312, %v84
    %v2316 = vxor.u32 %v2314, 2147483648
    %v2317 = vxor.u32 %v2315, 2147483648
    %v2318 = vmul.f32 %v2316, 1.442695
    %v2319 = vpow.pop %v2318
    %v2320 = vmul.f32 %v2317, 1.442695
    %v2321 = vpow.pop %v2320
    %v2322 = vadd.f32 %v2319, 1.0
    %v2323 = vadd.f32 %v2321, 1.0
    %v2324 = vrcp.pop %v2322
    %v2325 = vmul.f32 1.0, %v2324
    %v2326 = vrcp.pop %v2323
    %v2327 = vmul.f32 1.0, %v2326
    %v2328 = vmul.f32 %v2325, %v83
    %v2329 = vmul.f32 %v2327, %v84
    %v2330 = vadd.f32 %v2328, %v85
    %v2331 = vadd.f32 %v2329, %v86
    %v2332 = vmul.f32 %v2330, %v2223
    %v2333 = vmul.f32 %v2330, %v2331
    %2335 = vrot.lane.b32.xlu0 %v2333, 64
    %v2336 = vpop.permute.xlu0 %2335
    %v2338 = vadd.f32 %v2332, %v2336
    %v2339 = vtanh.pop %v2338
    %v2340 = vmul.f32 %v2331, %v2339
    %v2341 = vld [vmem:[%s1121] ss:$8 sm:$0x3]
    %2343 = vrot.lane.b32.xlu0 %v2340, 64
    %v2344 = vpop.permute.xlu0 %2343
    %v2346 = vlaneseq
    %v2347 = vshrl.u32 %v2346, 7
    %v2348 = vsub.s32 0, %v2347
    %v2349 = vrot.slane %v2341, %v2348
    %v2350 = vlaneseq
    %v2351 = vshrl.u32 %v2350, 7
    %v2352 = vsub.s32 1, %v2351
    %v2353 = vrot.slane %v2341, %v2352
    %v2356 = vsel %vm323, %v2344, 0
    %2358 = vmatprep.subr.mxu0 %v1526
    %2359 = vmatpush1.msra.mxu0 %v1525
    %2360 = vmatprep.subr.mxu0 %v1528
    %2361 = vmatpush1.msra.mxu0 %v1527
    %2362 = vmatprep.subr.mxu0 %v1530
    %2363 = vmatpush1.msra.mxu0 %v1529
    %2364 = vmatprep.subr.mxu0 %v1532
    %2365 = vmatpush1.msra.mxu0 %v1531
    %2366 = vmatprep.subr.mxu0 %v1534
    %2367 = vmatpush1.msra.mxu0 %v1533
    %2368 = vmatprep.subr.mxu0 %v1536
    %2369 = vmatpush1.msra.mxu0 %v1535
    %2370 = vmatprep.subr.mxu0 %v1538
    %2371 = vmatpush1.msra.mxu0 %v1537
    %2372 = vmatprep.subr.mxu0 %v1540
    %2373 = vmatpush1.msra.mxu0 %v1539
    %2374 = vmatprep.subr.mxu0 0.0
    %2375 = vmatpush1.msra.mxu0 0.0
    %2376 = vmatprep.subr.mxu0 0.0
    %2377 = vmatpush1.msra.mxu0 0.0
    %2378 = vmatprep.subr.mxu0 0.0
    %2379 = vmatpush1.msra.mxu0 0.0
    %2380 = vmatprep.subr.mxu0 0.0
    %2381 = vmatpush1.msra.mxu0 0.0
    %2382 = vmatprep.subr.mxu0 0.0
    %2383 = vmatpush1.msra.mxu0 0.0
    %2384 = vmatprep.subr.mxu0 0.0
    %2385 = vmatpush1.msra.mxu0 0.0
    %2386 = vmatprep.subr.mxu0 0.0
    %2387 = vmatpush1.msra.mxu0 0.0
    %2388 = vmatprep.subr.mxu0 0.0
    %2389 = vmatpush1.msra.mxu0 0.0
    %2390 = vmatprep.subr.mxu0 0.0
    %2391 = vmatpush1.msra.mxu0 0.0
    %2392 = vmatprep.subr.mxu0 0.0
    %2393 = vmatpush1.msra.mxu0 0.0
    %2394 = vmatprep.subr.mxu0 0.0
    %2395 = vmatpush1.msra.mxu0 0.0
    %2396 = vmatprep.subr.mxu0 0.0
    %2397 = vmatpush1.msra.mxu0 0.0
    %2398 = vmatprep.subr.mxu0 0.0
    %2399 = vmatpush1.msra.mxu0 0.0
    %2400 = vmatprep.subr.mxu0 0.0
    %2401 = vmatpush1.msra.mxu0 0.0
    %2402 = vmatprep.subr.mxu0 0.0
    %2403 = vmatpush1.msra.mxu0 0.0
    %2404 = vmatprep.subr.mxu0 0.0
    %2405 = vmatpush1.msra.mxu0 0.0
    %2406 = vmatprep.subr.mxu0 0.0
    %2407 = vmatpush1.msra.mxu0 0.0
    %2408 = vmatprep.subr.mxu0 0.0
    %2409 = vmatpush1.msra.mxu0 0.0
    %2410 = vmatprep.subr.mxu0 0.0
    %2411 = vmatpush1.msra.mxu0 0.0
    %2412 = vmatprep.subr.mxu0 0.0
    %2413 = vmatpush1.msra.mxu0 0.0
    %2414 = vmatprep.subr.mxu0 0.0
    %2415 = vmatpush1.msra.mxu0 0.0
    %2416 = vmatprep.subr.mxu0 0.0
    %2417 = vmatpush1.msra.mxu0 0.0
    %2418 = vmatprep.subr.mxu0 0.0
    %2419 = vmatpush1.msra.mxu0 0.0
    %2420 = vmatprep.subr.mxu0 0.0
    %2421 = vmatpush1.msra.mxu0 0.0
    %2422 = vmatprep.mubr.f32.mxu0 0.0
    %2423 = vmatmul.mubr.f32.gmra.mrb[0].mxu0 %v2356
    %v2424 = vpop.f32.mrb[0].mxu0
    %v2425 = vadd.f32 %v2349, %v2424
    %v2426 = vpop.f32.mrb[0].mxu0
    %v2427 = vadd.f32 %v2353, %v2426
    %2428 = vdwg.mxu0
    %v2429 = vmul.f32 %v2425, %v83
    %v2430 = vmul.f32 %v2427, %v84
    %v2431 = vxor.u32 %v2429, 2147483648
    %v2432 = vxor.u32 %v2430, 2147483648
    %v2433 = vmul.f32 %v2431, 1.442695
    %v2434 = vpow.pop %v2433
    %v2435 = vmul.f32 %v2432, 1.442695
    %v2436 = vpow.pop %v2435
    %v2437 = vadd.f32 %v2434, 1.0
    %v2438 = vadd.f32 %v2436, 1.0
    %v2439 = vrcp.pop %v2437
    %v2440 = vmul.f32 1.0, %v2439
    %v2441 = vrcp.pop %v2438
    %v2442 = vmul.f32 1.0, %v2441
    %v2443 = vmul.f32 %v2440, %v83
    %v2444 = vmul.f32 %v2442, %v84
    %v2445 = vadd.f32 %v2443, %v85
    %v2446 = vadd.f32 %v2444, %v86
    %v2447 = vmul.f32 %v2445, %v2338
    %v2448 = vmul.f32 %v2445, %v2446
    %2450 = vrot.lane.b32.xlu0 %v2448, 64
    %v2451 = vpop.permute.xlu0 %2450
    %v2453 = vadd.f32 %v2447, %v2451
    %v2454 = vtanh.pop %v2453
    %v2455 = vmul.f32 %v2446, %v2454
    %v2456 = vrot.slane %v1765, 7
    %v2458 = vrot.slane %v1880, 6
    %v2460 = vrot.slane %v1995, 5
    %v2462 = vrot.slane %v2110, 4
    %v2464 = vrot.slane %v2225, 3
    %v2466 = vrot.slane %v2340, 2
    %v2469 = vrot.slane %v2455, 1
    %v2471 = vsel %vm1252, %v1650, %v2456
    %v2472 = vsel %vm1254, %v2471, %v2458
    %v2473 = vsel %vm1256, %v2472, %v2460
    %v2474 = vsel %vm1258, %v2473, %v2462
    %v2475 = vsel %vm1260, %v2474, %v2464
    %v2476 = vsel %vm1262, %v2475, %v2466
    %v2477 = vsel %vm1264, %v2476, %v2469
    %2479 = vrot.lane.b32.xlu0 %v2477, 32
    %v2480 = vpop.permute.xlu0 %2479
    %2482 = vmatprep.subr.mxu0 0.0
    %2483 = vmatpush1.msra.mxu0 %v2480
    %2484 = vmatprep.subr.mxu0 0.0
    %2485 = vmatpush1.msra.mxu0 0.0
    %2486 = vmatprep.subr.mxu0 0.0
    %2487 = vmatpush1.msra.mxu0 0.0
    %2488 = vmatprep.subr.mxu0 0.0
    %2489 = vmatpush1.msra.mxu0 0.0
    %2490 = vmatprep.subr.mxu0 0.0
    %2491 = vmatpush1.msra.mxu0 0.0
    %2492 = vmatprep.subr.mxu0 0.0
    %2493 = vmatpush1.msra.mxu0 0.0
    %2494 = vmatprep.subr.mxu0 0.0
    %2495 = vmatpush1.msra.mxu0 0.0
    %2496 = vmatprep.subr.mxu0 0.0
    %2497 = vmatpush1.msra.mxu0 0.0
    %2498 = vmatprep.subr.mxu0 0.0
    %2499 = vmatpush1.msra.mxu0 0.0
    %2500 = vmatprep.subr.mxu0 0.0
    %2501 = vmatpush1.msra.mxu0 0.0
    %2502 = vmatprep.subr.mxu0 0.0
    %2503 = vmatpush1.msra.mxu0 0.0
    %2504 = vmatprep.subr.mxu0 0.0
    %2505 = vmatpush1.msra.mxu0 0.0
    %2506 = vmatprep.subr.mxu0 0.0
    %2507 = vmatpush1.msra.mxu0 0.0
    %2508 = vmatprep.subr.mxu0 0.0
    %2509 = vmatpush1.msra.mxu0 0.0
    %2510 = vmatprep.subr.mxu0 0.0
    %2511 = vmatpush1.msra.mxu0 0.0
    %2512 = vmatprep.subr.mxu0 0.0
    %2513 = vmatpush1.msra.mxu0 0.0
    %2514 = vmatprep.subr.mxu0 0.0
    %2515 = vmatpush1.msra.mxu0 0.0
    %2516 = vmatprep.subr.mxu0 0.0
    %2517 = vmatpush1.msra.mxu0 0.0
    %2518 = vmatprep.subr.mxu0 0.0
    %2519 = vmatpush1.msra.mxu0 0.0
    %2520 = vmatprep.subr.mxu0 0.0
    %2521 = vmatpush1.msra.mxu0 0.0
    %2522 = vmatprep.subr.mxu0 0.0
    %2523 = vmatpush1.msra.mxu0 0.0
    %2524 = vmatprep.subr.mxu0 0.0
    %2525 = vmatpush1.msra.mxu0 0.0
    %2526 = vmatprep.subr.mxu0 0.0
    %2527 = vmatpush1.msra.mxu0 0.0
    %2528 = vmatprep.subr.mxu0 0.0
    %2529 = vmatpush1.msra.mxu0 0.0
    %2530 = vmatprep.subr.mxu0 0.0
    %2531 = vmatpush1.msra.mxu0 0.0
    %2532 = vmatprep.subr.mxu0 0.0
    %2533 = vmatpush1.msra.mxu0 0.0
    %2534 = vmatprep.subr.mxu0 0.0
    %2535 = vmatpush1.msra.mxu0 0.0
    %2536 = vmatprep.subr.mxu0 0.0
    %2537 = vmatpush1.msra.mxu0 0.0
    %2538 = vmatprep.subr.mxu0 0.0
    %2539 = vmatpush1.msra.mxu0 0.0
    %2540 = vmatprep.subr.mxu0 0.0
    %2541 = vmatpush1.msra.mxu0 0.0
    %2542 = vmatprep.subr.mxu0 0.0
    %2543 = vmatpush1.msra.mxu0 0.0
    %2544 = vmatprep.subr.mxu0 0.0
    %2545 = vmatpush1.msra.mxu0 0.0
    %2546 = vmatprep.mubr.f32.mxu0 0.0
    %2547 = vmatmul.mubr.f32.gmra.mrb[0].mxu0 %v218
    %v2548 = vpop.f32.mrb[0].mxu0
    %v2549 = vadd.f32 0.0, %v2548
    %v2550 = vpop.f32.mrb[0].mxu0
    %2551 = vdwg.mxu0
    %2552 = vrot.lane.b32.xlu0 %v2477, 64
    %v2553 = vpop.permute.xlu0 %2552
    %2556 = vrot.lane.b32.xlu0 %v2549, 32
    %v2557 = vpop.permute.xlu0 %2556
    %v2559 = vsel %vm141, %v2553, %v2557
    %v2560 = vld [vmem:[%s7] sm:$0xff]
    %v2561 = vld [vmem:[%s7 + $0x8] sm:$0xff]
    %v2562 = vld [vmem:[%s7 + $0x10] sm:$0xff]
    %v2563 = vld [vmem:[%s7 + $0x18] sm:$0xff]
    %v2564 = vld [vmem:[%s7 + $0x20] sm:$0xff]
    %v2565 = vld [vmem:[%s7 + $0x28] sm:$0xff]
    %v2566 = vld [vmem:[%s7 + $0x30] sm:$0xff]
    %v2567 = vld [vmem:[%s7 + $0x38] sm:$0xff]
    %v2568 = vld [vmem:[%s8] sm:$0x1]
    %v2570 = vlaneseq
    %v2571 = vshrl.u32 %v2570, 7
    %v2572 = vsub.s32 0, %v2571
    %v2573 = vrot.slane %v2568, %v2572
    %v2576 = vsel %vm323, %v2559, 0
    %2578 = vmatprep.subr.mxu0 0.0
    %2579 = vmatpush1.msra.mxu0 %v2560
    %2580 = vmatprep.subr.mxu0 0.0
    %2581 = vmatpush1.msra.mxu0 %v2561
    %2582 = vmatprep.subr.mxu0 0.0
    %2583 = vmatpush1.msra.mxu0 %v2562
    %2584 = vmatprep.subr.mxu0 0.0
    %2585 = vmatpush1.msra.mxu0 %v2563
    %2586 = vmatprep.subr.mxu0 0.0
    %2587 = vmatpush1.msra.mxu0 %v2564
    %2588 = vmatprep.subr.mxu0 0.0
    %2589 = vmatpush1.msra.mxu0 %v2565
    %2590 = vmatprep.subr.mxu0 0.0
    %2591 = vmatpush1.msra.mxu0 %v2566
    %2592 = vmatprep.subr.mxu0 0.0
    %2593 = vmatpush1.msra.mxu0 %v2567
    %2594 = vmatprep.subr.mxu0 0.0
    %2595 = vmatpush1.msra.mxu0 0.0
    %2596 = vmatprep.subr.mxu0 0.0
    %2597 = vmatpush1.msra.mxu0 0.0
    %2598 = vmatprep.subr.mxu0 0.0
    %2599 = vmatpush1.msra.mxu0 0.0
    %2600 = vmatprep.subr.mxu0 0.0
    %2601 = vmatpush1.msra.mxu0 0.0
    %2602 = vmatprep.subr.mxu0 0.0
    %2603 = vmatpush1.msra.mxu0 0.0
    %2604 = vmatprep.subr.mxu0 0.0
    %2605 = vmatpush1.msra.mxu0 0.0
    %2606 = vmatprep.subr.mxu0 0.0
    %2607 = vmatpush1.msra.mxu0 0.0
    %2608 = vmatprep.subr.mxu0 0.0
    %2609 = vmatpush1.msra.mxu0 0.0
    %2610 = vmatprep.subr.mxu0 0.0
    %2611 = vmatpush1.msra.mxu0 0.0
    %2612 = vmatprep.subr.mxu0 0.0
    %2613 = vmatpush1.msra.mxu0 0.0
    %2614 = vmatprep.subr.mxu0 0.0
    %2615 = vmatpush1.msra.mxu0 0.0
    %2616 = vmatprep.subr.mxu0 0.0
    %2617 = vmatpush1.msra.mxu0 0.0
    %2618 = vmatprep.subr.mxu0 0.0
    %2619 = vmatpush1.msra.mxu0 0.0
    %2620 = vmatprep.subr.mxu0 0.0
    %2621 = vmatpush1.msra.mxu0 0.0
    %2622 = vmatprep.subr.mxu0 0.0
    %2623 = vmatpush1.msra.mxu0 0.0
    %2624 = vmatprep.subr.mxu0 0.0
    %2625 = vmatpush1.msra.mxu0 0.0
    %2626 = vmatprep.subr.mxu0 0.0
    %2627 = vmatpush1.msra.mxu0 0.0
    %2628 = vmatprep.subr.mxu0 0.0
    %2629 = vmatpush1.msra.mxu0 0.0
    %2630 = vmatprep.subr.mxu0 0.0
    %2631 = vmatpush1.msra.mxu0 0.0
    %2632 = vmatprep.subr.mxu0 0.0
    %2633 = vmatpush1.msra.mxu0 0.0
    %2634 = vmatprep.subr.mxu0 0.0
    %2635 = vmatpush1.msra.mxu0 0.0
    %2636 = vmatprep.subr.mxu0 0.0
    %2637 = vmatpush1.msra.mxu0 0.0
    %2638 = vmatprep.subr.mxu0 0.0
    %2639 = vmatpush1.msra.mxu0 0.0
    %2640 = vmatprep.subr.mxu0 0.0
    %2641 = vmatpush1.msra.mxu0 0.0
    %2642 = vmatprep.mubr.f32.mxu0 0.0
    %2643 = vmatmul.mubr.f32.gmra.mrb[0].mxu0 %v2576
    %v2644 = vpop.f32.mrb[0].mxu0
    %v2645 = vadd.f32 %v2573, %v2644
    %v2646 = vpop.f32.mrb[0].mxu0
    %2647 = vdwg.mxu0
    %2648 = vst.msk [vmem:[#allocation9] sm:$0xff] %vm141, %v2645
    // Predicated region
    $region50: #{turn_level_lstm_forward.1} parent=1 // pred_check
      _
    $region51: #{turn_level_lstm_forward.1} parent=1 // pred_check_branch
      %2650 = sbr.rel (0) target = $region53
    $region52: #{turn_level_lstm_forward.1} parent=1 // pred_region
      %s2652 = ssub.s32 128, 128
      %2653 = vsyncadd [#allocation5], %s2652
      %s2655 = sshll.u32 [#allocation9], 4
      %s2656 = int_to_ptr.vmem [resolvable:$true] %s2655
      %2658 = dma.vmem_to_hbm [thread:$0]  %s2656, 128, %s9, [#allocation5]
    $region53: #{turn_level_lstm_forward.1} parent=1 // pred_fallthru
      _
    // Predicated region
    $region54: #{turn_level_lstm_forward.1} parent=1 // pred_check
      _
    $region55: #{turn_level_lstm_forward.1} parent=1 // pred_check_branch
      %2660 = sbr.rel (0) target = $region57
    $region56: #{turn_level_lstm_forward.1} parent=1 // pred_region
      %2661 = dma.done [#allocation5], 128
    $region57: #{turn_level_lstm_forward.1} parent=1 // pred_fallthru
      _
    %2662 = vsyncpa [#allocation4], 1
    %2663 = vsyncpa [#allocation7], 1
    %2664 = vsyncpa [#allocation5], 1

</llo_original>
